<compile_context>
chip_gen: v7x
topology: tpu7x:2x2x1
jax: 0.10.0
libtpu: 0.0.40
codegen_flags: <defaults>
</compile_context>

<pallas_src>
import functools

import jax
import jax.numpy as jnp
from jax.experimental import pallas as pl
from jax.experimental.pallas import tpu as pltpu


def _net_kernel(n_hid, x_ref, *rest):
    """Fused forward pass for one batch tile (transposed layout [F, B]).

    rest = (W0, b0, W1, b1, ..., W_last, b_last, out_ref)
    W_i: [out, in] (PyTorch layout), b_i: [out, 1].
    """
    out_ref = rest[-1]
    prefs = rest[:-1]

    x = x_ref[...]  # [d_in, B]
    for i in range(n_hid):
        Wa = prefs[4 * i][...]       # [d1, d_in]
        ba = prefs[4 * i + 1][...]   # [d1, 1]
        Wb = prefs[4 * i + 2][...]   # [d1, d1]
        bb = prefs[4 * i + 3][...]   # [d1, 1]

        h = jnp.sin(jnp.dot(Wa, x, preferred_element_type=jnp.float32) + ba)
        h = jnp.sin(jnp.dot(Wb, h, preferred_element_type=jnp.float32) + bb)

        # residual: h + (x @ eye(d_in, d_out)) in the original layout
        #         = h + (x zero-padded / truncated along the feature axis) here.
        d_in = x.shape[0]
        d_out = h.shape[0]
        if d_in == d_out:
            x = h + x
        elif d_in < d_out:
            x = h + jnp.concatenate(
                [x, jnp.zeros((d_out - d_in, x.shape[1]), x.dtype)], axis=0
            )
        else:
            x = h + x[:d_out, :]

    Wl = prefs[-2][...]  # [out_dim, d_last]
    bl = prefs[-1][...]  # [out_dim, 1]
    out_ref[...] = (
        jnp.dot(Wl, x, preferred_element_type=jnp.float32) + bl
    ).astype(out_ref.dtype)


def net_forward(x, params, layers, *, batch_tile=256):
    """x: [N, F] float32. params: flat [W0, b0, W1, b1, ...] with W [out,in], b [out,1]."""
    n_hid = len(layers) - 2
    N, F = x.shape
    assert F == layers[0]
    out_dim = layers[-1]

    # Pad the batch so it is a multiple of batch_tile (batch sits on the lane axis).
    n_pad = (-N) % batch_tile
    if n_pad:
        x = jnp.concatenate([x, jnp.zeros((n_pad, F), x.dtype)], axis=0)
    Np = N + n_pad
    grid = (Np // batch_tile,)

    xT = x.T  # [F, Np] -- batch on lanes

    in_specs = [pl.BlockSpec((F, batch_tile), lambda i: (0, i))]
    flat_inputs = [xT]
    for p in params:
        # Small weights/biases: full-array block, same block index every step
        # -> stay VMEM-resident across the batch grid.
        in_specs.append(pl.BlockSpec(p.shape, lambda i: (0, 0)))
        flat_inputs.append(p)

    out_spec = pl.BlockSpec((out_dim, batch_tile), lambda i: (0, i))

    kernel = functools.partial(_net_kernel, n_hid)
    outT = pl.pallas_call(
        kernel,
        out_shape=jax.ShapeDtypeStruct((out_dim, Np), jnp.float32),
        grid_spec=pl.GridSpec(grid=grid, in_specs=in_specs, out_specs=out_spec),
        compiler_params=pltpu.CompilerParams(dimension_semantics=("parallel",)),
    )(*flat_inputs)

    return outT.T[:N]  # back to [N, out_dim]


def init_params(key, layers):
    """Deterministic PyTorch-style Linear init: U(-1/sqrt(fan_in), 1/sqrt(fan_in)).

    Returns flat list [W, b, W, b, ...] with W [out, in], b [out, 1], matching
    the fc Sequential ordering: per hidden block i, Linear(layers[i], layers[i+1])
    then Linear(layers[i+1], layers[i+1]); then a final Linear(layers[-2], layers[-1]).
    """
    n_hid = len(layers) - 2
    dims = []
    for i in range(n_hid):
        dims.append((layers[i], layers[i + 1]))
        dims.append((layers[i + 1], layers[i + 1]))
    dims.append((layers[-2], layers[-1]))

    params = []
    for (fan_in, fan_out) in dims:
        key, kw, kb = jax.random.split(key, 3)
        bound = 1.0 / jnp.sqrt(jnp.float32(fan_in))
        W = jax.random.uniform(
            kw, (fan_out, fan_in), jnp.float32, minval=-bound, maxval=bound
        )
        b = jax.random.uniform(
            kb, (fan_out, 1), jnp.float32, minval=-bound, maxval=bound
        )
        params.extend([W, b])
    return params


def net_forward_ref(x, params, layers):
    """Pure-JAX reference mirroring the PyTorch forward (standard [N, F] layout)."""
    n_hid = len(layers) - 2
    for i in range(n_hid):
        Wa, ba, Wb, bb = params[4 * i : 4 * i + 4]
        h = jnp.sin(x @ Wa.T + ba[:, 0])
        h = jnp.sin(h @ Wb.T + bb[:, 0])
        eye = jnp.eye(x.shape[-1], layers[i + 1], dtype=x.dtype)
        x = h + x @ eye
    Wl, bl = params[-2], params[-1]
    return x @ Wl.T + bl[:, 0]


if __name__ == "__main__":
    # layers config analogous to the PDE-net usage: input dim 16, two hidden
    # blocks of width 32, scalar output ("oneOut").
    layers = [16, 32, 32, 1]
    N = 512           # batch; 2 grid steps of 256 so v7x can use both TCs
    batch_tile = 256  # multiple of 256 (v6e/v7x MXU pass) and of 128 (v5e)

    key = jax.random.PRNGKey(0)
    key, kx = jax.random.split(key)
    x = jax.random.normal(kx, (N, layers[0]), jnp.float32)
    params = init_params(key, layers)

    out = net_forward(x, params, layers, batch_tile=batch_tile)
    out = jax.block_until_ready(out)

    ref = net_forward_ref(x, params, layers)
    assert out.shape == (N, layers[-1])
    assert jnp.allclose(out, ref, atol=1e-4, rtol=1e-4)

    print("KERNEL_OK")
</pallas_src>

<mosaic_0001>
module attributes {stable_mosaic.version = 11 : i64} {
  func.func @_net_kernel(%arg0: i32, %arg1: memref<16x256xf32, #tpu.memory_space<vmem>>, %arg2: memref<32x16xf32, #tpu.memory_space<vmem>>, %arg3: memref<32x1xf32, #tpu.memory_space<vmem>>, %arg4: memref<32x32xf32, #tpu.memory_space<vmem>>, %arg5: memref<32x1xf32, #tpu.memory_space<vmem>>, %arg6: memref<32x32xf32, #tpu.memory_space<vmem>>, %arg7: memref<32x1xf32, #tpu.memory_space<vmem>>, %arg8: memref<32x32xf32, #tpu.memory_space<vmem>>, %arg9: memref<32x1xf32, #tpu.memory_space<vmem>>, %arg10: memref<1x32xf32, #tpu.memory_space<vmem>>, %arg11: memref<1x1xf32, #tpu.memory_space<vmem>>, %arg12: memref<1x256xf32, #tpu.memory_space<vmem>>) attributes {dimension_semantics = [#tpu.dimension_semantics<parallel>], iteration_bounds = array<i64: 2>, scalar_prefetch = 0 : i64, scratch_operands = 0 : i64, tpu.core_type = #tpu.core_type<tc>, window_params = [{transform_indices = @transform_0, window_bounds = array<i64: 16, 256>}, {pipeline_mode = #tpu.pipeline_mode<synchronous>, transform_indices = @transform_1, window_bounds = array<i64: 32, 16>}, {pipeline_mode = #tpu.pipeline_mode<synchronous>, transform_indices = @transform_2, window_bounds = array<i64: 32, 1>}, {pipeline_mode = #tpu.pipeline_mode<synchronous>, transform_indices = @transform_3, window_bounds = array<i64: 32, 32>}, {pipeline_mode = #tpu.pipeline_mode<synchronous>, transform_indices = @transform_4, window_bounds = array<i64: 32, 1>}, {pipeline_mode = #tpu.pipeline_mode<synchronous>, transform_indices = @transform_5, window_bounds = array<i64: 32, 32>}, {pipeline_mode = #tpu.pipeline_mode<synchronous>, transform_indices = @transform_6, window_bounds = array<i64: 32, 1>}, {pipeline_mode = #tpu.pipeline_mode<synchronous>, transform_indices = @transform_7, window_bounds = array<i64: 32, 32>}, {pipeline_mode = #tpu.pipeline_mode<synchronous>, transform_indices = @transform_8, window_bounds = array<i64: 32, 1>}, {pipeline_mode = #tpu.pipeline_mode<synchronous>, transform_indices = @transform_9, window_bounds = array<i64: 1, 32>}, {pipeline_mode = #tpu.pipeline_mode<synchronous>, transform_indices = @transform_10, window_bounds = array<i64: 1, 1>}, {transform_indices = @transform_11, window_bounds = array<i64: 1, 256>}]} {
    %c0 = arith.constant 0 : index
    %c0_0 = arith.constant 0 : index
    %0 = vector.load %arg1[%c0, %c0_0] : memref<16x256xf32, #tpu.memory_space<vmem>>, vector<16x256xf32>
    %c0_1 = arith.constant 0 : index
    %c0_2 = arith.constant 0 : index
    %1 = vector.load %arg2[%c0_1, %c0_2] : memref<32x16xf32, #tpu.memory_space<vmem>>, vector<32x16xf32>
    %c0_3 = arith.constant 0 : index
    %c0_4 = arith.constant 0 : index
    %2 = vector.load %arg3[%c0_3, %c0_4] : memref<32x1xf32, #tpu.memory_space<vmem>>, vector<32x1xf32>
    %c0_5 = arith.constant 0 : index
    %c0_6 = arith.constant 0 : index
    %3 = vector.load %arg4[%c0_5, %c0_6] : memref<32x32xf32, #tpu.memory_space<vmem>>, vector<32x32xf32>
    %c0_7 = arith.constant 0 : index
    %c0_8 = arith.constant 0 : index
    %4 = vector.load %arg5[%c0_7, %c0_8] : memref<32x1xf32, #tpu.memory_space<vmem>>, vector<32x1xf32>
    %cst = arith.constant dense<0.000000e+00> : vector<32x256xf32>
    %5 = tpu.matmul %1, %0, %cst {dimension_numbers = #tpu.dot_dimension_numbers<[1], [0], [0], [1], [0, 0, 1, 1], [], []>} : vector<32x16xf32>, vector<16x256xf32>, vector<32x256xf32> -> vector<32x256xf32>
    %6 = vector.broadcast %2 : vector<32x1xf32> to vector<32x256xf32>
    %7 = arith.addf %5, %6 : vector<32x256xf32>
    %8 = math.sin %7 : vector<32x256xf32>
    %cst_9 = arith.constant dense<0.000000e+00> : vector<32x256xf32>
    %9 = tpu.matmul %3, %8, %cst_9 {dimension_numbers = #tpu.dot_dimension_numbers<[1], [0], [0], [1], [0, 0, 1, 1], [], []>} : vector<32x32xf32>, vector<32x256xf32>, vector<32x256xf32> -> vector<32x256xf32>
    %10 = vector.broadcast %4 : vector<32x1xf32> to vector<32x256xf32>
    %11 = arith.addf %9, %10 : vector<32x256xf32>
    %12 = math.sin %11 : vector<32x256xf32>
    %cst_10 = arith.constant 0.000000e+00 : f32
    %13 = vector.broadcast %cst_10 : f32 to vector<16x256xf32>
    %14 = tpu.concatenate %0, %13 in 0 : vector<16x256xf32>, vector<16x256xf32> -> vector<32x256xf32>
    %15 = arith.addf %12, %14 : vector<32x256xf32>
    %c0_11 = arith.constant 0 : index
    %c0_12 = arith.constant 0 : index
    %16 = vector.load %arg6[%c0_11, %c0_12] : memref<32x32xf32, #tpu.memory_space<vmem>>, vector<32x32xf32>
    %c0_13 = arith.constant 0 : index
    %c0_14 = arith.constant 0 : index
    %17 = vector.load %arg7[%c0_13, %c0_14] : memref<32x1xf32, #tpu.memory_space<vmem>>, vector<32x1xf32>
    %c0_15 = arith.constant 0 : index
    %c0_16 = arith.constant 0 : index
    %18 = vector.load %arg8[%c0_15, %c0_16] : memref<32x32xf32, #tpu.memory_space<vmem>>, vector<32x32xf32>
    %c0_17 = arith.constant 0 : index
    %c0_18 = arith.constant 0 : index
    %19 = vector.load %arg9[%c0_17, %c0_18] : memref<32x1xf32, #tpu.memory_space<vmem>>, vector<32x1xf32>
    %cst_19 = arith.constant dense<0.000000e+00> : vector<32x256xf32>
    %20 = tpu.matmul %16, %15, %cst_19 {dimension_numbers = #tpu.dot_dimension_numbers<[1], [0], [0], [1], [0, 0, 1, 1], [], []>} : vector<32x32xf32>, vector<32x256xf32>, vector<32x256xf32> -> vector<32x256xf32>
    %21 = vector.broadcast %17 : vector<32x1xf32> to vector<32x256xf32>
    %22 = arith.addf %20, %21 : vector<32x256xf32>
    %23 = math.sin %22 : vector<32x256xf32>
    %cst_20 = arith.constant dense<0.000000e+00> : vector<32x256xf32>
    %24 = tpu.matmul %18, %23, %cst_20 {dimension_numbers = #tpu.dot_dimension_numbers<[1], [0], [0], [1], [0, 0, 1, 1], [], []>} : vector<32x32xf32>, vector<32x256xf32>, vector<32x256xf32> -> vector<32x256xf32>
    %25 = vector.broadcast %19 : vector<32x1xf32> to vector<32x256xf32>
    %26 = arith.addf %24, %25 : vector<32x256xf32>
    %27 = math.sin %26 : vector<32x256xf32>
    %28 = arith.addf %27, %15 : vector<32x256xf32>
    %c0_21 = arith.constant 0 : index
    %c0_22 = arith.constant 0 : index
    %29 = vector.load %arg10[%c0_21, %c0_22] : memref<1x32xf32, #tpu.memory_space<vmem>>, vector<1x32xf32>
    %c0_23 = arith.constant 0 : index
    %c0_24 = arith.constant 0 : index
    %30 = vector.load %arg11[%c0_23, %c0_24] : memref<1x1xf32, #tpu.memory_space<vmem>>, vector<1x1xf32>
    %cst_25 = arith.constant dense<0.000000e+00> : vector<1x256xf32>
    %31 = tpu.matmul %29, %28, %cst_25 {dimension_numbers = #tpu.dot_dimension_numbers<[1], [0], [0], [1], [0, 0, 1, 1], [], []>} : vector<1x32xf32>, vector<32x256xf32>, vector<1x256xf32> -> vector<1x256xf32>
    %32 = vector.broadcast %30 : vector<1x1xf32> to vector<1x256xf32>
    %33 = arith.addf %31, %32 : vector<1x256xf32>
    %c0_26 = arith.constant 0 : index
    %c0_27 = arith.constant 0 : index
    %34 = vector.load %arg12[%c0_26, %c0_27] : memref<1x256xf32, #tpu.memory_space<vmem>>, vector<1x256xf32>
    tpu.vector_store %arg12[%c0_26, %c0_27], %33 {strides = array<i32>} : memref<1x256xf32, #tpu.memory_space<vmem>>, vector<1x256xf32>,
    return
  }
  func.func @transform_0(%arg0: i32) -> (i32, i32) {
    %c0_i32 = arith.constant 0 : i32
    %c0_i32_0 = arith.constant 0 : i32
    return %c0_i32, %arg0 : i32, i32
  }
  func.func @transform_1(%arg0: i32) -> (i32, i32) {
    %c0_i32 = arith.constant 0 : i32
    %c0_i32_0 = arith.constant 0 : i32
    %c0_i32_1 = arith.constant 0 : i32
    return %c0_i32, %c0_i32_0 : i32, i32
  }
  func.func @transform_2(%arg0: i32) -> (i32, i32) {
    %c0_i32 = arith.constant 0 : i32
    %c0_i32_0 = arith.constant 0 : i32
    %c0_i32_1 = arith.constant 0 : i32
    return %c0_i32, %c0_i32_0 : i32, i32
  }
  func.func @transform_3(%arg0: i32) -> (i32, i32) {
    %c0_i32 = arith.constant 0 : i32
    %c0_i32_0 = arith.constant 0 : i32
    %c0_i32_1 = arith.constant 0 : i32
    return %c0_i32, %c0_i32_0 : i32, i32
  }
  func.func @transform_4(%arg0: i32) -> (i32, i32) {
    %c0_i32 = arith.constant 0 : i32
    %c0_i32_0 = arith.constant 0 : i32
    %c0_i32_1 = arith.constant 0 : i32
    return %c0_i32, %c0_i32_0 : i32, i32
  }
  func.func @transform_5(%arg0: i32) -> (i32, i32) {
    %c0_i32 = arith.constant 0 : i32
    %c0_i32_0 = arith.constant 0 : i32
    %c0_i32_1 = arith.constant 0 : i32
    return %c0_i32, %c0_i32_0 : i32, i32
  }
  func.func @transform_6(%arg0: i32) -> (i32, i32) {
    %c0_i32 = arith.constant 0 : i32
    %c0_i32_0 = arith.constant 0 : i32
    %c0_i32_1 = arith.constant 0 : i32
    return %c0_i32, %c0_i32_0 : i32, i32
  }
  func.func @transform_7(%arg0: i32) -> (i32, i32) {
    %c0_i32 = arith.constant 0 : i32
    %c0_i32_0 = arith.constant 0 : i32
    %c0_i32_1 = arith.constant 0 : i32
    return %c0_i32, %c0_i32_0 : i32, i32
  }
  func.func @transform_8(%arg0: i32) -> (i32, i32) {
    %c0_i32 = arith.constant 0 : i32
    %c0_i32_0 = arith.constant 0 : i32
    %c0_i32_1 = arith.constant 0 : i32
    return %c0_i32, %c0_i32_0 : i32, i32
  }
  func.func @transform_9(%arg0: i32) -> (i32, i32) {
    %c0_i32 = arith.constant 0 : i32
    %c0_i32_0 = arith.constant 0 : i32
    %c0_i32_1 = arith.constant 0 : i32
    return %c0_i32, %c0_i32_0 : i32, i32
  }
  func.func @transform_10(%arg0: i32) -> (i32, i32) {
    %c0_i32 = arith.constant 0 : i32
    %c0_i32_0 = arith.constant 0 : i32
    %c0_i32_1 = arith.constant 0 : i32
    return %c0_i32, %c0_i32_0 : i32, i32
  }
  func.func @transform_11(%arg0: i32) -> (i32, i32) {
    %c0_i32 = arith.constant 0 : i32
    %c0_i32_0 = arith.constant 0 : i32
    return %c0_i32, %arg0 : i32, i32
  }
}

</mosaic_0001>

<llo_original>
// kernel: tpu_custom_call.1
$region0: #{tpu_custom_call.1}
  #allocation0 [shape = 'u32[]', space=smem, size = 0x4, offset = 0x4, fixed_abs, tag = 'smem constant byte address 0x4 - core index']
  #allocation1 [shape = 'u32[144,128]{1,0:T(1,128)}', space=vmem, size = 0x12000, scoped, tag = 'internal scratch']
  #allocation2 [shape = 'f32[1,1]{1,0:T(1,128)S(1)}', space=vmem, size = 0x200, scoped, tag = 'scoped memory for tpu_custom_call.1']
  %s0 = inlined_call_operand.vmem [shape: f32[16,512], index: 0, kind: input, shape index: {}]
  %s1 = inlined_call_operand.vmem [shape: f32[32,16], index: 1, kind: input, shape index: {}]
  %s2 = inlined_call_operand.vmem [shape: f32[32,1], index: 2, kind: input, shape index: {}]
  %s3 = inlined_call_operand.vmem [shape: f32[32,32], index: 3, kind: input, shape index: {}]
  %s4 = inlined_call_operand.vmem [shape: f32[32,1], index: 4, kind: input, shape index: {}]
  %s5 = inlined_call_operand.vmem [shape: f32[32,32], index: 5, kind: input, shape index: {}]
  %s6 = inlined_call_operand.vmem [shape: f32[32,1], index: 6, kind: input, shape index: {}]
  %s7 = inlined_call_operand.vmem [shape: f32[32,32], index: 7, kind: input, shape index: {}]
  %s8 = inlined_call_operand.vmem [shape: f32[32,1], index: 8, kind: input, shape index: {}]
  %s9 = inlined_call_operand.vmem [shape: f32[1,32], index: 9, kind: input, shape index: {}]
  %s10 = inlined_call_operand.<no memory space> [shape: f32[1,1], index: 10, kind: input, shape index: {}]
  %s11 = inlined_call_operand.hbm [shape: f32[1,512], index: 11, kind: output, shape index: {}]
  %s12 = sld [smem:[#allocation0]]
  $region100: #{tpu_custom_call.1} parent=0
    _
  %s14 = ssub.s32 1, %s12
  %s15 = scalar_select 0, %s14, %s12
  %v16 = vstv %s10
  %17 = vst [vmem:[#allocation2] sm:$0x1] %v16
  $region1: #{tpu_custom_call.1} parent=0
    #allocation3 [shape = 'u8[32768]{0}', space=vmem, size = 0x8000, scoped, tag = 'input window, operand 0']
    #allocation4 [shape = 'u8[2048]{0}', space=vmem, size = 0x800, scoped, tag = 'output window, operand 0']
    #allocation5 [shape = 's32[2]{0}', space=sflag, size = 0x8, scoped, tag = 'scoped memory for tpu_custom_call.1']
    %18 = vsyncpa [#allocation5], 0
    %s19 = scalar_lea.sflag [#allocation5], 1
    %20 = vsyncpa %s19, 0
    loop: start=0, step=1, limit=4
    $region2: #{tpu_custom_call.1} parent=1 // loop_pre_header
      _
    $region3: #{tpu_custom_call.1} parent=1 // loop_header
      %s22 = sphi 0, %s26
      %p23 = scmp.ge.s32.totalorder %s22, 4
      %s32 = sphi 0, %s34
      %s35 = sphi 0, %s32
      %s36 = sphi 0, %s35
      %s52 = sphi 0, %s36
      %s56 = sphi 0, %s56
      %s58 = sphi 0, %s56
      %s59 = sphi 0, %s58
      %s73 = sphi 0, %s59
      %s77 = sphi 0, %s77
      %s79 = sphi 0, %s77
      %s80 = sphi 0, %s79
      %s94 = sphi 0, %s80
      %s98 = sphi 0, %s98
      %s100 = sphi 0, %s98
      %s101 = sphi 0, %s100
      %s115 = sphi 0, %s101
      %s119 = sphi 0, %s119
      %s121 = sphi 0, %s119
      %s122 = sphi 0, %s121
      %s136 = sphi 0, %s122
      %s140 = sphi 0, %s140
      %s142 = sphi 0, %s140
      %s143 = sphi 0, %s142
      %s157 = sphi 0, %s143
      %s161 = sphi 0, %s161
      %s163 = sphi 0, %s161
      %s164 = sphi 0, %s163
      %s178 = sphi 0, %s164
      %s182 = sphi 0, %s182
      %s184 = sphi 0, %s182
      %s185 = sphi 0, %s184
      %s199 = sphi 0, %s185
      %s203 = sphi 0, %s203
      %s205 = sphi 0, %s203
      %s206 = sphi 0, %s205
      %s220 = sphi 0, %s206
      %s224 = sphi 0, %s224
      %s226 = sphi 0, %s224
      %s227 = sphi 0, %s226
      %s241 = sphi 0, %s227
      %s245 = sphi 0, %s245
      %s247 = sphi 0, %s245
      %s248 = sphi 0, %s247
      %s262 = sphi 0, %s248
      %s268 = sphi 0, %s270
      %s271 = sphi 0, %s268
      %s272 = sphi 0, %s271
      %s288 = sphi 0, %s272
    $region4: #{tpu_custom_call.1} parent=1 // loop_header_branch
      %25 = sbr.rel (%p23) target = $region8
    $region5: #{tpu_custom_call.1} parent=1 // loop_body
      %s27 = ssub.s32 %s22, 1
      %s28 = ssub.s32 %s22, 2
      %s29 = sadd.s32 %s22, 1
      %s30 = ssub.s32 %s22, %s29
      %p31 = scmp.eq.s32.totalorder %s30, 0
      %s33 = sadd.s32 %s32, 1
      %s34 = scalar_select %p31, %s32, %s33
      %p37 = pneg %p31
      %p38 = scmp.eq.s32.totalorder %s22, 1
      %p39 = por %p37, %p38
      %p40 = scmp.ne.s32.totalorder %s32, %s35
      %p41 = scmp.eq.s32.totalorder %s22, 0
      %p42 = por %p40, %p41
      %p43 = scmp.ne.s32.totalorder %s32, %s35
      %p44 = scmp.eq.s32.totalorder %s27, 1
      %p45 = por %p43, %p44
      %p46 = scmp.ne.s32.totalorder %s35, %s36
      %p47 = scmp.eq.s32.totalorder %s27, 0
      %p48 = por %p46, %p47
      %p49 = scmp.ne.s32.totalorder %s35, %s36
      %p50 = scmp.eq.s32.totalorder %s28, 1
      %p51 = por %p49, %p50
      %p53 = scmp.ne.s32.totalorder %s36, %s52
      %p54 = scmp.eq.s32.totalorder %s28, 0
      %p55 = por %p53, %p54
      %s57 = sadd.s32 %s56, 1
      %p60 = scmp.eq.s32.totalorder %s22, 1
      %p61 = scmp.ne.s32.totalorder %s56, %s58
      %p62 = scmp.eq.s32.totalorder %s22, 0
      %p63 = por %p61, %p62
      %p64 = scmp.ne.s32.totalorder %s56, %s58
      %p65 = scmp.eq.s32.totalorder %s27, 1
      %p66 = por %p64, %p65
      %p67 = scmp.ne.s32.totalorder %s58, %s59
      %p68 = scmp.eq.s32.totalorder %s27, 0
      %p69 = por %p67, %p68
      %p70 = scmp.ne.s32.totalorder %s58, %s59
      %p71 = scmp.eq.s32.totalorder %s28, 1
      %p72 = por %p70, %p71
      %p74 = scmp.ne.s32.totalorder %s59, %s73
      %p75 = scmp.eq.s32.totalorder %s28, 0
      %p76 = por %p74, %p75
      %s78 = sadd.s32 %s77, 1
      %p81 = scmp.eq.s32.totalorder %s22, 1
      %p82 = scmp.ne.s32.totalorder %s77, %s79
      %p83 = scmp.eq.s32.totalorder %s22, 0
      %p84 = por %p82, %p83
      %p85 = scmp.ne.s32.totalorder %s77, %s79
      %p86 = scmp.eq.s32.totalorder %s27, 1
      %p87 = por %p85, %p86
      %p88 = scmp.ne.s32.totalorder %s79, %s80
      %p89 = scmp.eq.s32.totalorder %s27, 0
      %p90 = por %p88, %p89
      %p91 = scmp.ne.s32.totalorder %s79, %s80
      %p92 = scmp.eq.s32.totalorder %s28, 1
      %p93 = por %p91, %p92
      %p95 = scmp.ne.s32.totalorder %s80, %s94
      %p96 = scmp.eq.s32.totalorder %s28, 0
      %p97 = por %p95, %p96
      %s99 = sadd.s32 %s98, 1
      %p102 = scmp.eq.s32.totalorder %s22, 1
      %p103 = scmp.ne.s32.totalorder %s98, %s100
      %p104 = scmp.eq.s32.totalorder %s22, 0
      %p105 = por %p103, %p104
      %p106 = scmp.ne.s32.totalorder %s98, %s100
      %p107 = scmp.eq.s32.totalorder %s27, 1
      %p108 = por %p106, %p107
      %p109 = scmp.ne.s32.totalorder %s100, %s101
      %p110 = scmp.eq.s32.totalorder %s27, 0
      %p111 = por %p109, %p110
      %p112 = scmp.ne.s32.totalorder %s100, %s101
      %p113 = scmp.eq.s32.totalorder %s28, 1
      %p114 = por %p112, %p113
      %p116 = scmp.ne.s32.totalorder %s101, %s115
      %p117 = scmp.eq.s32.totalorder %s28, 0
      %p118 = por %p116, %p117
      %s120 = sadd.s32 %s119, 1
      %p123 = scmp.eq.s32.totalorder %s22, 1
      %p124 = scmp.ne.s32.totalorder %s119, %s121
      %p125 = scmp.eq.s32.totalorder %s22, 0
      %p126 = por %p124, %p125
      %p127 = scmp.ne.s32.totalorder %s119, %s121
      %p128 = scmp.eq.s32.totalorder %s27, 1
      %p129 = por %p127, %p128
      %p130 = scmp.ne.s32.totalorder %s121, %s122
      %p131 = scmp.eq.s32.totalorder %s27, 0
      %p132 = por %p130, %p131
      %p133 = scmp.ne.s32.totalorder %s121, %s122
      %p134 = scmp.eq.s32.totalorder %s28, 1
      %p135 = por %p133, %p134
      %p137 = scmp.ne.s32.totalorder %s122, %s136
      %p138 = scmp.eq.s32.totalorder %s28, 0
      %p139 = por %p137, %p138
      %s141 = sadd.s32 %s140, 1
      %p144 = scmp.eq.s32.totalorder %s22, 1
      %p145 = scmp.ne.s32.totalorder %s140, %s142
      %p146 = scmp.eq.s32.totalorder %s22, 0
      %p147 = por %p145, %p146
      %p148 = scmp.ne.s32.totalorder %s140, %s142
      %p149 = scmp.eq.s32.totalorder %s27, 1
      %p150 = por %p148, %p149
      %p151 = scmp.ne.s32.totalorder %s142, %s143
      %p152 = scmp.eq.s32.totalorder %s27, 0
      %p153 = por %p151, %p152
      %p154 = scmp.ne.s32.totalorder %s142, %s143
      %p155 = scmp.eq.s32.totalorder %s28, 1
      %p156 = por %p154, %p155
      %p158 = scmp.ne.s32.totalorder %s143, %s157
      %p159 = scmp.eq.s32.totalorder %s28, 0
      %p160 = por %p158, %p159
      %s162 = sadd.s32 %s161, 1
      %p165 = scmp.eq.s32.totalorder %s22, 1
      %p166 = scmp.ne.s32.totalorder %s161, %s163
      %p167 = scmp.eq.s32.totalorder %s22, 0
      %p168 = por %p166, %p167
      %p169 = scmp.ne.s32.totalorder %s161, %s163
      %p170 = scmp.eq.s32.totalorder %s27, 1
      %p171 = por %p169, %p170
      %p172 = scmp.ne.s32.totalorder %s163, %s164
      %p173 = scmp.eq.s32.totalorder %s27, 0
      %p174 = por %p172, %p173
      %p175 = scmp.ne.s32.totalorder %s163, %s164
      %p176 = scmp.eq.s32.totalorder %s28, 1
      %p177 = por %p175, %p176
      %p179 = scmp.ne.s32.totalorder %s164, %s178
      %p180 = scmp.eq.s32.totalorder %s28, 0
      %p181 = por %p179, %p180
      %s183 = sadd.s32 %s182, 1
      %p186 = scmp.eq.s32.totalorder %s22, 1
      %p187 = scmp.ne.s32.totalorder %s182, %s184
      %p188 = scmp.eq.s32.totalorder %s22, 0
      %p189 = por %p187, %p188
      %p190 = scmp.ne.s32.totalorder %s182, %s184
      %p191 = scmp.eq.s32.totalorder %s27, 1
      %p192 = por %p190, %p191
      %p193 = scmp.ne.s32.totalorder %s184, %s185
      %p194 = scmp.eq.s32.totalorder %s27, 0
      %p195 = por %p193, %p194
      %p196 = scmp.ne.s32.totalorder %s184, %s185
      %p197 = scmp.eq.s32.totalorder %s28, 1
      %p198 = por %p196, %p197
      %p200 = scmp.ne.s32.totalorder %s185, %s199
      %p201 = scmp.eq.s32.totalorder %s28, 0
      %p202 = por %p200, %p201
      %s204 = sadd.s32 %s203, 1
      %p207 = scmp.eq.s32.totalorder %s22, 1
      %p208 = scmp.ne.s32.totalorder %s203, %s205
      %p209 = scmp.eq.s32.totalorder %s22, 0
      %p210 = por %p208, %p209
      %p211 = scmp.ne.s32.totalorder %s203, %s205
      %p212 = scmp.eq.s32.totalorder %s27, 1
      %p213 = por %p211, %p212
      %p214 = scmp.ne.s32.totalorder %s205, %s206
      %p215 = scmp.eq.s32.totalorder %s27, 0
      %p216 = por %p214, %p215
      %p217 = scmp.ne.s32.totalorder %s205, %s206
      %p218 = scmp.eq.s32.totalorder %s28, 1
      %p219 = por %p217, %p218
      %p221 = scmp.ne.s32.totalorder %s206, %s220
      %p222 = scmp.eq.s32.totalorder %s28, 0
      %p223 = por %p221, %p222
      %s225 = sadd.s32 %s224, 1
      %p228 = scmp.eq.s32.totalorder %s22, 1
      %p229 = scmp.ne.s32.totalorder %s224, %s226
      %p230 = scmp.eq.s32.totalorder %s22, 0
      %p231 = por %p229, %p230
      %p232 = scmp.ne.s32.totalorder %s224, %s226
      %p233 = scmp.eq.s32.totalorder %s27, 1
      %p234 = por %p232, %p233
      %p235 = scmp.ne.s32.totalorder %s226, %s227
      %p236 = scmp.eq.s32.totalorder %s27, 0
      %p237 = por %p235, %p236
      %p238 = scmp.ne.s32.totalorder %s226, %s227
      %p239 = scmp.eq.s32.totalorder %s28, 1
      %p240 = por %p238, %p239
      %p242 = scmp.ne.s32.totalorder %s227, %s241
      %p243 = scmp.eq.s32.totalorder %s28, 0
      %p244 = por %p242, %p243
      %s246 = sadd.s32 %s245, 1
      %p249 = scmp.eq.s32.totalorder %s22, 1
      %p250 = scmp.ne.s32.totalorder %s245, %s247
      %p251 = scmp.eq.s32.totalorder %s22, 0
      %p252 = por %p250, %p251
      %p253 = scmp.ne.s32.totalorder %s245, %s247
      %p254 = scmp.eq.s32.totalorder %s27, 1
      %p255 = por %p253, %p254
      %p256 = scmp.ne.s32.totalorder %s247, %s248
      %p257 = scmp.eq.s32.totalorder %s27, 0
      %p258 = por %p256, %p257
      %p259 = scmp.ne.s32.totalorder %s247, %s248
      %p260 = scmp.eq.s32.totalorder %s28, 1
      %p261 = por %p259, %p260
      %p263 = scmp.ne.s32.totalorder %s248, %s262
      %p264 = scmp.eq.s32.totalorder %s28, 0
      %p265 = por %p263, %p264
      %s266 = ssub.s32 %s22, %s29
      %p267 = scmp.eq.s32.totalorder %s266, 0
      %s269 = sadd.s32 %s268, 1
      %s270 = scalar_select %p267, %s268, %s269
      %p273 = pneg %p267
      %p274 = scmp.eq.s32.totalorder %s22, 1
      %p275 = por %p273, %p274
      %p276 = scmp.ne.s32.totalorder %s268, %s271
      %p277 = scmp.eq.s32.totalorder %s22, 0
      %p278 = por %p276, %p277
      %p279 = scmp.ne.s32.totalorder %s268, %s271
      %p280 = scmp.eq.s32.totalorder %s27, 1
      %p281 = por %p279, %p280
      %p282 = scmp.ne.s32.totalorder %s271, %s272
      %p283 = scmp.eq.s32.totalorder %s27, 0
      %p284 = por %p282, %p283
      %p285 = scmp.ne.s32.totalorder %s271, %s272
      %p286 = scmp.eq.s32.totalorder %s28, 1
      %p287 = por %p285, %p286
      %p289 = scmp.ne.s32.totalorder %s272, %s288
      %p290 = scmp.eq.s32.totalorder %s28, 0
      %p291 = por %p289, %p290
      %p292 = scmp.le.s32.totalorder 1, %s22
      %p293 = scmp.lt.s32.totalorder %s22, 3
      %p294 = pnand %p292, %p293
      %p295 = pneg %p294
      // Predicated region
      $region9: #{tpu_custom_call.1} parent=5 // pred_check
        _
      $region10: #{tpu_custom_call.1} parent=5 // pred_check_branch
        %297 = sbr.rel (%p294) target = $region12
      $region11: #{tpu_custom_call.1} parent=5 // pred_region
        %s298 = ssub.s32 %s22, 1
        // Predicated region
        $region13: #{tpu_custom_call.1} parent=11 // pred_check
          %p299 = pneg %p69
        $region14: #{tpu_custom_call.1} parent=11 // pred_check_branch
          %301 = sbr.rel (%p299) target = $region16
        $region15: #{tpu_custom_call.1} parent=11 // pred_region
          _
        $region16: #{tpu_custom_call.1} parent=11 // pred_fallthru
          _
        // Predicated region
        $region17: #{tpu_custom_call.1} parent=11 // pred_check
          %p302 = pneg %p90
        $region18: #{tpu_custom_call.1} parent=11 // pred_check_branch
          %304 = sbr.rel (%p302) target = $region20
        $region19: #{tpu_custom_call.1} parent=11 // pred_region
          _
        $region20: #{tpu_custom_call.1} parent=11 // pred_fallthru
          _
        // Predicated region
        $region21: #{tpu_custom_call.1} parent=11 // pred_check
          %p305 = pneg %p111
        $region22: #{tpu_custom_call.1} parent=11 // pred_check_branch
          %307 = sbr.rel (%p305) target = $region24
        $region23: #{tpu_custom_call.1} parent=11 // pred_region
          _
        $region24: #{tpu_custom_call.1} parent=11 // pred_fallthru
          _
        // Predicated region
        $region25: #{tpu_custom_call.1} parent=11 // pred_check
          %p308 = pneg %p132
        $region26: #{tpu_custom_call.1} parent=11 // pred_check_branch
          %310 = sbr.rel (%p308) target = $region28
        $region27: #{tpu_custom_call.1} parent=11 // pred_region
          _
        $region28: #{tpu_custom_call.1} parent=11 // pred_fallthru
          _
        // Predicated region
        $region29: #{tpu_custom_call.1} parent=11 // pred_check
          %p311 = pneg %p153
        $region30: #{tpu_custom_call.1} parent=11 // pred_check_branch
          %313 = sbr.rel (%p311) target = $region32
        $region31: #{tpu_custom_call.1} parent=11 // pred_region
          _
        $region32: #{tpu_custom_call.1} parent=11 // pred_fallthru
          _
        // Predicated region
        $region33: #{tpu_custom_call.1} parent=11 // pred_check
          %p314 = pneg %p174
        $region34: #{tpu_custom_call.1} parent=11 // pred_check_branch
          %316 = sbr.rel (%p314) target = $region36
        $region35: #{tpu_custom_call.1} parent=11 // pred_region
          _
        $region36: #{tpu_custom_call.1} parent=11 // pred_fallthru
          _
        // Predicated region
        $region37: #{tpu_custom_call.1} parent=11 // pred_check
          %p317 = pneg %p195
        $region38: #{tpu_custom_call.1} parent=11 // pred_check_branch
          %319 = sbr.rel (%p317) target = $region40
        $region39: #{tpu_custom_call.1} parent=11 // pred_region
          _
        $region40: #{tpu_custom_call.1} parent=11 // pred_fallthru
          _
        // Predicated region
        $region41: #{tpu_custom_call.1} parent=11 // pred_check
          %p320 = pneg %p216
        $region42: #{tpu_custom_call.1} parent=11 // pred_check_branch
          %322 = sbr.rel (%p320) target = $region44
        $region43: #{tpu_custom_call.1} parent=11 // pred_region
          _
        $region44: #{tpu_custom_call.1} parent=11 // pred_fallthru
          _
        // Predicated region
        $region45: #{tpu_custom_call.1} parent=11 // pred_check
          %p323 = pneg %p237
        $region46: #{tpu_custom_call.1} parent=11 // pred_check_branch
          %325 = sbr.rel (%p323) target = $region48
        $region47: #{tpu_custom_call.1} parent=11 // pred_region
          _
        $region48: #{tpu_custom_call.1} parent=11 // pred_fallthru
          _
        // Predicated region
        $region49: #{tpu_custom_call.1} parent=11 // pred_check
          %p326 = pneg %p258
        $region50: #{tpu_custom_call.1} parent=11 // pred_check_branch
          %328 = sbr.rel (%p326) target = $region52
        $region51: #{tpu_custom_call.1} parent=11 // pred_region
          _
        $region52: #{tpu_custom_call.1} parent=11 // pred_fallthru
          _
      $region12: #{tpu_custom_call.1} parent=5 // pred_fallthru
        _
      %p329 = scmp.lt.s32.totalorder %s22, 2
      // Predicated region
      $region53: #{tpu_custom_call.1} parent=5 // pred_check
        %p330 = pneg %p329
      $region54: #{tpu_custom_call.1} parent=5 // pred_check_branch
        %332 = sbr.rel (%p330) target = $region56
      $region55: #{tpu_custom_call.1} parent=5 // pred_region
        // Predicated region
        $region57: #{tpu_custom_call.1} parent=55 // pred_check
          %p333 = pneg %p42
        $region58: #{tpu_custom_call.1} parent=55 // pred_check_branch
          %335 = sbr.rel (%p333) target = $region60
        $region59: #{tpu_custom_call.1} parent=55 // pred_region
          %s336 = sand.u32 %s32, 1
          %s337 = sand.u32 %s32, 1
          %s338 = smul.addr %s337, 32
          %s339 = scalar_lea.vmem [#allocation3], %s338
          %s340 = smul.u32 2, %s22
          %s341 = smul.addr %s340, 8
          %s342 = scalar_lea.vmem %s0, %s341
          // Predicated region
          $region61: #{tpu_custom_call.1} parent=59 // pred_check
            _
          $region62: #{tpu_custom_call.1} parent=59 // pred_check_branch
            %344 = sbr.rel (0) target = $region64
          $region63: #{tpu_custom_call.1} parent=59 // pred_region
            // Predicated region
            $region65: #{tpu_custom_call.1} parent=63 // pred_check
              _
            $region66: #{tpu_custom_call.1} parent=63 // pred_check_branch
              %346 = sbr.rel (0) target = $region68
            $region67: #{tpu_custom_call.1} parent=63 // pred_region
              loop: start=0, step=1, limit=1
              $region69: #{tpu_custom_call.1} parent=67 // loop_pre_header
                _
              $region70: #{tpu_custom_call.1} parent=67 // loop_header
                %s348 = sphi 0, %s352
                %p349 = scmp.ge.s32.totalorder %s348, 1
                %s353 = sphi %s342, %s342
                %s354 = sphi %s339, %s339
              $region71: #{tpu_custom_call.1} parent=67 // loop_header_branch
                %351 = sbr.rel (%p349) target = $region75
              $region72: #{tpu_custom_call.1} parent=67 // loop_body
                %v355 = vld [vmem:[%s353] sm:$0xff]
                %356 = vst [vmem:[%s354] sm:$0xff] %v355
                %v357 = vld [vmem:[%s353 + $0x8] sm:$0xff]
                %358 = vst [vmem:[%s354 + $0x8] sm:$0xff] %v357
                %v359 = vld [vmem:[%s353 + $0x20] sm:$0xff]
                %360 = vst [vmem:[%s354 + $0x10] sm:$0xff] %v359
                %v361 = vld [vmem:[%s353 + $0x28] sm:$0xff]
                %362 = vst [vmem:[%s354 + $0x18] sm:$0xff] %v361
              $region73: #{tpu_custom_call.1} parent=67 // loop_footer
                %s352 = sadd.s32 1, %s348
              $region74: #{tpu_custom_call.1} parent=67 // loop_footer_branch
                %347 = sbr.rel target = $region70
              $region75: #{tpu_custom_call.1} parent=67 // loop_exit
                _
            $region68: #{tpu_custom_call.1} parent=63 // pred_fallthru
              _
            // Predicated region
            $region76: #{tpu_custom_call.1} parent=63 // pred_check
              _
            $region77: #{tpu_custom_call.1} parent=63 // pred_check_branch
              %364 = sbr.rel target = $region79
            $region78: #{tpu_custom_call.1} parent=63 // pred_region
              _
            $region79: #{tpu_custom_call.1} parent=63 // pred_fallthru
              _
          $region64: #{tpu_custom_call.1} parent=59 // pred_fallthru
            _
          %365 = vnop
        $region60: #{tpu_custom_call.1} parent=55 // pred_fallthru
          _
      $region56: #{tpu_custom_call.1} parent=5 // pred_fallthru
        _
      %p366 = scmp.le.s32.totalorder 1, %s22
      %p367 = scmp.lt.s32.totalorder %s22, 3
      %p368 = pnand %p366, %p367
      %p369 = pneg %p368
      // Predicated region
      $region80: #{tpu_custom_call.1} parent=5 // pred_check
        _
      $region81: #{tpu_custom_call.1} parent=5 // pred_check_branch
        %371 = sbr.rel (%p368) target = $region83
      $region82: #{tpu_custom_call.1} parent=5 // pred_region
        %s372 = ssub.s32 %s22, 1
        %s373 = sand.u32 %s35, 1
        %s374 = sand.u32 %s35, 1
        %s375 = smul.addr %s374, 32
        %s376 = scalar_lea.vmem [#allocation3], %s375
        // Predicated region
        $region84: #{tpu_custom_call.1} parent=82 // pred_check
          %p377 = pneg %p48
        $region85: #{tpu_custom_call.1} parent=82 // pred_check_branch
          %379 = sbr.rel (%p377) target = $region87
        $region86: #{tpu_custom_call.1} parent=82 // pred_region
          _
        $region87: #{tpu_custom_call.1} parent=82 // pred_fallthru
          _
        %s380 = sand.u32 %s35, 1
        %s381 = sand.u32 %s35, 1
        %s382 = smul.addr %s381, 32
        %s383 = scalar_lea.vmem [#allocation3], %s382
        %p384 = pneg %p48
        %p385 = pneg %p45
        %p386 = pneg %p69
        %p387 = pneg %p66
        %p388 = pneg %p90
        %p389 = pneg %p87
        %p390 = pneg %p111
        %p391 = pneg %p108
        %p392 = pneg %p132
        %p393 = pneg %p129
        %p394 = pneg %p153
        %p395 = pneg %p150
        %p396 = pneg %p174
        %p397 = pneg %p171
        %p398 = pneg %p195
        %p399 = pneg %p192
        %p400 = pneg %p216
        %p401 = pneg %p213
        %p402 = pneg %p237
        %p403 = pneg %p234
        %p404 = pneg %p258
        %p405 = pneg %p255
        %p406 = pneg %p284
        %p407 = pneg %p281
        %s408 = sand.u32 %s271, 1
        %s409 = scalar_lea.sflag [#allocation5], %s408
        %s410 = sand.u32 %s271, 1
        %s411 = smul.addr %s410, 2
        %s412 = scalar_lea.vmem [#allocation4], %s411
        %s413 = smul.u32 2, %s27
        %s414 = smul.u32 2, %s27
        %v415 = vld [vmem:[%s376] sm:$0xff]
        %v416 = vld [vmem:[%s376 + $0x8] sm:$0xff]
        %v417 = vld [vmem:[%s376 + $0x10] sm:$0xff]
        %v418 = vld [vmem:[%s376 + $0x18] sm:$0xff]
        %v419 = vld [vmem:[%s1] sm:$0xff]
        %v420 = vld [vmem:[%s1 + $0x8] sm:$0xff]
        %v421 = vld [vmem:[%s1 + $0x10] sm:$0xff]
        %v422 = vld [vmem:[%s1 + $0x18] sm:$0xff]
        %v423 = vld [vmem:[%s2] sm:$0xff]
        %v424 = vld [vmem:[%s2 + $0x8] sm:$0xff]
        %v425 = vld [vmem:[%s2 + $0x10] sm:$0xff]
        %v426 = vld [vmem:[%s2 + $0x18] sm:$0xff]
        %v427 = vld [vmem:[%s3] sm:$0xff]
        %v428 = vld [vmem:[%s3 + $0x8] sm:$0xff]
        %v429 = vld [vmem:[%s3 + $0x10] sm:$0xff]
        %v430 = vld [vmem:[%s3 + $0x18] sm:$0xff]
        %v431 = vld [vmem:[%s4] sm:$0xff]
        %v432 = vld [vmem:[%s4 + $0x8] sm:$0xff]
        %v433 = vld [vmem:[%s4 + $0x10] sm:$0xff]
        %v434 = vld [vmem:[%s4 + $0x18] sm:$0xff]
        %436 = vset.pattern.permute.xlu0 0
        %437 = vperm.xlu0 %436, %v423
        %v438 = vpop.permute.xlu0 %437
        %441 = vset.pattern.permute.xlu0 0
        %442 = vperm.xlu0 %441, %v424
        %v443 = vpop.permute.xlu0 %442
        %446 = vset.pattern.permute.xlu0 0
        %447 = vperm.xlu0 %446, %v425
        %v448 = vpop.permute.xlu0 %447
        %451 = vset.pattern.permute.xlu0 0
        %452 = vperm.xlu0 %451, %v426
        %v453 = vpop.permute.xlu0 %452
        %vm455 = vcmask 130048
        %v457 = vsel %vm455, %v419, 0
        %v460 = vsel %vm455, %v420, 0
        %v463 = vsel %vm455, %v421, 0
        %v466 = vsel %vm455, %v422, 0
        %468 = vmatprep.subr.mxu0 %v416
        %469 = vmatpush1.msra.mxu0 %v415
        %470 = vmatprep.subr.mxu0 %v418
        %471 = vmatpush1.msra.mxu0 %v417
        %472 = vmatprep.subr.mxu0 0.0
        %473 = vmatpush1.msra.mxu0 0.0
        %474 = vmatprep.subr.mxu0 0.0
        %475 = vmatpush1.msra.mxu0 0.0
        %476 = vmatprep.subr.mxu0 0.0
        %477 = vmatpush1.msra.mxu0 0.0
        %478 = vmatprep.subr.mxu0 0.0
        %479 = vmatpush1.msra.mxu0 0.0
        %480 = vmatprep.subr.mxu0 0.0
        %481 = vmatpush1.msra.mxu0 0.0
        %482 = vmatprep.subr.mxu0 0.0
        %483 = vmatpush1.msra.mxu0 0.0
        %484 = vmatprep.subr.mxu0 0.0
        %485 = vmatpush1.msra.mxu0 0.0
        %486 = vmatprep.subr.mxu0 0.0
        %487 = vmatpush1.msra.mxu0 0.0
        %488 = vmatprep.subr.mxu0 0.0
        %489 = vmatpush1.msra.mxu0 0.0
        %490 = vmatprep.subr.mxu0 0.0
        %491 = vmatpush1.msra.mxu0 0.0
        %492 = vmatprep.subr.mxu0 0.0
        %493 = vmatpush1.msra.mxu0 0.0
        %494 = vmatprep.subr.mxu0 0.0
        %495 = vmatpush1.msra.mxu0 0.0
        %496 = vmatprep.subr.mxu0 0.0
        %497 = vmatpush1.msra.mxu0 0.0
        %498 = vmatprep.subr.mxu0 0.0
        %499 = vmatpush1.msra.mxu0 0.0
        %500 = vmatprep.subr.mxu0 0.0
        %501 = vmatpush1.msra.mxu0 0.0
        %502 = vmatprep.subr.mxu0 0.0
        %503 = vmatpush1.msra.mxu0 0.0
        %504 = vmatprep.subr.mxu0 0.0
        %505 = vmatpush1.msra.mxu0 0.0
        %506 = vmatprep.subr.mxu0 0.0
        %507 = vmatpush1.msra.mxu0 0.0
        %508 = vmatprep.subr.mxu0 0.0
        %509 = vmatpush1.msra.mxu0 0.0
        %510 = vmatprep.subr.mxu0 0.0
        %511 = vmatpush1.msra.mxu0 0.0
        %512 = vmatprep.subr.mxu0 0.0
        %513 = vmatpush1.msra.mxu0 0.0
        %514 = vmatprep.subr.mxu0 0.0
        %515 = vmatpush1.msra.mxu0 0.0
        %516 = vmatprep.subr.mxu0 0.0
        %517 = vmatpush1.msra.mxu0 0.0
        %518 = vmatprep.subr.mxu0 0.0
        %519 = vmatpush1.msra.mxu0 0.0
        %520 = vmatprep.subr.mxu0 0.0
        %521 = vmatpush1.msra.mxu0 0.0
        %522 = vmatprep.subr.mxu0 0.0
        %523 = vmatpush1.msra.mxu0 0.0
        %524 = vmatprep.subr.mxu0 0.0
        %525 = vmatpush1.msra.mxu0 0.0
        %526 = vmatprep.subr.mxu0 0.0
        %527 = vmatpush1.msra.mxu0 0.0
        %528 = vmatprep.subr.mxu0 0.0
        %529 = vmatpush1.msra.mxu0 0.0
        %530 = vmatprep.subr.mxu0 0.0
        %531 = vmatpush1.msra.mxu0 0.0
        %532 = vmatprep.mubr.f32.mxu0 0.0
        %533 = vmatmul.mubr.f32.gmra.mrb[0].mxu0 %v457
        %v534 = vpop.f32.mrb[0].mxu0
        %v535 = vadd.f32 %v438, %v534
        %v536 = vpop.f32.mrb[0].mxu0
        %v537 = vadd.f32 %v438, %v536
        %538 = vmatprep.mubr.f32.mxu0 0.0
        %539 = vmatmul.mubr.f32.gmra.mrb[0].mxu0 %v460
        %v540 = vpop.f32.mrb[0].mxu0
        %v541 = vadd.f32 %v443, %v540
        %v542 = vpop.f32.mrb[0].mxu0
        %v543 = vadd.f32 %v443, %v542
        %544 = vmatprep.mubr.f32.mxu0 0.0
        %545 = vmatmul.mubr.f32.gmra.mrb[0].mxu0 %v463
        %v546 = vpop.f32.mrb[0].mxu0
        %v547 = vadd.f32 %v448, %v546
        %v548 = vpop.f32.mrb[0].mxu0
        %v549 = vadd.f32 %v448, %v548
        %550 = vmatprep.mubr.f32.mxu0 0.0
        %551 = vmatmul.mubr.f32.gmra.mrb[0].mxu0 %v466
        %v552 = vpop.f32.mrb[0].mxu0
        %v553 = vadd.f32 %v453, %v552
        %v554 = vpop.f32.mrb[0].mxu0
        %v555 = vadd.f32 %v453, %v554
        %556 = vdwg.mxu0
        %v557 = vand.u32 2147483647, %v535
        %vm558 = vcmp.le.f32.partialorder %v557, 0.7853982
        %vm559 = vcmp.lt.s32.totalorder %v535, 0
        %v560 = vand.u32 %v535, 2139095040
        %v561 = vshrl.u32 %v560, 23
        %v562 = vsub.s32 %v561, 127
        %v563 = vand.u32 2147483647, %v535
        %v564 = vand.u32 %v563, 8388607
        %v565 = vor.u32 %v564, 8388608
        %v566 = vsub.s32 0, %v565
        %v567 = vadd.s32 %v562, 1
        %vm568 = vcmp.gt.s32.totalorder %v567, 0
        %v569 = vsel %vm568, %v567, 0
        %v570 = vshrl.u32 %v569, 5
        %v571 = vand.u32 %v569, 31
        %v572 = vsub.s32 32, %v571
        %v573 = vshrl.u32 683565275, %v572
        %v574 = vshll.u32 683565275, %v571
        %v575 = vshrl.u32 2475754826, %v572
        %v576 = vor.u32 %v574, %v575
        %v577 = vshll.u32 2475754826, %v571
        %v578 = vshrl.u32 2131351028, %v572
        %v579 = vor.u32 %v577, %v578
        %v580 = vshll.u32 2131351028, %v571
        %v581 = vshrl.u32 2102212464, %v572
        %v582 = vor.u32 %v580, %v581
        %v583 = vshll.u32 2102212464, %v571
        %v584 = vshrl.u32 920167782, %v572
        %v585 = vor.u32 %v583, %v584
        %v586 = vshll.u32 920167782, %v571
        %v587 = vshrl.u32 1326507024, %v572
        %v588 = vor.u32 %v586, %v587
        %vm589 = vcmp.lt.s32.totalorder %v570, 1
        %vm590 = vcmp.lt.s32.totalorder %v570, 2
        %vm591 = vcmp.lt.s32.totalorder %v570, 3
        %vm592 = vcmp.lt.s32.totalorder %v570, 4
        %v593 = vsel %vm589, %v573, %v576
        %v594 = vsel %vm592, %v582, 2102212464
        %v595 = vsel %vm591, %v579, %v594
        %v596 = vsel %vm590, %v593, %v595
        %v597 = vsel %vm589, %v576, %v579
        %v598 = vsel %vm592, %v585, 920167782
        %v599 = vsel %vm591, %v582, %v598
        %v600 = vsel %vm590, %v597, %v599
        %v601 = vsel %vm589, %v579, %v582
        %v602 = vsel %vm592, %v588, 1326507024
        %v603 = vsel %vm591, %v585, %v602
        %v604 = vsel %vm590, %v601, %v603
        %v605 = vshll.u32 %v565, 8
        %v606 = vmul.u32.u64.compose %v605, %v604
        %v607 = vextract.low.u32 %v606
        %v608 = vextract.high.u32 %v606
        %v609 = vmul.u32.u64.compose %v605, %v600
        %v610 = vextract.low.u32 %v609
        %v611 = vextract.high.u32 %v609
        %v612 = vmul.u32 %v605, %v596
        %v613 = vadd.s32 %v608, %v610
        %vm614 = vc.u32 %v608, %v610
        %v615 = vadd.s32 %v611, 1
        %v616 = vsel %vm614, %v615, %v611
        %v617 = vadd.s32 %v612, %v616
        %v618 = vadd.s32 %v617, 536870912
        %v619 = vshrl.u32 %v618, 30
        %v620 = vshll.u32 %v619, 30
        %v621 = vsub.s32 %v617, %v620
        %vm622 = vcmp.lt.s32.totalorder %v621, 0
        %v623 = vsub.s32 0, %v621
        %v624 = vsel %vm622, %v623, %v621
        %v625 = vclz %v624
        %v626 = vsub.s32 %v625, 2
        %vm627 = vcmp.gt.s32.totalorder 0, %v626
        %v628 = vsel %vm627, 0, %v626
        %v629 = vsub.s32 32, %v628
        %v630 = vshll.u32 %v621, %v628
        %v631 = vshrl.u32 %v613, %v629
        %v632 = vor.u32 %v630, %v631
        %v633 = vsub.s32 4294967266, %v628
        %v634 = vadd.s32 %v633, 127
        %v635 = vshll.u32 %v634, 23
        %v636 = vor.u32 4788187, %v635
        %v637 = vand.u32 2147483647, %v636
        %v639 = vcvt.s32.f32 %v632
        %v640 = vmul.f32 %v639, %v637
        %v641 = vxor.u32 %v640, 2147483648
        %v642 = vsel %vm559, %v641, %v640
        %v643 = vsub.s32 4, %v619
        %v644 = vsel %vm559, %v643, %v619
        %v645 = vsel %vm558, %v535, %v642
        %v646 = vsel %vm558, 0, %v644
        %v647 = vcosq.f32.pop %v645
        %v648 = vsinq.f32.pop %v645
        %vm649 = vweird.f32 %v535
        %v650 = vadd.s32 %v646, 3
        %v651 = vand.u32 %v650, 3
        %vm652 = vcmp.lt.s32.totalorder %v651, 2
        %vm653 = vcmp.eq.s32.totalorder %v651, 0
        %v654 = vxor.u32 %v648, 2147483648
        %v655 = vsel %vm653, %v647, %v654
        %vm656 = vcmp.eq.s32.totalorder %v651, 2
        %v657 = vxor.u32 %v647, 2147483648
        %v658 = vsel %vm656, %v657, %v648
        %v659 = vsel %vm652, %v655, %v658
        %v660 = vsel %vm649, nan, %v659
        %v661 = vand.u32 2147483647, %v537
        %vm662 = vcmp.le.f32.partialorder %v661, 0.7853982
        %vm663 = vcmp.lt.s32.totalorder %v537, 0
        %v664 = vand.u32 %v537, 2139095040
        %v665 = vshrl.u32 %v664, 23
        %v666 = vsub.s32 %v665, 127
        %v667 = vand.u32 2147483647, %v537
        %v668 = vand.u32 %v667, 8388607
        %v669 = vor.u32 %v668, 8388608
        %v670 = vsub.s32 0, %v669
        %v671 = vadd.s32 %v666, 1
        %vm672 = vcmp.gt.s32.totalorder %v671, 0
        %v673 = vsel %vm672, %v671, 0
        %v674 = vshrl.u32 %v673, 5
        %v675 = vand.u32 %v673, 31
        %v676 = vsub.s32 32, %v675
        %v677 = vshrl.u32 683565275, %v676
        %v678 = vshll.u32 683565275, %v675
        %v679 = vshrl.u32 2475754826, %v676
        %v680 = vor.u32 %v678, %v679
        %v681 = vshll.u32 2475754826, %v675
        %v682 = vshrl.u32 2131351028, %v676
        %v683 = vor.u32 %v681, %v682
        %v684 = vshll.u32 2131351028, %v675
        %v685 = vshrl.u32 2102212464, %v676
        %v686 = vor.u32 %v684, %v685
        %v687 = vshll.u32 2102212464, %v675
        %v688 = vshrl.u32 920167782, %v676
        %v689 = vor.u32 %v687, %v688
        %v690 = vshll.u32 920167782, %v675
        %v691 = vshrl.u32 1326507024, %v676
        %v692 = vor.u32 %v690, %v691
        %vm693 = vcmp.lt.s32.totalorder %v674, 1
        %vm694 = vcmp.lt.s32.totalorder %v674, 2
        %vm695 = vcmp.lt.s32.totalorder %v674, 3
        %vm696 = vcmp.lt.s32.totalorder %v674, 4
        %v697 = vsel %vm693, %v677, %v680
        %v698 = vsel %vm696, %v686, 2102212464
        %v699 = vsel %vm695, %v683, %v698
        %v700 = vsel %vm694, %v697, %v699
        %v701 = vsel %vm693, %v680, %v683
        %v702 = vsel %vm696, %v689, 920167782
        %v703 = vsel %vm695, %v686, %v702
        %v704 = vsel %vm694, %v701, %v703
        %v705 = vsel %vm693, %v683, %v686
        %v706 = vsel %vm696, %v692, 1326507024
        %v707 = vsel %vm695, %v689, %v706
        %v708 = vsel %vm694, %v705, %v707
        %v709 = vshll.u32 %v669, 8
        %v710 = vmul.u32.u64.compose %v709, %v708
        %v711 = vextract.low.u32 %v710
        %v712 = vextract.high.u32 %v710
        %v713 = vmul.u32.u64.compose %v709, %v704
        %v714 = vextract.low.u32 %v713
        %v715 = vextract.high.u32 %v713
        %v716 = vmul.u32 %v709, %v700
        %v717 = vadd.s32 %v712, %v714
        %vm718 = vc.u32 %v712, %v714
        %v719 = vadd.s32 %v715, 1
        %v720 = vsel %vm718, %v719, %v715
        %v721 = vadd.s32 %v716, %v720
        %v722 = vadd.s32 %v721, 536870912
        %v723 = vshrl.u32 %v722, 30
        %v724 = vshll.u32 %v723, 30
        %v725 = vsub.s32 %v721, %v724
        %vm726 = vcmp.lt.s32.totalorder %v725, 0
        %v727 = vsub.s32 0, %v725
        %v728 = vsel %vm726, %v727, %v725
        %v729 = vclz %v728
        %v730 = vsub.s32 %v729, 2
        %vm731 = vcmp.gt.s32.totalorder 0, %v730
        %v732 = vsel %vm731, 0, %v730
        %v733 = vsub.s32 32, %v732
        %v734 = vshll.u32 %v725, %v732
        %v735 = vshrl.u32 %v717, %v733
        %v736 = vor.u32 %v734, %v735
        %v737 = vsub.s32 4294967266, %v732
        %v738 = vadd.s32 %v737, 127
        %v739 = vshll.u32 %v738, 23
        %v740 = vor.u32 4788187, %v739
        %v741 = vand.u32 2147483647, %v740
        %v743 = vcvt.s32.f32 %v736
        %v744 = vmul.f32 %v743, %v741
        %v745 = vxor.u32 %v744, 2147483648
        %v746 = vsel %vm663, %v745, %v744
        %v747 = vsub.s32 4, %v723
        %v748 = vsel %vm663, %v747, %v723
        %v749 = vsel %vm662, %v537, %v746
        %v750 = vsel %vm662, 0, %v748
        %v751 = vcosq.f32.pop %v749
        %v752 = vsinq.f32.pop %v749
        %vm753 = vweird.f32 %v537
        %v754 = vadd.s32 %v750, 3
        %v755 = vand.u32 %v754, 3
        %vm756 = vcmp.lt.s32.totalorder %v755, 2
        %vm757 = vcmp.eq.s32.totalorder %v755, 0
        %v758 = vxor.u32 %v752, 2147483648
        %v759 = vsel %vm757, %v751, %v758
        %vm760 = vcmp.eq.s32.totalorder %v755, 2
        %v761 = vxor.u32 %v751, 2147483648
        %v762 = vsel %vm760, %v761, %v752
        %v763 = vsel %vm756, %v759, %v762
        %v764 = vsel %vm753, nan, %v763
        %v765 = vand.u32 2147483647, %v541
        %vm766 = vcmp.le.f32.partialorder %v765, 0.7853982
        %vm767 = vcmp.lt.s32.totalorder %v541, 0
        %v768 = vand.u32 %v541, 2139095040
        %v769 = vshrl.u32 %v768, 23
        %v770 = vsub.s32 %v769, 127
        %v771 = vand.u32 2147483647, %v541
        %v772 = vand.u32 %v771, 8388607
        %v773 = vor.u32 %v772, 8388608
        %v774 = vsub.s32 0, %v773
        %v775 = vadd.s32 %v770, 1
        %vm776 = vcmp.gt.s32.totalorder %v775, 0
        %v777 = vsel %vm776, %v775, 0
        %v778 = vshrl.u32 %v777, 5
        %v779 = vand.u32 %v777, 31
        %v780 = vsub.s32 32, %v779
        %v781 = vshrl.u32 683565275, %v780
        %v782 = vshll.u32 683565275, %v779
        %v783 = vshrl.u32 2475754826, %v780
        %v784 = vor.u32 %v782, %v783
        %v785 = vshll.u32 2475754826, %v779
        %v786 = vshrl.u32 2131351028, %v780
        %v787 = vor.u32 %v785, %v786
        %v788 = vshll.u32 2131351028, %v779
        %v789 = vshrl.u32 2102212464, %v780
        %v790 = vor.u32 %v788, %v789
        %v791 = vshll.u32 2102212464, %v779
        %v792 = vshrl.u32 920167782, %v780
        %v793 = vor.u32 %v791, %v792
        %v794 = vshll.u32 920167782, %v779
        %v795 = vshrl.u32 1326507024, %v780
        %v796 = vor.u32 %v794, %v795
        %vm797 = vcmp.lt.s32.totalorder %v778, 1
        %vm798 = vcmp.lt.s32.totalorder %v778, 2
        %vm799 = vcmp.lt.s32.totalorder %v778, 3
        %vm800 = vcmp.lt.s32.totalorder %v778, 4
        %v801 = vsel %vm797, %v781, %v784
        %v802 = vsel %vm800, %v790, 2102212464
        %v803 = vsel %vm799, %v787, %v802
        %v804 = vsel %vm798, %v801, %v803
        %v805 = vsel %vm797, %v784, %v787
        %v806 = vsel %vm800, %v793, 920167782
        %v807 = vsel %vm799, %v790, %v806
        %v808 = vsel %vm798, %v805, %v807
        %v809 = vsel %vm797, %v787, %v790
        %v810 = vsel %vm800, %v796, 1326507024
        %v811 = vsel %vm799, %v793, %v810
        %v812 = vsel %vm798, %v809, %v811
        %v813 = vshll.u32 %v773, 8
        %v814 = vmul.u32.u64.compose %v813, %v812
        %v815 = vextract.low.u32 %v814
        %v816 = vextract.high.u32 %v814
        %v817 = vmul.u32.u64.compose %v813, %v808
        %v818 = vextract.low.u32 %v817
        %v819 = vextract.high.u32 %v817
        %v820 = vmul.u32 %v813, %v804
        %v821 = vadd.s32 %v816, %v818
        %vm822 = vc.u32 %v816, %v818
        %v823 = vadd.s32 %v819, 1
        %v824 = vsel %vm822, %v823, %v819
        %v825 = vadd.s32 %v820, %v824
        %v826 = vadd.s32 %v825, 536870912
        %v827 = vshrl.u32 %v826, 30
        %v828 = vshll.u32 %v827, 30
        %v829 = vsub.s32 %v825, %v828
        %vm830 = vcmp.lt.s32.totalorder %v829, 0
        %v831 = vsub.s32 0, %v829
        %v832 = vsel %vm830, %v831, %v829
        %v833 = vclz %v832
        %v834 = vsub.s32 %v833, 2
        %vm835 = vcmp.gt.s32.totalorder 0, %v834
        %v836 = vsel %vm835, 0, %v834
        %v837 = vsub.s32 32, %v836
        %v838 = vshll.u32 %v829, %v836
        %v839 = vshrl.u32 %v821, %v837
        %v840 = vor.u32 %v838, %v839
        %v841 = vsub.s32 4294967266, %v836
        %v842 = vadd.s32 %v841, 127
        %v843 = vshll.u32 %v842, 23
        %v844 = vor.u32 4788187, %v843
        %v845 = vand.u32 2147483647, %v844
        %v847 = vcvt.s32.f32 %v840
        %v848 = vmul.f32 %v847, %v845
        %v849 = vxor.u32 %v848, 2147483648
        %v850 = vsel %vm767, %v849, %v848
        %v851 = vsub.s32 4, %v827
        %v852 = vsel %vm767, %v851, %v827
        %v853 = vsel %vm766, %v541, %v850
        %v854 = vsel %vm766, 0, %v852
        %v855 = vcosq.f32.pop %v853
        %v856 = vsinq.f32.pop %v853
        %vm857 = vweird.f32 %v541
        %v858 = vadd.s32 %v854, 3
        %v859 = vand.u32 %v858, 3
        %vm860 = vcmp.lt.s32.totalorder %v859, 2
        %vm861 = vcmp.eq.s32.totalorder %v859, 0
        %v862 = vxor.u32 %v856, 2147483648
        %v863 = vsel %vm861, %v855, %v862
        %vm864 = vcmp.eq.s32.totalorder %v859, 2
        %v865 = vxor.u32 %v855, 2147483648
        %v866 = vsel %vm864, %v865, %v856
        %v867 = vsel %vm860, %v863, %v866
        %v868 = vsel %vm857, nan, %v867
        %v869 = vand.u32 2147483647, %v543
        %vm870 = vcmp.le.f32.partialorder %v869, 0.7853982
        %vm871 = vcmp.lt.s32.totalorder %v543, 0
        %v872 = vand.u32 %v543, 2139095040
        %v873 = vshrl.u32 %v872, 23
        %v874 = vsub.s32 %v873, 127
        %v875 = vand.u32 2147483647, %v543
        %v876 = vand.u32 %v875, 8388607
        %v877 = vor.u32 %v876, 8388608
        %v878 = vsub.s32 0, %v877
        %v879 = vadd.s32 %v874, 1
        %vm880 = vcmp.gt.s32.totalorder %v879, 0
        %v881 = vsel %vm880, %v879, 0
        %v882 = vshrl.u32 %v881, 5
        %v883 = vand.u32 %v881, 31
        %v884 = vsub.s32 32, %v883
        %v885 = vshrl.u32 683565275, %v884
        %v886 = vshll.u32 683565275, %v883
        %v887 = vshrl.u32 2475754826, %v884
        %v888 = vor.u32 %v886, %v887
        %v889 = vshll.u32 2475754826, %v883
        %v890 = vshrl.u32 2131351028, %v884
        %v891 = vor.u32 %v889, %v890
        %v892 = vshll.u32 2131351028, %v883
        %v893 = vshrl.u32 2102212464, %v884
        %v894 = vor.u32 %v892, %v893
        %v895 = vshll.u32 2102212464, %v883
        %v896 = vshrl.u32 920167782, %v884
        %v897 = vor.u32 %v895, %v896
        %v898 = vshll.u32 920167782, %v883
        %v899 = vshrl.u32 1326507024, %v884
        %v900 = vor.u32 %v898, %v899
        %vm901 = vcmp.lt.s32.totalorder %v882, 1
        %vm902 = vcmp.lt.s32.totalorder %v882, 2
        %vm903 = vcmp.lt.s32.totalorder %v882, 3
        %vm904 = vcmp.lt.s32.totalorder %v882, 4
        %v905 = vsel %vm901, %v885, %v888
        %v906 = vsel %vm904, %v894, 2102212464
        %v907 = vsel %vm903, %v891, %v906
        %v908 = vsel %vm902, %v905, %v907
        %v909 = vsel %vm901, %v888, %v891
        %v910 = vsel %vm904, %v897, 920167782
        %v911 = vsel %vm903, %v894, %v910
        %v912 = vsel %vm902, %v909, %v911
        %v913 = vsel %vm901, %v891, %v894
        %v914 = vsel %vm904, %v900, 1326507024
        %v915 = vsel %vm903, %v897, %v914
        %v916 = vsel %vm902, %v913, %v915
        %v917 = vshll.u32 %v877, 8
        %v918 = vmul.u32.u64.compose %v917, %v916
        %v919 = vextract.low.u32 %v918
        %v920 = vextract.high.u32 %v918
        %v921 = vmul.u32.u64.compose %v917, %v912
        %v922 = vextract.low.u32 %v921
        %v923 = vextract.high.u32 %v921
        %v924 = vmul.u32 %v917, %v908
        %v925 = vadd.s32 %v920, %v922
        %vm926 = vc.u32 %v920, %v922
        %v927 = vadd.s32 %v923, 1
        %v928 = vsel %vm926, %v927, %v923
        %v929 = vadd.s32 %v924, %v928
        %v930 = vadd.s32 %v929, 536870912
        %v931 = vshrl.u32 %v930, 30
        %v932 = vshll.u32 %v931, 30
        %v933 = vsub.s32 %v929, %v932
        %vm934 = vcmp.lt.s32.totalorder %v933, 0
        %v935 = vsub.s32 0, %v933
        %v936 = vsel %vm934, %v935, %v933
        %v937 = vclz %v936
        %v938 = vsub.s32 %v937, 2
        %vm939 = vcmp.gt.s32.totalorder 0, %v938
        %v940 = vsel %vm939, 0, %v938
        %v941 = vsub.s32 32, %v940
        %v942 = vshll.u32 %v933, %v940
        %v943 = vshrl.u32 %v925, %v941
        %v944 = vor.u32 %v942, %v943
        %v945 = vsub.s32 4294967266, %v940
        %v946 = vadd.s32 %v945, 127
        %v947 = vshll.u32 %v946, 23
        %v948 = vor.u32 4788187, %v947
        %v949 = vand.u32 2147483647, %v948
        %v951 = vcvt.s32.f32 %v944
        %v952 = vmul.f32 %v951, %v949
        %v953 = vxor.u32 %v952, 2147483648
        %v954 = vsel %vm871, %v953, %v952
        %v955 = vsub.s32 4, %v931
        %v956 = vsel %vm871, %v955, %v931
        %v957 = vsel %vm870, %v543, %v954
        %v958 = vsel %vm870, 0, %v956
        %v959 = vcosq.f32.pop %v957
        %v960 = vsinq.f32.pop %v957
        %vm961 = vweird.f32 %v543
        %v962 = vadd.s32 %v958, 3
        %v963 = vand.u32 %v962, 3
        %vm964 = vcmp.lt.s32.totalorder %v963, 2
        %vm965 = vcmp.eq.s32.totalorder %v963, 0
        %v966 = vxor.u32 %v960, 2147483648
        %v967 = vsel %vm965, %v959, %v966
        %vm968 = vcmp.eq.s32.totalorder %v963, 2
        %v969 = vxor.u32 %v959, 2147483648
        %v970 = vsel %vm968, %v969, %v960
        %v971 = vsel %vm964, %v967, %v970
        %v972 = vsel %vm961, nan, %v971
        %v973 = vand.u32 2147483647, %v547
        %vm974 = vcmp.le.f32.partialorder %v973, 0.7853982
        %vm975 = vcmp.lt.s32.totalorder %v547, 0
        %v976 = vand.u32 %v547, 2139095040
        %v977 = vshrl.u32 %v976, 23
        %v978 = vsub.s32 %v977, 127
        %v979 = vand.u32 2147483647, %v547
        %v980 = vand.u32 %v979, 8388607
        %v981 = vor.u32 %v980, 8388608
        %v982 = vsub.s32 0, %v981
        %v983 = vadd.s32 %v978, 1
        %vm984 = vcmp.gt.s32.totalorder %v983, 0
        %v985 = vsel %vm984, %v983, 0
        %v986 = vshrl.u32 %v985, 5
        %v987 = vand.u32 %v985, 31
        %v988 = vsub.s32 32, %v987
        %v989 = vshrl.u32 683565275, %v988
        %v990 = vshll.u32 683565275, %v987
        %v991 = vshrl.u32 2475754826, %v988
        %v992 = vor.u32 %v990, %v991
        %v993 = vshll.u32 2475754826, %v987
        %v994 = vshrl.u32 2131351028, %v988
        %v995 = vor.u32 %v993, %v994
        %v996 = vshll.u32 2131351028, %v987
        %v997 = vshrl.u32 2102212464, %v988
        %v998 = vor.u32 %v996, %v997
        %v999 = vshll.u32 2102212464, %v987
        %v1000 = vshrl.u32 920167782, %v988
        %v1001 = vor.u32 %v999, %v1000
        %v1002 = vshll.u32 920167782, %v987
        %v1003 = vshrl.u32 1326507024, %v988
        %v1004 = vor.u32 %v1002, %v1003
        %vm1005 = vcmp.lt.s32.totalorder %v986, 1
        %vm1006 = vcmp.lt.s32.totalorder %v986, 2
        %vm1007 = vcmp.lt.s32.totalorder %v986, 3
        %vm1008 = vcmp.lt.s32.totalorder %v986, 4
        %v1009 = vsel %vm1005, %v989, %v992
        %v1010 = vsel %vm1008, %v998, 2102212464
        %v1011 = vsel %vm1007, %v995, %v1010
        %v1012 = vsel %vm1006, %v1009, %v1011
        %v1013 = vsel %vm1005, %v992, %v995
        %v1014 = vsel %vm1008, %v1001, 920167782
        %v1015 = vsel %vm1007, %v998, %v1014
        %v1016 = vsel %vm1006, %v1013, %v1015
        %v1017 = vsel %vm1005, %v995, %v998
        %v1018 = vsel %vm1008, %v1004, 1326507024
        %v1019 = vsel %vm1007, %v1001, %v1018
        %v1020 = vsel %vm1006, %v1017, %v1019
        %v1021 = vshll.u32 %v981, 8
        %v1022 = vmul.u32.u64.compose %v1021, %v1020
        %v1023 = vextract.low.u32 %v1022
        %v1024 = vextract.high.u32 %v1022
        %v1025 = vmul.u32.u64.compose %v1021, %v1016
        %v1026 = vextract.low.u32 %v1025
        %v1027 = vextract.high.u32 %v1025
        %v1028 = vmul.u32 %v1021, %v1012
        %v1029 = vadd.s32 %v1024, %v1026
        %vm1030 = vc.u32 %v1024, %v1026
        %v1031 = vadd.s32 %v1027, 1
        %v1032 = vsel %vm1030, %v1031, %v1027
        %v1033 = vadd.s32 %v1028, %v1032
        %v1034 = vadd.s32 %v1033, 536870912
        %v1035 = vshrl.u32 %v1034, 30
        %v1036 = vshll.u32 %v1035, 30
        %v1037 = vsub.s32 %v1033, %v1036
        %vm1038 = vcmp.lt.s32.totalorder %v1037, 0
        %v1039 = vsub.s32 0, %v1037
        %v1040 = vsel %vm1038, %v1039, %v1037
        %v1041 = vclz %v1040
        %v1042 = vsub.s32 %v1041, 2
        %vm1043 = vcmp.gt.s32.totalorder 0, %v1042
        %v1044 = vsel %vm1043, 0, %v1042
        %v1045 = vsub.s32 32, %v1044
        %v1046 = vshll.u32 %v1037, %v1044
        %v1047 = vshrl.u32 %v1029, %v1045
        %v1048 = vor.u32 %v1046, %v1047
        %v1049 = vsub.s32 4294967266, %v1044
        %v1050 = vadd.s32 %v1049, 127
        %v1051 = vshll.u32 %v1050, 23
        %v1052 = vor.u32 4788187, %v1051
        %v1053 = vand.u32 2147483647, %v1052
        %v1055 = vcvt.s32.f32 %v1048
        %v1056 = vmul.f32 %v1055, %v1053
        %v1057 = vxor.u32 %v1056, 2147483648
        %v1058 = vsel %vm975, %v1057, %v1056
        %v1059 = vsub.s32 4, %v1035
        %v1060 = vsel %vm975, %v1059, %v1035
        %v1061 = vsel %vm974, %v547, %v1058
        %v1062 = vsel %vm974, 0, %v1060
        %v1063 = vcosq.f32.pop %v1061
        %v1064 = vsinq.f32.pop %v1061
        %vm1065 = vweird.f32 %v547
        %v1066 = vadd.s32 %v1062, 3
        %v1067 = vand.u32 %v1066, 3
        %vm1068 = vcmp.lt.s32.totalorder %v1067, 2
        %vm1069 = vcmp.eq.s32.totalorder %v1067, 0
        %v1070 = vxor.u32 %v1064, 2147483648
        %v1071 = vsel %vm1069, %v1063, %v1070
        %vm1072 = vcmp.eq.s32.totalorder %v1067, 2
        %v1073 = vxor.u32 %v1063, 2147483648
        %v1074 = vsel %vm1072, %v1073, %v1064
        %v1075 = vsel %vm1068, %v1071, %v1074
        %v1076 = vsel %vm1065, nan, %v1075
        %v1077 = vand.u32 2147483647, %v549
        %vm1078 = vcmp.le.f32.partialorder %v1077, 0.7853982
        %vm1079 = vcmp.lt.s32.totalorder %v549, 0
        %v1080 = vand.u32 %v549, 2139095040
        %v1081 = vshrl.u32 %v1080, 23
        %v1082 = vsub.s32 %v1081, 127
        %v1083 = vand.u32 2147483647, %v549
        %v1084 = vand.u32 %v1083, 8388607
        %v1085 = vor.u32 %v1084, 8388608
        %v1086 = vsub.s32 0, %v1085
        %v1087 = vadd.s32 %v1082, 1
        %vm1088 = vcmp.gt.s32.totalorder %v1087, 0
        %v1089 = vsel %vm1088, %v1087, 0
        %v1090 = vshrl.u32 %v1089, 5
        %v1091 = vand.u32 %v1089, 31
        %v1092 = vsub.s32 32, %v1091
        %v1093 = vshrl.u32 683565275, %v1092
        %v1094 = vshll.u32 683565275, %v1091
        %v1095 = vshrl.u32 2475754826, %v1092
        %v1096 = vor.u32 %v1094, %v1095
        %v1097 = vshll.u32 2475754826, %v1091
        %v1098 = vshrl.u32 2131351028, %v1092
        %v1099 = vor.u32 %v1097, %v1098
        %v1100 = vshll.u32 2131351028, %v1091
        %v1101 = vshrl.u32 2102212464, %v1092
        %v1102 = vor.u32 %v1100, %v1101
        %v1103 = vshll.u32 2102212464, %v1091
        %v1104 = vshrl.u32 920167782, %v1092
        %v1105 = vor.u32 %v1103, %v1104
        %v1106 = vshll.u32 920167782, %v1091
        %v1107 = vshrl.u32 1326507024, %v1092
        %v1108 = vor.u32 %v1106, %v1107
        %vm1109 = vcmp.lt.s32.totalorder %v1090, 1
        %vm1110 = vcmp.lt.s32.totalorder %v1090, 2
        %vm1111 = vcmp.lt.s32.totalorder %v1090, 3
        %vm1112 = vcmp.lt.s32.totalorder %v1090, 4
        %v1113 = vsel %vm1109, %v1093, %v1096
        %v1114 = vsel %vm1112, %v1102, 2102212464
        %v1115 = vsel %vm1111, %v1099, %v1114
        %v1116 = vsel %vm1110, %v1113, %v1115
        %v1117 = vsel %vm1109, %v1096, %v1099
        %v1118 = vsel %vm1112, %v1105, 920167782
        %v1119 = vsel %vm1111, %v1102, %v1118
        %v1120 = vsel %vm1110, %v1117, %v1119
        %v1121 = vsel %vm1109, %v1099, %v1102
        %v1122 = vsel %vm1112, %v1108, 1326507024
        %v1123 = vsel %vm1111, %v1105, %v1122
        %v1124 = vsel %vm1110, %v1121, %v1123
        %v1125 = vshll.u32 %v1085, 8
        %v1126 = vmul.u32.u64.compose %v1125, %v1124
        %v1127 = vextract.low.u32 %v1126
        %v1128 = vextract.high.u32 %v1126
        %v1129 = vmul.u32.u64.compose %v1125, %v1120
        %v1130 = vextract.low.u32 %v1129
        %v1131 = vextract.high.u32 %v1129
        %v1132 = vmul.u32 %v1125, %v1116
        %v1133 = vadd.s32 %v1128, %v1130
        %vm1134 = vc.u32 %v1128, %v1130
        %v1135 = vadd.s32 %v1131, 1
        %v1136 = vsel %vm1134, %v1135, %v1131
        %v1137 = vadd.s32 %v1132, %v1136
        %v1138 = vadd.s32 %v1137, 536870912
        %v1139 = vshrl.u32 %v1138, 30
        %v1140 = vshll.u32 %v1139, 30
        %v1141 = vsub.s32 %v1137, %v1140
        %vm1142 = vcmp.lt.s32.totalorder %v1141, 0
        %v1143 = vsub.s32 0, %v1141
        %v1144 = vsel %vm1142, %v1143, %v1141
        %v1145 = vclz %v1144
        %v1146 = vsub.s32 %v1145, 2
        %vm1147 = vcmp.gt.s32.totalorder 0, %v1146
        %v1148 = vsel %vm1147, 0, %v1146
        %v1149 = vsub.s32 32, %v1148
        %v1150 = vshll.u32 %v1141, %v1148
        %v1151 = vshrl.u32 %v1133, %v1149
        %v1152 = vor.u32 %v1150, %v1151
        %v1153 = vsub.s32 4294967266, %v1148
        %v1154 = vadd.s32 %v1153, 127
        %v1155 = vshll.u32 %v1154, 23
        %v1156 = vor.u32 4788187, %v1155
        %v1157 = vand.u32 2147483647, %v1156
        %v1159 = vcvt.s32.f32 %v1152
        %v1160 = vmul.f32 %v1159, %v1157
        %v1161 = vxor.u32 %v1160, 2147483648
        %v1162 = vsel %vm1079, %v1161, %v1160
        %v1163 = vsub.s32 4, %v1139
        %v1164 = vsel %vm1079, %v1163, %v1139
        %v1165 = vsel %vm1078, %v549, %v1162
        %v1166 = vsel %vm1078, 0, %v1164
        %v1167 = vcosq.f32.pop %v1165
        %v1168 = vsinq.f32.pop %v1165
        %vm1169 = vweird.f32 %v549
        %v1170 = vadd.s32 %v1166, 3
        %v1171 = vand.u32 %v1170, 3
        %vm1172 = vcmp.lt.s32.totalorder %v1171, 2
        %vm1173 = vcmp.eq.s32.totalorder %v1171, 0
        %v1174 = vxor.u32 %v1168, 2147483648
        %v1175 = vsel %vm1173, %v1167, %v1174
        %vm1176 = vcmp.eq.s32.totalorder %v1171, 2
        %v1177 = vxor.u32 %v1167, 2147483648
        %v1178 = vsel %vm1176, %v1177, %v1168
        %v1179 = vsel %vm1172, %v1175, %v1178
        %v1180 = vsel %vm1169, nan, %v1179
        %v1181 = vand.u32 2147483647, %v553
        %vm1182 = vcmp.le.f32.partialorder %v1181, 0.7853982
        %vm1183 = vcmp.lt.s32.totalorder %v553, 0
        %v1184 = vand.u32 %v553, 2139095040
        %v1185 = vshrl.u32 %v1184, 23
        %v1186 = vsub.s32 %v1185, 127
        %v1187 = vand.u32 2147483647, %v553
        %v1188 = vand.u32 %v1187, 8388607
        %v1189 = vor.u32 %v1188, 8388608
        %v1190 = vsub.s32 0, %v1189
        %v1191 = vadd.s32 %v1186, 1
        %vm1192 = vcmp.gt.s32.totalorder %v1191, 0
        %v1193 = vsel %vm1192, %v1191, 0
        %v1194 = vshrl.u32 %v1193, 5
        %v1195 = vand.u32 %v1193, 31
        %v1196 = vsub.s32 32, %v1195
        %v1197 = vshrl.u32 683565275, %v1196
        %v1198 = vshll.u32 683565275, %v1195
        %v1199 = vshrl.u32 2475754826, %v1196
        %v1200 = vor.u32 %v1198, %v1199
        %v1201 = vshll.u32 2475754826, %v1195
        %v1202 = vshrl.u32 2131351028, %v1196
        %v1203 = vor.u32 %v1201, %v1202
        %v1204 = vshll.u32 2131351028, %v1195
        %v1205 = vshrl.u32 2102212464, %v1196
        %v1206 = vor.u32 %v1204, %v1205
        %v1207 = vshll.u32 2102212464, %v1195
        %v1208 = vshrl.u32 920167782, %v1196
        %v1209 = vor.u32 %v1207, %v1208
        %v1210 = vshll.u32 920167782, %v1195
        %v1211 = vshrl.u32 1326507024, %v1196
        %v1212 = vor.u32 %v1210, %v1211
        %vm1213 = vcmp.lt.s32.totalorder %v1194, 1
        %vm1214 = vcmp.lt.s32.totalorder %v1194, 2
        %vm1215 = vcmp.lt.s32.totalorder %v1194, 3
        %vm1216 = vcmp.lt.s32.totalorder %v1194, 4
        %v1217 = vsel %vm1213, %v1197, %v1200
        %v1218 = vsel %vm1216, %v1206, 2102212464
        %v1219 = vsel %vm1215, %v1203, %v1218
        %v1220 = vsel %vm1214, %v1217, %v1219
        %v1221 = vsel %vm1213, %v1200, %v1203
        %v1222 = vsel %vm1216, %v1209, 920167782
        %v1223 = vsel %vm1215, %v1206, %v1222
        %v1224 = vsel %vm1214, %v1221, %v1223
        %v1225 = vsel %vm1213, %v1203, %v1206
        %v1226 = vsel %vm1216, %v1212, 1326507024
        %v1227 = vsel %vm1215, %v1209, %v1226
        %v1228 = vsel %vm1214, %v1225, %v1227
        %v1229 = vshll.u32 %v1189, 8
        %v1230 = vmul.u32.u64.compose %v1229, %v1228
        %v1231 = vextract.low.u32 %v1230
        %v1232 = vextract.high.u32 %v1230
        %v1233 = vmul.u32.u64.compose %v1229, %v1224
        %v1234 = vextract.low.u32 %v1233
        %v1235 = vextract.high.u32 %v1233
        %v1236 = vmul.u32 %v1229, %v1220
        %v1237 = vadd.s32 %v1232, %v1234
        %vm1238 = vc.u32 %v1232, %v1234
        %v1239 = vadd.s32 %v1235, 1
        %v1240 = vsel %vm1238, %v1239, %v1235
        %v1241 = vadd.s32 %v1236, %v1240
        %v1242 = vadd.s32 %v1241, 536870912
        %v1243 = vshrl.u32 %v1242, 30
        %v1244 = vshll.u32 %v1243, 30
        %v1245 = vsub.s32 %v1241, %v1244
        %vm1246 = vcmp.lt.s32.totalorder %v1245, 0
        %v1247 = vsub.s32 0, %v1245
        %v1248 = vsel %vm1246, %v1247, %v1245
        %v1249 = vclz %v1248
        %v1250 = vsub.s32 %v1249, 2
        %vm1251 = vcmp.gt.s32.totalorder 0, %v1250
        %v1252 = vsel %vm1251, 0, %v1250
        %v1253 = vsub.s32 32, %v1252
        %v1254 = vshll.u32 %v1245, %v1252
        %v1255 = vshrl.u32 %v1237, %v1253
        %v1256 = vor.u32 %v1254, %v1255
        %v1257 = vsub.s32 4294967266, %v1252
        %v1258 = vadd.s32 %v1257, 127
        %v1259 = vshll.u32 %v1258, 23
        %v1260 = vor.u32 4788187, %v1259
        %v1261 = vand.u32 2147483647, %v1260
        %v1263 = vcvt.s32.f32 %v1256
        %v1264 = vmul.f32 %v1263, %v1261
        %v1265 = vxor.u32 %v1264, 2147483648
        %v1266 = vsel %vm1183, %v1265, %v1264
        %v1267 = vsub.s32 4, %v1243
        %v1268 = vsel %vm1183, %v1267, %v1243
        %v1269 = vsel %vm1182, %v553, %v1266
        %v1270 = vsel %vm1182, 0, %v1268
        %v1271 = vcosq.f32.pop %v1269
        %v1272 = vsinq.f32.pop %v1269
        %vm1273 = vweird.f32 %v553
        %v1274 = vadd.s32 %v1270, 3
        %v1275 = vand.u32 %v1274, 3
        %vm1276 = vcmp.lt.s32.totalorder %v1275, 2
        %vm1277 = vcmp.eq.s32.totalorder %v1275, 0
        %v1278 = vxor.u32 %v1272, 2147483648
        %v1279 = vsel %vm1277, %v1271, %v1278
        %vm1280 = vcmp.eq.s32.totalorder %v1275, 2
        %v1281 = vxor.u32 %v1271, 2147483648
        %v1282 = vsel %vm1280, %v1281, %v1272
        %v1283 = vsel %vm1276, %v1279, %v1282
        %v1284 = vsel %vm1273, nan, %v1283
        %v1285 = vand.u32 2147483647, %v555
        %vm1286 = vcmp.le.f32.partialorder %v1285, 0.7853982
        %vm1287 = vcmp.lt.s32.totalorder %v555, 0
        %v1288 = vand.u32 %v555, 2139095040
        %v1289 = vshrl.u32 %v1288, 23
        %v1290 = vsub.s32 %v1289, 127
        %v1291 = vand.u32 2147483647, %v555
        %v1292 = vand.u32 %v1291, 8388607
        %v1293 = vor.u32 %v1292, 8388608
        %v1294 = vsub.s32 0, %v1293
        %v1295 = vadd.s32 %v1290, 1
        %vm1296 = vcmp.gt.s32.totalorder %v1295, 0
        %v1297 = vsel %vm1296, %v1295, 0
        %v1298 = vshrl.u32 %v1297, 5
        %v1299 = vand.u32 %v1297, 31
        %v1300 = vsub.s32 32, %v1299
        %v1301 = vshrl.u32 683565275, %v1300
        %v1302 = vshll.u32 683565275, %v1299
        %v1303 = vshrl.u32 2475754826, %v1300
        %v1304 = vor.u32 %v1302, %v1303
        %v1305 = vshll.u32 2475754826, %v1299
        %v1306 = vshrl.u32 2131351028, %v1300
        %v1307 = vor.u32 %v1305, %v1306
        %v1308 = vshll.u32 2131351028, %v1299
        %v1309 = vshrl.u32 2102212464, %v1300
        %v1310 = vor.u32 %v1308, %v1309
        %v1311 = vshll.u32 2102212464, %v1299
        %v1312 = vshrl.u32 920167782, %v1300
        %v1313 = vor.u32 %v1311, %v1312
        %v1314 = vshll.u32 920167782, %v1299
        %v1315 = vshrl.u32 1326507024, %v1300
        %v1316 = vor.u32 %v1314, %v1315
        %vm1317 = vcmp.lt.s32.totalorder %v1298, 1
        %vm1318 = vcmp.lt.s32.totalorder %v1298, 2
        %vm1319 = vcmp.lt.s32.totalorder %v1298, 3
        %vm1320 = vcmp.lt.s32.totalorder %v1298, 4
        %v1321 = vsel %vm1317, %v1301, %v1304
        %v1322 = vsel %vm1320, %v1310, 2102212464
        %v1323 = vsel %vm1319, %v1307, %v1322
        %v1324 = vsel %vm1318, %v1321, %v1323
        %v1325 = vsel %vm1317, %v1304, %v1307
        %v1326 = vsel %vm1320, %v1313, 920167782
        %v1327 = vsel %vm1319, %v1310, %v1326
        %v1328 = vsel %vm1318, %v1325, %v1327
        %v1329 = vsel %vm1317, %v1307, %v1310
        %v1330 = vsel %vm1320, %v1316, 1326507024
        %v1331 = vsel %vm1319, %v1313, %v1330
        %v1332 = vsel %vm1318, %v1329, %v1331
        %v1333 = vshll.u32 %v1293, 8
        %v1334 = vmul.u32.u64.compose %v1333, %v1332
        %v1335 = vextract.low.u32 %v1334
        %v1336 = vextract.high.u32 %v1334
        %v1337 = vmul.u32.u64.compose %v1333, %v1328
        %v1338 = vextract.low.u32 %v1337
        %v1339 = vextract.high.u32 %v1337
        %v1340 = vmul.u32 %v1333, %v1324
        %v1341 = vadd.s32 %v1336, %v1338
        %vm1342 = vc.u32 %v1336, %v1338
        %v1343 = vadd.s32 %v1339, 1
        %v1344 = vsel %vm1342, %v1343, %v1339
        %v1345 = vadd.s32 %v1340, %v1344
        %v1346 = vadd.s32 %v1345, 536870912
        %v1347 = vshrl.u32 %v1346, 30
        %v1348 = vshll.u32 %v1347, 30
        %v1349 = vsub.s32 %v1345, %v1348
        %vm1350 = vcmp.lt.s32.totalorder %v1349, 0
        %v1351 = vsub.s32 0, %v1349
        %v1352 = vsel %vm1350, %v1351, %v1349
        %v1353 = vclz %v1352
        %v1354 = vsub.s32 %v1353, 2
        %vm1355 = vcmp.gt.s32.totalorder 0, %v1354
        %v1356 = vsel %vm1355, 0, %v1354
        %v1357 = vsub.s32 32, %v1356
        %v1358 = vshll.u32 %v1349, %v1356
        %v1359 = vshrl.u32 %v1341, %v1357
        %v1360 = vor.u32 %v1358, %v1359
        %v1361 = vsub.s32 4294967266, %v1356
        %v1362 = vadd.s32 %v1361, 127
        %v1363 = vshll.u32 %v1362, 23
        %v1364 = vor.u32 4788187, %v1363
        %v1365 = vand.u32 2147483647, %v1364
        %v1367 = vcvt.s32.f32 %v1360
        %v1368 = vmul.f32 %v1367, %v1365
        %v1369 = vxor.u32 %v1368, 2147483648
        %v1370 = vsel %vm1287, %v1369, %v1368
        %v1371 = vsub.s32 4, %v1347
        %v1372 = vsel %vm1287, %v1371, %v1347
        %v1373 = vsel %vm1286, %v555, %v1370
        %v1374 = vsel %vm1286, 0, %v1372
        %v1375 = vcosq.f32.pop %v1373
        %v1376 = vsinq.f32.pop %v1373
        %vm1377 = vweird.f32 %v555
        %v1378 = vadd.s32 %v1374, 3
        %v1379 = vand.u32 %v1378, 3
        %vm1380 = vcmp.lt.s32.totalorder %v1379, 2
        %vm1381 = vcmp.eq.s32.totalorder %v1379, 0
        %v1382 = vxor.u32 %v1376, 2147483648
        %v1383 = vsel %vm1381, %v1375, %v1382
        %vm1384 = vcmp.eq.s32.totalorder %v1379, 2
        %v1385 = vxor.u32 %v1375, 2147483648
        %v1386 = vsel %vm1384, %v1385, %v1376
        %v1387 = vsel %vm1380, %v1383, %v1386
        %v1388 = vsel %vm1377, nan, %v1387
        %1390 = vset.pattern.permute.xlu0 0
        %1391 = vperm.xlu0 %1390, %v431
        %v1392 = vpop.permute.xlu0 %1391
        %1395 = vset.pattern.permute.xlu0 0
        %1396 = vperm.xlu0 %1395, %v432
        %v1397 = vpop.permute.xlu0 %1396
        %1400 = vset.pattern.permute.xlu0 0
        %1401 = vperm.xlu0 %1400, %v433
        %v1402 = vpop.permute.xlu0 %1401
        %1405 = vset.pattern.permute.xlu0 0
        %1406 = vperm.xlu0 %1405, %v434
        %v1407 = vpop.permute.xlu0 %1406
        %vm1409 = vcmask 261120
        %v1411 = vsel %vm1409, %v427, 0
        %v1414 = vsel %vm1409, %v428, 0
        %v1417 = vsel %vm1409, %v429, 0
        %v1420 = vsel %vm1409, %v430, 0
        %1422 = vmatprep.subr.mxu0 %v764
        %1423 = vmatpush1.msra.mxu0 %v660
        %1424 = vmatprep.subr.mxu0 %v972
        %1425 = vmatpush1.msra.mxu0 %v868
        %1426 = vmatprep.subr.mxu0 %v1180
        %1427 = vmatpush1.msra.mxu0 %v1076
        %1428 = vmatprep.subr.mxu0 %v1388
        %1429 = vmatpush1.msra.mxu0 %v1284
        %1430 = vmatprep.subr.mxu0 0.0
        %1431 = vmatpush1.msra.mxu0 0.0
        %1432 = vmatprep.subr.mxu0 0.0
        %1433 = vmatpush1.msra.mxu0 0.0
        %1434 = vmatprep.subr.mxu0 0.0
        %1435 = vmatpush1.msra.mxu0 0.0
        %1436 = vmatprep.subr.mxu0 0.0
        %1437 = vmatpush1.msra.mxu0 0.0
        %1438 = vmatprep.subr.mxu0 0.0
        %1439 = vmatpush1.msra.mxu0 0.0
        %1440 = vmatprep.subr.mxu0 0.0
        %1441 = vmatpush1.msra.mxu0 0.0
        %1442 = vmatprep.subr.mxu0 0.0
        %1443 = vmatpush1.msra.mxu0 0.0
        %1444 = vmatprep.subr.mxu0 0.0
        %1445 = vmatpush1.msra.mxu0 0.0
        %1446 = vmatprep.subr.mxu0 0.0
        %1447 = vmatpush1.msra.mxu0 0.0
        %1448 = vmatprep.subr.mxu0 0.0
        %1449 = vmatpush1.msra.mxu0 0.0
        %1450 = vmatprep.subr.mxu0 0.0
        %1451 = vmatpush1.msra.mxu0 0.0
        %1452 = vmatprep.subr.mxu0 0.0
        %1453 = vmatpush1.msra.mxu0 0.0
        %1454 = vmatprep.subr.mxu0 0.0
        %1455 = vmatpush1.msra.mxu0 0.0
        %1456 = vmatprep.subr.mxu0 0.0
        %1457 = vmatpush1.msra.mxu0 0.0
        %1458 = vmatprep.subr.mxu0 0.0
        %1459 = vmatpush1.msra.mxu0 0.0
        %1460 = vmatprep.subr.mxu0 0.0
        %1461 = vmatpush1.msra.mxu0 0.0
        %1462 = vmatprep.subr.mxu0 0.0
        %1463 = vmatpush1.msra.mxu0 0.0
        %1464 = vmatprep.subr.mxu0 0.0
        %1465 = vmatpush1.msra.mxu0 0.0
        %1466 = vmatprep.subr.mxu0 0.0
        %1467 = vmatpush1.msra.mxu0 0.0
        %1468 = vmatprep.subr.mxu0 0.0
        %1469 = vmatpush1.msra.mxu0 0.0
        %1470 = vmatprep.subr.mxu0 0.0
        %1471 = vmatpush1.msra.mxu0 0.0
        %1472 = vmatprep.subr.mxu0 0.0
        %1473 = vmatpush1.msra.mxu0 0.0
        %1474 = vmatprep.subr.mxu0 0.0
        %1475 = vmatpush1.msra.mxu0 0.0
        %1476 = vmatprep.subr.mxu0 0.0
        %1477 = vmatpush1.msra.mxu0 0.0
        %1478 = vmatprep.subr.mxu0 0.0
        %1479 = vmatpush1.msra.mxu0 0.0
        %1480 = vmatprep.subr.mxu0 0.0
        %1481 = vmatpush1.msra.mxu0 0.0
        %1482 = vmatprep.subr.mxu0 0.0
        %1483 = vmatpush1.msra.mxu0 0.0
        %1484 = vmatprep.subr.mxu0 0.0
        %1485 = vmatpush1.msra.mxu0 0.0
        %1486 = vmatprep.mubr.f32.mxu0 0.0
        %1487 = vmatmul.mubr.f32.gmra.mrb[0].mxu0 %v1411
        %v1488 = vpop.f32.mrb[0].mxu0
        %v1489 = vadd.f32 %v1392, %v1488
        %v1490 = vpop.f32.mrb[0].mxu0
        %v1491 = vadd.f32 %v1392, %v1490
        %1492 = vmatprep.mubr.f32.mxu0 0.0
        %1493 = vmatmul.mubr.f32.gmra.mrb[0].mxu0 %v1414
        %v1494 = vpop.f32.mrb[0].mxu0
        %v1495 = vadd.f32 %v1397, %v1494
        %v1496 = vpop.f32.mrb[0].mxu0
        %v1497 = vadd.f32 %v1397, %v1496
        %1498 = vmatprep.mubr.f32.mxu0 0.0
        %1499 = vmatmul.mubr.f32.gmra.mrb[0].mxu0 %v1417
        %v1500 = vpop.f32.mrb[0].mxu0
        %v1501 = vadd.f32 %v1402, %v1500
        %v1502 = vpop.f32.mrb[0].mxu0
        %v1503 = vadd.f32 %v1402, %v1502
        %1504 = vmatprep.mubr.f32.mxu0 0.0
        %1505 = vmatmul.mubr.f32.gmra.mrb[0].mxu0 %v1420
        %v1506 = vpop.f32.mrb[0].mxu0
        %v1507 = vadd.f32 %v1407, %v1506
        %v1508 = vpop.f32.mrb[0].mxu0
        %v1509 = vadd.f32 %v1407, %v1508
        %1510 = vdwg.mxu0
        %v1511 = vand.u32 2147483647, %v1489
        %vm1512 = vcmp.le.f32.partialorder %v1511, 0.7853982
        %vm1513 = vcmp.lt.s32.totalorder %v1489, 0
        %v1514 = vand.u32 %v1489, 2139095040
        %v1515 = vshrl.u32 %v1514, 23
        %v1516 = vsub.s32 %v1515, 127
        %v1517 = vand.u32 2147483647, %v1489
        %v1518 = vand.u32 %v1517, 8388607
        %v1519 = vor.u32 %v1518, 8388608
        %v1520 = vsub.s32 0, %v1519
        %v1521 = vadd.s32 %v1516, 1
        %vm1522 = vcmp.gt.s32.totalorder %v1521, 0
        %v1523 = vsel %vm1522, %v1521, 0
        %v1524 = vshrl.u32 %v1523, 5
        %v1525 = vand.u32 %v1523, 31
        %v1526 = vsub.s32 32, %v1525
        %v1527 = vshrl.u32 683565275, %v1526
        %v1528 = vshll.u32 683565275, %v1525
        %v1529 = vshrl.u32 2475754826, %v1526
        %v1530 = vor.u32 %v1528, %v1529
        %v1531 = vshll.u32 2475754826, %v1525
        %v1532 = vshrl.u32 2131351028, %v1526
        %v1533 = vor.u32 %v1531, %v1532
        %v1534 = vshll.u32 2131351028, %v1525
        %v1535 = vshrl.u32 2102212464, %v1526
        %v1536 = vor.u32 %v1534, %v1535
        %v1537 = vshll.u32 2102212464, %v1525
        %v1538 = vshrl.u32 920167782, %v1526
        %v1539 = vor.u32 %v1537, %v1538
        %v1540 = vshll.u32 920167782, %v1525
        %v1541 = vshrl.u32 1326507024, %v1526
        %v1542 = vor.u32 %v1540, %v1541
        %vm1543 = vcmp.lt.s32.totalorder %v1524, 1
        %vm1544 = vcmp.lt.s32.totalorder %v1524, 2
        %vm1545 = vcmp.lt.s32.totalorder %v1524, 3
        %vm1546 = vcmp.lt.s32.totalorder %v1524, 4
        %v1547 = vsel %vm1543, %v1527, %v1530
        %v1548 = vsel %vm1546, %v1536, 2102212464
        %v1549 = vsel %vm1545, %v1533, %v1548
        %v1550 = vsel %vm1544, %v1547, %v1549
        %v1551 = vsel %vm1543, %v1530, %v1533
        %v1552 = vsel %vm1546, %v1539, 920167782
        %v1553 = vsel %vm1545, %v1536, %v1552
        %v1554 = vsel %vm1544, %v1551, %v1553
        %v1555 = vsel %vm1543, %v1533, %v1536
        %v1556 = vsel %vm1546, %v1542, 1326507024
        %v1557 = vsel %vm1545, %v1539, %v1556
        %v1558 = vsel %vm1544, %v1555, %v1557
        %v1559 = vshll.u32 %v1519, 8
        %v1560 = vmul.u32.u64.compose %v1559, %v1558
        %v1561 = vextract.low.u32 %v1560
        %v1562 = vextract.high.u32 %v1560
        %v1563 = vmul.u32.u64.compose %v1559, %v1554
        %v1564 = vextract.low.u32 %v1563
        %v1565 = vextract.high.u32 %v1563
        %v1566 = vmul.u32 %v1559, %v1550
        %v1567 = vadd.s32 %v1562, %v1564
        %vm1568 = vc.u32 %v1562, %v1564
        %v1569 = vadd.s32 %v1565, 1
        %v1570 = vsel %vm1568, %v1569, %v1565
        %v1571 = vadd.s32 %v1566, %v1570
        %v1572 = vadd.s32 %v1571, 536870912
        %v1573 = vshrl.u32 %v1572, 30
        %v1574 = vshll.u32 %v1573, 30
        %v1575 = vsub.s32 %v1571, %v1574
        %vm1576 = vcmp.lt.s32.totalorder %v1575, 0
        %v1577 = vsub.s32 0, %v1575
        %v1578 = vsel %vm1576, %v1577, %v1575
        %v1579 = vclz %v1578
        %v1580 = vsub.s32 %v1579, 2
        %vm1581 = vcmp.gt.s32.totalorder 0, %v1580
        %v1582 = vsel %vm1581, 0, %v1580
        %v1583 = vsub.s32 32, %v1582
        %v1584 = vshll.u32 %v1575, %v1582
        %v1585 = vshrl.u32 %v1567, %v1583
        %v1586 = vor.u32 %v1584, %v1585
        %v1587 = vsub.s32 4294967266, %v1582
        %v1588 = vadd.s32 %v1587, 127
        %v1589 = vshll.u32 %v1588, 23
        %v1590 = vor.u32 4788187, %v1589
        %v1591 = vand.u32 2147483647, %v1590
        %v1593 = vcvt.s32.f32 %v1586
        %v1594 = vmul.f32 %v1593, %v1591
        %v1595 = vxor.u32 %v1594, 2147483648
        %v1596 = vsel %vm1513, %v1595, %v1594
        %v1597 = vsub.s32 4, %v1573
        %v1598 = vsel %vm1513, %v1597, %v1573
        %v1599 = vsel %vm1512, %v1489, %v1596
        %v1600 = vsel %vm1512, 0, %v1598
        %v1601 = vcosq.f32.pop %v1599
        %v1602 = vsinq.f32.pop %v1599
        %vm1603 = vweird.f32 %v1489
        %v1604 = vadd.s32 %v1600, 3
        %v1605 = vand.u32 %v1604, 3
        %vm1606 = vcmp.lt.s32.totalorder %v1605, 2
        %vm1607 = vcmp.eq.s32.totalorder %v1605, 0
        %v1608 = vxor.u32 %v1602, 2147483648
        %v1609 = vsel %vm1607, %v1601, %v1608
        %vm1610 = vcmp.eq.s32.totalorder %v1605, 2
        %v1611 = vxor.u32 %v1601, 2147483648
        %v1612 = vsel %vm1610, %v1611, %v1602
        %v1613 = vsel %vm1606, %v1609, %v1612
        %v1614 = vsel %vm1603, nan, %v1613
        %v1615 = vand.u32 2147483647, %v1491
        %vm1616 = vcmp.le.f32.partialorder %v1615, 0.7853982
        %vm1617 = vcmp.lt.s32.totalorder %v1491, 0
        %v1618 = vand.u32 %v1491, 2139095040
        %v1619 = vshrl.u32 %v1618, 23
        %v1620 = vsub.s32 %v1619, 127
        %v1621 = vand.u32 2147483647, %v1491
        %v1622 = vand.u32 %v1621, 8388607
        %v1623 = vor.u32 %v1622, 8388608
        %v1624 = vsub.s32 0, %v1623
        %v1625 = vadd.s32 %v1620, 1
        %vm1626 = vcmp.gt.s32.totalorder %v1625, 0
        %v1627 = vsel %vm1626, %v1625, 0
        %v1628 = vshrl.u32 %v1627, 5
        %v1629 = vand.u32 %v1627, 31
        %v1630 = vsub.s32 32, %v1629
        %v1631 = vshrl.u32 683565275, %v1630
        %v1632 = vshll.u32 683565275, %v1629
        %v1633 = vshrl.u32 2475754826, %v1630
        %v1634 = vor.u32 %v1632, %v1633
        %v1635 = vshll.u32 2475754826, %v1629
        %v1636 = vshrl.u32 2131351028, %v1630
        %v1637 = vor.u32 %v1635, %v1636
        %v1638 = vshll.u32 2131351028, %v1629
        %v1639 = vshrl.u32 2102212464, %v1630
        %v1640 = vor.u32 %v1638, %v1639
        %v1641 = vshll.u32 2102212464, %v1629
        %v1642 = vshrl.u32 920167782, %v1630
        %v1643 = vor.u32 %v1641, %v1642
        %v1644 = vshll.u32 920167782, %v1629
        %v1645 = vshrl.u32 1326507024, %v1630
        %v1646 = vor.u32 %v1644, %v1645
        %vm1647 = vcmp.lt.s32.totalorder %v1628, 1
        %vm1648 = vcmp.lt.s32.totalorder %v1628, 2
        %vm1649 = vcmp.lt.s32.totalorder %v1628, 3
        %vm1650 = vcmp.lt.s32.totalorder %v1628, 4
        %v1651 = vsel %vm1647, %v1631, %v1634
        %v1652 = vsel %vm1650, %v1640, 2102212464
        %v1653 = vsel %vm1649, %v1637, %v1652
        %v1654 = vsel %vm1648, %v1651, %v1653
        %v1655 = vsel %vm1647, %v1634, %v1637
        %v1656 = vsel %vm1650, %v1643, 920167782
        %v1657 = vsel %vm1649, %v1640, %v1656
        %v1658 = vsel %vm1648, %v1655, %v1657
        %v1659 = vsel %vm1647, %v1637, %v1640
        %v1660 = vsel %vm1650, %v1646, 1326507024
        %v1661 = vsel %vm1649, %v1643, %v1660
        %v1662 = vsel %vm1648, %v1659, %v1661
        %v1663 = vshll.u32 %v1623, 8
        %v1664 = vmul.u32.u64.compose %v1663, %v1662
        %v1665 = vextract.low.u32 %v1664
        %v1666 = vextract.high.u32 %v1664
        %v1667 = vmul.u32.u64.compose %v1663, %v1658
        %v1668 = vextract.low.u32 %v1667
        %v1669 = vextract.high.u32 %v1667
        %v1670 = vmul.u32 %v1663, %v1654
        %v1671 = vadd.s32 %v1666, %v1668
        %vm1672 = vc.u32 %v1666, %v1668
        %v1673 = vadd.s32 %v1669, 1
        %v1674 = vsel %vm1672, %v1673, %v1669
        %v1675 = vadd.s32 %v1670, %v1674
        %v1676 = vadd.s32 %v1675, 536870912
        %v1677 = vshrl.u32 %v1676, 30
        %v1678 = vshll.u32 %v1677, 30
        %v1679 = vsub.s32 %v1675, %v1678
        %vm1680 = vcmp.lt.s32.totalorder %v1679, 0
        %v1681 = vsub.s32 0, %v1679
        %v1682 = vsel %vm1680, %v1681, %v1679
        %v1683 = vclz %v1682
        %v1684 = vsub.s32 %v1683, 2
        %vm1685 = vcmp.gt.s32.totalorder 0, %v1684
        %v1686 = vsel %vm1685, 0, %v1684
        %v1687 = vsub.s32 32, %v1686
        %v1688 = vshll.u32 %v1679, %v1686
        %v1689 = vshrl.u32 %v1671, %v1687
        %v1690 = vor.u32 %v1688, %v1689
        %v1691 = vsub.s32 4294967266, %v1686
        %v1692 = vadd.s32 %v1691, 127
        %v1693 = vshll.u32 %v1692, 23
        %v1694 = vor.u32 4788187, %v1693
        %v1695 = vand.u32 2147483647, %v1694
        %v1697 = vcvt.s32.f32 %v1690
        %v1698 = vmul.f32 %v1697, %v1695
        %v1699 = vxor.u32 %v1698, 2147483648
        %v1700 = vsel %vm1617, %v1699, %v1698
        %v1701 = vsub.s32 4, %v1677
        %v1702 = vsel %vm1617, %v1701, %v1677
        %v1703 = vsel %vm1616, %v1491, %v1700
        %v1704 = vsel %vm1616, 0, %v1702
        %v1705 = vcosq.f32.pop %v1703
        %v1706 = vsinq.f32.pop %v1703
        %vm1707 = vweird.f32 %v1491
        %v1708 = vadd.s32 %v1704, 3
        %v1709 = vand.u32 %v1708, 3
        %vm1710 = vcmp.lt.s32.totalorder %v1709, 2
        %vm1711 = vcmp.eq.s32.totalorder %v1709, 0
        %v1712 = vxor.u32 %v1706, 2147483648
        %v1713 = vsel %vm1711, %v1705, %v1712
        %vm1714 = vcmp.eq.s32.totalorder %v1709, 2
        %v1715 = vxor.u32 %v1705, 2147483648
        %v1716 = vsel %vm1714, %v1715, %v1706
        %v1717 = vsel %vm1710, %v1713, %v1716
        %v1718 = vsel %vm1707, nan, %v1717
        %v1719 = vand.u32 2147483647, %v1495
        %vm1720 = vcmp.le.f32.partialorder %v1719, 0.7853982
        %vm1721 = vcmp.lt.s32.totalorder %v1495, 0
        %v1722 = vand.u32 %v1495, 2139095040
        %v1723 = vshrl.u32 %v1722, 23
        %v1724 = vsub.s32 %v1723, 127
        %v1725 = vand.u32 2147483647, %v1495
        %v1726 = vand.u32 %v1725, 8388607
        %v1727 = vor.u32 %v1726, 8388608
        %v1728 = vsub.s32 0, %v1727
        %v1729 = vadd.s32 %v1724, 1
        %vm1730 = vcmp.gt.s32.totalorder %v1729, 0
        %v1731 = vsel %vm1730, %v1729, 0
        %v1732 = vshrl.u32 %v1731, 5
        %v1733 = vand.u32 %v1731, 31
        %v1734 = vsub.s32 32, %v1733
        %v1735 = vshrl.u32 683565275, %v1734
        %v1736 = vshll.u32 683565275, %v1733
        %v1737 = vshrl.u32 2475754826, %v1734
        %v1738 = vor.u32 %v1736, %v1737
        %v1739 = vshll.u32 2475754826, %v1733
        %v1740 = vshrl.u32 2131351028, %v1734
        %v1741 = vor.u32 %v1739, %v1740
        %v1742 = vshll.u32 2131351028, %v1733
        %v1743 = vshrl.u32 2102212464, %v1734
        %v1744 = vor.u32 %v1742, %v1743
        %v1745 = vshll.u32 2102212464, %v1733
        %v1746 = vshrl.u32 920167782, %v1734
        %v1747 = vor.u32 %v1745, %v1746
        %v1748 = vshll.u32 920167782, %v1733
        %v1749 = vshrl.u32 1326507024, %v1734
        %v1750 = vor.u32 %v1748, %v1749
        %vm1751 = vcmp.lt.s32.totalorder %v1732, 1
        %vm1752 = vcmp.lt.s32.totalorder %v1732, 2
        %vm1753 = vcmp.lt.s32.totalorder %v1732, 3
        %vm1754 = vcmp.lt.s32.totalorder %v1732, 4
        %v1755 = vsel %vm1751, %v1735, %v1738
        %v1756 = vsel %vm1754, %v1744, 2102212464
        %v1757 = vsel %vm1753, %v1741, %v1756
        %v1758 = vsel %vm1752, %v1755, %v1757
        %v1759 = vsel %vm1751, %v1738, %v1741
        %v1760 = vsel %vm1754, %v1747, 920167782
        %v1761 = vsel %vm1753, %v1744, %v1760
        %v1762 = vsel %vm1752, %v1759, %v1761
        %v1763 = vsel %vm1751, %v1741, %v1744
        %v1764 = vsel %vm1754, %v1750, 1326507024
        %v1765 = vsel %vm1753, %v1747, %v1764
        %v1766 = vsel %vm1752, %v1763, %v1765
        %v1767 = vshll.u32 %v1727, 8
        %v1768 = vmul.u32.u64.compose %v1767, %v1766
        %v1769 = vextract.low.u32 %v1768
        %v1770 = vextract.high.u32 %v1768
        %v1771 = vmul.u32.u64.compose %v1767, %v1762
        %v1772 = vextract.low.u32 %v1771
        %v1773 = vextract.high.u32 %v1771
        %v1774 = vmul.u32 %v1767, %v1758
        %v1775 = vadd.s32 %v1770, %v1772
        %vm1776 = vc.u32 %v1770, %v1772
        %v1777 = vadd.s32 %v1773, 1
        %v1778 = vsel %vm1776, %v1777, %v1773
        %v1779 = vadd.s32 %v1774, %v1778
        %v1780 = vadd.s32 %v1779, 536870912
        %v1781 = vshrl.u32 %v1780, 30
        %v1782 = vshll.u32 %v1781, 30
        %v1783 = vsub.s32 %v1779, %v1782
        %vm1784 = vcmp.lt.s32.totalorder %v1783, 0
        %v1785 = vsub.s32 0, %v1783
        %v1786 = vsel %vm1784, %v1785, %v1783
        %v1787 = vclz %v1786
        %v1788 = vsub.s32 %v1787, 2
        %vm1789 = vcmp.gt.s32.totalorder 0, %v1788
        %v1790 = vsel %vm1789, 0, %v1788
        %v1791 = vsub.s32 32, %v1790
        %v1792 = vshll.u32 %v1783, %v1790
        %v1793 = vshrl.u32 %v1775, %v1791
        %v1794 = vor.u32 %v1792, %v1793
        %v1795 = vsub.s32 4294967266, %v1790
        %v1796 = vadd.s32 %v1795, 127
        %v1797 = vshll.u32 %v1796, 23
        %v1798 = vor.u32 4788187, %v1797
        %v1799 = vand.u32 2147483647, %v1798
        %v1801 = vcvt.s32.f32 %v1794
        %v1802 = vmul.f32 %v1801, %v1799
        %v1803 = vxor.u32 %v1802, 2147483648
        %v1804 = vsel %vm1721, %v1803, %v1802
        %v1805 = vsub.s32 4, %v1781
        %v1806 = vsel %vm1721, %v1805, %v1781
        %v1807 = vsel %vm1720, %v1495, %v1804
        %v1808 = vsel %vm1720, 0, %v1806
        %v1809 = vcosq.f32.pop %v1807
        %v1810 = vsinq.f32.pop %v1807
        %vm1811 = vweird.f32 %v1495
        %v1812 = vadd.s32 %v1808, 3
        %v1813 = vand.u32 %v1812, 3
        %vm1814 = vcmp.lt.s32.totalorder %v1813, 2
        %vm1815 = vcmp.eq.s32.totalorder %v1813, 0
        %v1816 = vxor.u32 %v1810, 2147483648
        %v1817 = vsel %vm1815, %v1809, %v1816
        %vm1818 = vcmp.eq.s32.totalorder %v1813, 2
        %v1819 = vxor.u32 %v1809, 2147483648
        %v1820 = vsel %vm1818, %v1819, %v1810
        %v1821 = vsel %vm1814, %v1817, %v1820
        %v1822 = vsel %vm1811, nan, %v1821
        %v1823 = vand.u32 2147483647, %v1497
        %vm1824 = vcmp.le.f32.partialorder %v1823, 0.7853982
        %vm1825 = vcmp.lt.s32.totalorder %v1497, 0
        %v1826 = vand.u32 %v1497, 2139095040
        %v1827 = vshrl.u32 %v1826, 23
        %v1828 = vsub.s32 %v1827, 127
        %v1829 = vand.u32 2147483647, %v1497
        %v1830 = vand.u32 %v1829, 8388607
        %v1831 = vor.u32 %v1830, 8388608
        %v1832 = vsub.s32 0, %v1831
        %v1833 = vadd.s32 %v1828, 1
        %vm1834 = vcmp.gt.s32.totalorder %v1833, 0
        %v1835 = vsel %vm1834, %v1833, 0
        %v1836 = vshrl.u32 %v1835, 5
        %v1837 = vand.u32 %v1835, 31
        %v1838 = vsub.s32 32, %v1837
        %v1839 = vshrl.u32 683565275, %v1838
        %v1840 = vshll.u32 683565275, %v1837
        %v1841 = vshrl.u32 2475754826, %v1838
        %v1842 = vor.u32 %v1840, %v1841
        %v1843 = vshll.u32 2475754826, %v1837
        %v1844 = vshrl.u32 2131351028, %v1838
        %v1845 = vor.u32 %v1843, %v1844
        %v1846 = vshll.u32 2131351028, %v1837
        %v1847 = vshrl.u32 2102212464, %v1838
        %v1848 = vor.u32 %v1846, %v1847
        %v1849 = vshll.u32 2102212464, %v1837
        %v1850 = vshrl.u32 920167782, %v1838
        %v1851 = vor.u32 %v1849, %v1850
        %v1852 = vshll.u32 920167782, %v1837
        %v1853 = vshrl.u32 1326507024, %v1838
        %v1854 = vor.u32 %v1852, %v1853
        %vm1855 = vcmp.lt.s32.totalorder %v1836, 1
        %vm1856 = vcmp.lt.s32.totalorder %v1836, 2
        %vm1857 = vcmp.lt.s32.totalorder %v1836, 3
        %vm1858 = vcmp.lt.s32.totalorder %v1836, 4
        %v1859 = vsel %vm1855, %v1839, %v1842
        %v1860 = vsel %vm1858, %v1848, 2102212464
        %v1861 = vsel %vm1857, %v1845, %v1860
        %v1862 = vsel %vm1856, %v1859, %v1861
        %v1863 = vsel %vm1855, %v1842, %v1845
        %v1864 = vsel %vm1858, %v1851, 920167782
        %v1865 = vsel %vm1857, %v1848, %v1864
        %v1866 = vsel %vm1856, %v1863, %v1865
        %v1867 = vsel %vm1855, %v1845, %v1848
        %v1868 = vsel %vm1858, %v1854, 1326507024
        %v1869 = vsel %vm1857, %v1851, %v1868
        %v1870 = vsel %vm1856, %v1867, %v1869
        %v1871 = vshll.u32 %v1831, 8
        %v1872 = vmul.u32.u64.compose %v1871, %v1870
        %v1873 = vextract.low.u32 %v1872
        %v1874 = vextract.high.u32 %v1872
        %v1875 = vmul.u32.u64.compose %v1871, %v1866
        %v1876 = vextract.low.u32 %v1875
        %v1877 = vextract.high.u32 %v1875
        %v1878 = vmul.u32 %v1871, %v1862
        %v1879 = vadd.s32 %v1874, %v1876
        %vm1880 = vc.u32 %v1874, %v1876
        %v1881 = vadd.s32 %v1877, 1
        %v1882 = vsel %vm1880, %v1881, %v1877
        %v1883 = vadd.s32 %v1878, %v1882
        %v1884 = vadd.s32 %v1883, 536870912
        %v1885 = vshrl.u32 %v1884, 30
        %v1886 = vshll.u32 %v1885, 30
        %v1887 = vsub.s32 %v1883, %v1886
        %vm1888 = vcmp.lt.s32.totalorder %v1887, 0
        %v1889 = vsub.s32 0, %v1887
        %v1890 = vsel %vm1888, %v1889, %v1887
        %v1891 = vclz %v1890
        %v1892 = vsub.s32 %v1891, 2
        %vm1893 = vcmp.gt.s32.totalorder 0, %v1892
        %v1894 = vsel %vm1893, 0, %v1892
        %v1895 = vsub.s32 32, %v1894
        %v1896 = vshll.u32 %v1887, %v1894
        %v1897 = vshrl.u32 %v1879, %v1895
        %v1898 = vor.u32 %v1896, %v1897
        %v1899 = vsub.s32 4294967266, %v1894
        %v1900 = vadd.s32 %v1899, 127
        %v1901 = vshll.u32 %v1900, 23
        %v1902 = vor.u32 4788187, %v1901
        %v1903 = vand.u32 2147483647, %v1902
        %v1905 = vcvt.s32.f32 %v1898
        %v1906 = vmul.f32 %v1905, %v1903
        %v1907 = vxor.u32 %v1906, 2147483648
        %v1908 = vsel %vm1825, %v1907, %v1906
        %v1909 = vsub.s32 4, %v1885
        %v1910 = vsel %vm1825, %v1909, %v1885
        %v1911 = vsel %vm1824, %v1497, %v1908
        %v1912 = vsel %vm1824, 0, %v1910
        %v1913 = vcosq.f32.pop %v1911
        %v1914 = vsinq.f32.pop %v1911
        %vm1915 = vweird.f32 %v1497
        %v1916 = vadd.s32 %v1912, 3
        %v1917 = vand.u32 %v1916, 3
        %vm1918 = vcmp.lt.s32.totalorder %v1917, 2
        %vm1919 = vcmp.eq.s32.totalorder %v1917, 0
        %v1920 = vxor.u32 %v1914, 2147483648
        %v1921 = vsel %vm1919, %v1913, %v1920
        %vm1922 = vcmp.eq.s32.totalorder %v1917, 2
        %v1923 = vxor.u32 %v1913, 2147483648
        %v1924 = vsel %vm1922, %v1923, %v1914
        %v1925 = vsel %vm1918, %v1921, %v1924
        %v1926 = vsel %vm1915, nan, %v1925
        %v1927 = vand.u32 2147483647, %v1501
        %vm1928 = vcmp.le.f32.partialorder %v1927, 0.7853982
        %vm1929 = vcmp.lt.s32.totalorder %v1501, 0
        %v1930 = vand.u32 %v1501, 2139095040
        %v1931 = vshrl.u32 %v1930, 23
        %v1932 = vsub.s32 %v1931, 127
        %v1933 = vand.u32 2147483647, %v1501
        %v1934 = vand.u32 %v1933, 8388607
        %v1935 = vor.u32 %v1934, 8388608
        %v1936 = vsub.s32 0, %v1935
        %v1937 = vadd.s32 %v1932, 1
        %vm1938 = vcmp.gt.s32.totalorder %v1937, 0
        %v1939 = vsel %vm1938, %v1937, 0
        %v1940 = vshrl.u32 %v1939, 5
        %v1941 = vand.u32 %v1939, 31
        %v1942 = vsub.s32 32, %v1941
        %v1943 = vshrl.u32 683565275, %v1942
        %v1944 = vshll.u32 683565275, %v1941
        %v1945 = vshrl.u32 2475754826, %v1942
        %v1946 = vor.u32 %v1944, %v1945
        %v1947 = vshll.u32 2475754826, %v1941
        %v1948 = vshrl.u32 2131351028, %v1942
        %v1949 = vor.u32 %v1947, %v1948
        %v1950 = vshll.u32 2131351028, %v1941
        %v1951 = vshrl.u32 2102212464, %v1942
        %v1952 = vor.u32 %v1950, %v1951
        %v1953 = vshll.u32 2102212464, %v1941
        %v1954 = vshrl.u32 920167782, %v1942
        %v1955 = vor.u32 %v1953, %v1954
        %v1956 = vshll.u32 920167782, %v1941
        %v1957 = vshrl.u32 1326507024, %v1942
        %v1958 = vor.u32 %v1956, %v1957
        %vm1959 = vcmp.lt.s32.totalorder %v1940, 1
        %vm1960 = vcmp.lt.s32.totalorder %v1940, 2
        %vm1961 = vcmp.lt.s32.totalorder %v1940, 3
        %vm1962 = vcmp.lt.s32.totalorder %v1940, 4
        %v1963 = vsel %vm1959, %v1943, %v1946
        %v1964 = vsel %vm1962, %v1952, 2102212464
        %v1965 = vsel %vm1961, %v1949, %v1964
        %v1966 = vsel %vm1960, %v1963, %v1965
        %v1967 = vsel %vm1959, %v1946, %v1949
        %v1968 = vsel %vm1962, %v1955, 920167782
        %v1969 = vsel %vm1961, %v1952, %v1968
        %v1970 = vsel %vm1960, %v1967, %v1969
        %v1971 = vsel %vm1959, %v1949, %v1952
        %v1972 = vsel %vm1962, %v1958, 1326507024
        %v1973 = vsel %vm1961, %v1955, %v1972
        %v1974 = vsel %vm1960, %v1971, %v1973
        %v1975 = vshll.u32 %v1935, 8
        %v1976 = vmul.u32.u64.compose %v1975, %v1974
        %v1977 = vextract.low.u32 %v1976
        %v1978 = vextract.high.u32 %v1976
        %v1979 = vmul.u32.u64.compose %v1975, %v1970
        %v1980 = vextract.low.u32 %v1979
        %v1981 = vextract.high.u32 %v1979
        %v1982 = vmul.u32 %v1975, %v1966
        %v1983 = vadd.s32 %v1978, %v1980
        %vm1984 = vc.u32 %v1978, %v1980
        %v1985 = vadd.s32 %v1981, 1
        %v1986 = vsel %vm1984, %v1985, %v1981
        %v1987 = vadd.s32 %v1982, %v1986
        %v1988 = vadd.s32 %v1987, 536870912
        %v1989 = vshrl.u32 %v1988, 30
        %v1990 = vshll.u32 %v1989, 30
        %v1991 = vsub.s32 %v1987, %v1990
        %vm1992 = vcmp.lt.s32.totalorder %v1991, 0
        %v1993 = vsub.s32 0, %v1991
        %v1994 = vsel %vm1992, %v1993, %v1991
        %v1995 = vclz %v1994
        %v1996 = vsub.s32 %v1995, 2
        %vm1997 = vcmp.gt.s32.totalorder 0, %v1996
        %v1998 = vsel %vm1997, 0, %v1996
        %v1999 = vsub.s32 32, %v1998
        %v2000 = vshll.u32 %v1991, %v1998
        %v2001 = vshrl.u32 %v1983, %v1999
        %v2002 = vor.u32 %v2000, %v2001
        %v2003 = vsub.s32 4294967266, %v1998
        %v2004 = vadd.s32 %v2003, 127
        %v2005 = vshll.u32 %v2004, 23
        %v2006 = vor.u32 4788187, %v2005
        %v2007 = vand.u32 2147483647, %v2006
        %v2009 = vcvt.s32.f32 %v2002
        %v2010 = vmul.f32 %v2009, %v2007
        %v2011 = vxor.u32 %v2010, 2147483648
        %v2012 = vsel %vm1929, %v2011, %v2010
        %v2013 = vsub.s32 4, %v1989
        %v2014 = vsel %vm1929, %v2013, %v1989
        %v2015 = vsel %vm1928, %v1501, %v2012
        %v2016 = vsel %vm1928, 0, %v2014
        %v2017 = vcosq.f32.pop %v2015
        %v2018 = vsinq.f32.pop %v2015
        %vm2019 = vweird.f32 %v1501
        %v2020 = vadd.s32 %v2016, 3
        %v2021 = vand.u32 %v2020, 3
        %vm2022 = vcmp.lt.s32.totalorder %v2021, 2
        %vm2023 = vcmp.eq.s32.totalorder %v2021, 0
        %v2024 = vxor.u32 %v2018, 2147483648
        %v2025 = vsel %vm2023, %v2017, %v2024
        %vm2026 = vcmp.eq.s32.totalorder %v2021, 2
        %v2027 = vxor.u32 %v2017, 2147483648
        %v2028 = vsel %vm2026, %v2027, %v2018
        %v2029 = vsel %vm2022, %v2025, %v2028
        %v2030 = vsel %vm2019, nan, %v2029
        %v2031 = vand.u32 2147483647, %v1503
        %vm2032 = vcmp.le.f32.partialorder %v2031, 0.7853982
        %vm2033 = vcmp.lt.s32.totalorder %v1503, 0
        %v2034 = vand.u32 %v1503, 2139095040
        %v2035 = vshrl.u32 %v2034, 23
        %v2036 = vsub.s32 %v2035, 127
        %v2037 = vand.u32 2147483647, %v1503
        %v2038 = vand.u32 %v2037, 8388607
        %v2039 = vor.u32 %v2038, 8388608
        %v2040 = vsub.s32 0, %v2039
        %v2041 = vadd.s32 %v2036, 1
        %vm2042 = vcmp.gt.s32.totalorder %v2041, 0
        %v2043 = vsel %vm2042, %v2041, 0
        %v2044 = vshrl.u32 %v2043, 5
        %v2045 = vand.u32 %v2043, 31
        %v2046 = vsub.s32 32, %v2045
        %v2047 = vshrl.u32 683565275, %v2046
        %v2048 = vshll.u32 683565275, %v2045
        %v2049 = vshrl.u32 2475754826, %v2046
        %v2050 = vor.u32 %v2048, %v2049
        %v2051 = vshll.u32 2475754826, %v2045
        %v2052 = vshrl.u32 2131351028, %v2046
        %v2053 = vor.u32 %v2051, %v2052
        %v2054 = vshll.u32 2131351028, %v2045
        %v2055 = vshrl.u32 2102212464, %v2046
        %v2056 = vor.u32 %v2054, %v2055
        %v2057 = vshll.u32 2102212464, %v2045
        %v2058 = vshrl.u32 920167782, %v2046
        %v2059 = vor.u32 %v2057, %v2058
        %v2060 = vshll.u32 920167782, %v2045
        %v2061 = vshrl.u32 1326507024, %v2046
        %v2062 = vor.u32 %v2060, %v2061
        %vm2063 = vcmp.lt.s32.totalorder %v2044, 1
        %vm2064 = vcmp.lt.s32.totalorder %v2044, 2
        %vm2065 = vcmp.lt.s32.totalorder %v2044, 3
        %vm2066 = vcmp.lt.s32.totalorder %v2044, 4
        %v2067 = vsel %vm2063, %v2047, %v2050
        %v2068 = vsel %vm2066, %v2056, 2102212464
        %v2069 = vsel %vm2065, %v2053, %v2068
        %v2070 = vsel %vm2064, %v2067, %v2069
        %v2071 = vsel %vm2063, %v2050, %v2053
        %v2072 = vsel %vm2066, %v2059, 920167782
        %v2073 = vsel %vm2065, %v2056, %v2072
        %v2074 = vsel %vm2064, %v2071, %v2073
        %v2075 = vsel %vm2063, %v2053, %v2056
        %v2076 = vsel %vm2066, %v2062, 1326507024
        %v2077 = vsel %vm2065, %v2059, %v2076
        %v2078 = vsel %vm2064, %v2075, %v2077
        %v2079 = vshll.u32 %v2039, 8
        %v2080 = vmul.u32.u64.compose %v2079, %v2078
        %v2081 = vextract.low.u32 %v2080
        %v2082 = vextract.high.u32 %v2080
        %v2083 = vmul.u32.u64.compose %v2079, %v2074
        %v2084 = vextract.low.u32 %v2083
        %v2085 = vextract.high.u32 %v2083
        %v2086 = vmul.u32 %v2079, %v2070
        %v2087 = vadd.s32 %v2082, %v2084
        %vm2088 = vc.u32 %v2082, %v2084
        %v2089 = vadd.s32 %v2085, 1
        %v2090 = vsel %vm2088, %v2089, %v2085
        %v2091 = vadd.s32 %v2086, %v2090
        %v2092 = vadd.s32 %v2091, 536870912
        %v2093 = vshrl.u32 %v2092, 30
        %v2094 = vshll.u32 %v2093, 30
        %v2095 = vsub.s32 %v2091, %v2094
        %vm2096 = vcmp.lt.s32.totalorder %v2095, 0
        %v2097 = vsub.s32 0, %v2095
        %v2098 = vsel %vm2096, %v2097, %v2095
        %v2099 = vclz %v2098
        %v2100 = vsub.s32 %v2099, 2
        %vm2101 = vcmp.gt.s32.totalorder 0, %v2100
        %v2102 = vsel %vm2101, 0, %v2100
        %v2103 = vsub.s32 32, %v2102
        %v2104 = vshll.u32 %v2095, %v2102
        %v2105 = vshrl.u32 %v2087, %v2103
        %v2106 = vor.u32 %v2104, %v2105
        %v2107 = vsub.s32 4294967266, %v2102
        %v2108 = vadd.s32 %v2107, 127
        %v2109 = vshll.u32 %v2108, 23
        %v2110 = vor.u32 4788187, %v2109
        %v2111 = vand.u32 2147483647, %v2110
        %v2113 = vcvt.s32.f32 %v2106
        %v2114 = vmul.f32 %v2113, %v2111
        %v2115 = vxor.u32 %v2114, 2147483648
        %v2116 = vsel %vm2033, %v2115, %v2114
        %v2117 = vsub.s32 4, %v2093
        %v2118 = vsel %vm2033, %v2117, %v2093
        %v2119 = vsel %vm2032, %v1503, %v2116
        %v2120 = vsel %vm2032, 0, %v2118
        %v2121 = vcosq.f32.pop %v2119
        %v2122 = vsinq.f32.pop %v2119
        %vm2123 = vweird.f32 %v1503
        %v2124 = vadd.s32 %v2120, 3
        %v2125 = vand.u32 %v2124, 3
        %vm2126 = vcmp.lt.s32.totalorder %v2125, 2
        %vm2127 = vcmp.eq.s32.totalorder %v2125, 0
        %v2128 = vxor.u32 %v2122, 2147483648
        %v2129 = vsel %vm2127, %v2121, %v2128
        %vm2130 = vcmp.eq.s32.totalorder %v2125, 2
        %v2131 = vxor.u32 %v2121, 2147483648
        %v2132 = vsel %vm2130, %v2131, %v2122
        %v2133 = vsel %vm2126, %v2129, %v2132
        %v2134 = vsel %vm2123, nan, %v2133
        %v2135 = vand.u32 2147483647, %v1507
        %vm2136 = vcmp.le.f32.partialorder %v2135, 0.7853982
        %vm2137 = vcmp.lt.s32.totalorder %v1507, 0
        %v2138 = vand.u32 %v1507, 2139095040
        %v2139 = vshrl.u32 %v2138, 23
        %v2140 = vsub.s32 %v2139, 127
        %v2141 = vand.u32 2147483647, %v1507
        %v2142 = vand.u32 %v2141, 8388607
        %v2143 = vor.u32 %v2142, 8388608
        %v2144 = vsub.s32 0, %v2143
        %v2145 = vadd.s32 %v2140, 1
        %vm2146 = vcmp.gt.s32.totalorder %v2145, 0
        %v2147 = vsel %vm2146, %v2145, 0
        %v2148 = vshrl.u32 %v2147, 5
        %v2149 = vand.u32 %v2147, 31
        %v2150 = vsub.s32 32, %v2149
        %v2151 = vshrl.u32 683565275, %v2150
        %v2152 = vshll.u32 683565275, %v2149
        %v2153 = vshrl.u32 2475754826, %v2150
        %v2154 = vor.u32 %v2152, %v2153
        %v2155 = vshll.u32 2475754826, %v2149
        %v2156 = vshrl.u32 2131351028, %v2150
        %v2157 = vor.u32 %v2155, %v2156
        %v2158 = vshll.u32 2131351028, %v2149
        %v2159 = vshrl.u32 2102212464, %v2150
        %v2160 = vor.u32 %v2158, %v2159
        %v2161 = vshll.u32 2102212464, %v2149
        %v2162 = vshrl.u32 920167782, %v2150
        %v2163 = vor.u32 %v2161, %v2162
        %v2164 = vshll.u32 920167782, %v2149
        %v2165 = vshrl.u32 1326507024, %v2150
        %v2166 = vor.u32 %v2164, %v2165
        %vm2167 = vcmp.lt.s32.totalorder %v2148, 1
        %vm2168 = vcmp.lt.s32.totalorder %v2148, 2
        %vm2169 = vcmp.lt.s32.totalorder %v2148, 3
        %vm2170 = vcmp.lt.s32.totalorder %v2148, 4
        %v2171 = vsel %vm2167, %v2151, %v2154
        %v2172 = vsel %vm2170, %v2160, 2102212464
        %v2173 = vsel %vm2169, %v2157, %v2172
        %v2174 = vsel %vm2168, %v2171, %v2173
        %v2175 = vsel %vm2167, %v2154, %v2157
        %v2176 = vsel %vm2170, %v2163, 920167782
        %v2177 = vsel %vm2169, %v2160, %v2176
        %v2178 = vsel %vm2168, %v2175, %v2177
        %v2179 = vsel %vm2167, %v2157, %v2160
        %v2180 = vsel %vm2170, %v2166, 1326507024
        %v2181 = vsel %vm2169, %v2163, %v2180
        %v2182 = vsel %vm2168, %v2179, %v2181
        %v2183 = vshll.u32 %v2143, 8
        %v2184 = vmul.u32.u64.compose %v2183, %v2182
        %v2185 = vextract.low.u32 %v2184
        %v2186 = vextract.high.u32 %v2184
        %v2187 = vmul.u32.u64.compose %v2183, %v2178
        %v2188 = vextract.low.u32 %v2187
        %v2189 = vextract.high.u32 %v2187
        %v2190 = vmul.u32 %v2183, %v2174
        %v2191 = vadd.s32 %v2186, %v2188
        %vm2192 = vc.u32 %v2186, %v2188
        %v2193 = vadd.s32 %v2189, 1
        %v2194 = vsel %vm2192, %v2193, %v2189
        %v2195 = vadd.s32 %v2190, %v2194
        %v2196 = vadd.s32 %v2195, 536870912
        %v2197 = vshrl.u32 %v2196, 30
        %v2198 = vshll.u32 %v2197, 30
        %v2199 = vsub.s32 %v2195, %v2198
        %vm2200 = vcmp.lt.s32.totalorder %v2199, 0
        %v2201 = vsub.s32 0, %v2199
        %v2202 = vsel %vm2200, %v2201, %v2199
        %v2203 = vclz %v2202
        %v2204 = vsub.s32 %v2203, 2
        %vm2205 = vcmp.gt.s32.totalorder 0, %v2204
        %v2206 = vsel %vm2205, 0, %v2204
        %v2207 = vsub.s32 32, %v2206
        %v2208 = vshll.u32 %v2199, %v2206
        %v2209 = vshrl.u32 %v2191, %v2207
        %v2210 = vor.u32 %v2208, %v2209
        %v2211 = vsub.s32 4294967266, %v2206
        %v2212 = vadd.s32 %v2211, 127
        %v2213 = vshll.u32 %v2212, 23
        %v2214 = vor.u32 4788187, %v2213
        %v2215 = vand.u32 2147483647, %v2214
        %v2217 = vcvt.s32.f32 %v2210
        %v2218 = vmul.f32 %v2217, %v2215
        %v2219 = vxor.u32 %v2218, 2147483648
        %v2220 = vsel %vm2137, %v2219, %v2218
        %v2221 = vsub.s32 4, %v2197
        %v2222 = vsel %vm2137, %v2221, %v2197
        %v2223 = vsel %vm2136, %v1507, %v2220
        %v2224 = vsel %vm2136, 0, %v2222
        %v2225 = vcosq.f32.pop %v2223
        %v2226 = vsinq.f32.pop %v2223
        %vm2227 = vweird.f32 %v1507
        %v2228 = vadd.s32 %v2224, 3
        %v2229 = vand.u32 %v2228, 3
        %vm2230 = vcmp.lt.s32.totalorder %v2229, 2
        %vm2231 = vcmp.eq.s32.totalorder %v2229, 0
        %v2232 = vxor.u32 %v2226, 2147483648
        %v2233 = vsel %vm2231, %v2225, %v2232
        %vm2234 = vcmp.eq.s32.totalorder %v2229, 2
        %v2235 = vxor.u32 %v2225, 2147483648
        %v2236 = vsel %vm2234, %v2235, %v2226
        %v2237 = vsel %vm2230, %v2233, %v2236
        %v2238 = vsel %vm2227, nan, %v2237
        %v2239 = vand.u32 2147483647, %v1509
        %vm2240 = vcmp.le.f32.partialorder %v2239, 0.7853982
        %vm2241 = vcmp.lt.s32.totalorder %v1509, 0
        %v2242 = vand.u32 %v1509, 2139095040
        %v2243 = vshrl.u32 %v2242, 23
        %v2244 = vsub.s32 %v2243, 127
        %v2245 = vand.u32 2147483647, %v1509
        %v2246 = vand.u32 %v2245, 8388607
        %v2247 = vor.u32 %v2246, 8388608
        %v2248 = vsub.s32 0, %v2247
        %v2249 = vadd.s32 %v2244, 1
        %vm2250 = vcmp.gt.s32.totalorder %v2249, 0
        %v2251 = vsel %vm2250, %v2249, 0
        %v2252 = vshrl.u32 %v2251, 5
        %v2253 = vand.u32 %v2251, 31
        %v2254 = vsub.s32 32, %v2253
        %v2255 = vshrl.u32 683565275, %v2254
        %v2256 = vshll.u32 683565275, %v2253
        %v2257 = vshrl.u32 2475754826, %v2254
        %v2258 = vor.u32 %v2256, %v2257
        %v2259 = vshll.u32 2475754826, %v2253
        %v2260 = vshrl.u32 2131351028, %v2254
        %v2261 = vor.u32 %v2259, %v2260
        %v2262 = vshll.u32 2131351028, %v2253
        %v2263 = vshrl.u32 2102212464, %v2254
        %v2264 = vor.u32 %v2262, %v2263
        %v2265 = vshll.u32 2102212464, %v2253
        %v2266 = vshrl.u32 920167782, %v2254
        %v2267 = vor.u32 %v2265, %v2266
        %v2268 = vshll.u32 920167782, %v2253
        %v2269 = vshrl.u32 1326507024, %v2254
        %v2270 = vor.u32 %v2268, %v2269
        %vm2271 = vcmp.lt.s32.totalorder %v2252, 1
        %vm2272 = vcmp.lt.s32.totalorder %v2252, 2
        %vm2273 = vcmp.lt.s32.totalorder %v2252, 3
        %vm2274 = vcmp.lt.s32.totalorder %v2252, 4
        %v2275 = vsel %vm2271, %v2255, %v2258
        %v2276 = vsel %vm2274, %v2264, 2102212464
        %v2277 = vsel %vm2273, %v2261, %v2276
        %v2278 = vsel %vm2272, %v2275, %v2277
        %v2279 = vsel %vm2271, %v2258, %v2261
        %v2280 = vsel %vm2274, %v2267, 920167782
        %v2281 = vsel %vm2273, %v2264, %v2280
        %v2282 = vsel %vm2272, %v2279, %v2281
        %v2283 = vsel %vm2271, %v2261, %v2264
        %v2284 = vsel %vm2274, %v2270, 1326507024
        %v2285 = vsel %vm2273, %v2267, %v2284
        %v2286 = vsel %vm2272, %v2283, %v2285
        %v2287 = vshll.u32 %v2247, 8
        %v2288 = vmul.u32.u64.compose %v2287, %v2286
        %v2289 = vextract.low.u32 %v2288
        %v2290 = vextract.high.u32 %v2288
        %v2291 = vmul.u32.u64.compose %v2287, %v2282
        %v2292 = vextract.low.u32 %v2291
        %v2293 = vextract.high.u32 %v2291
        %v2294 = vmul.u32 %v2287, %v2278
        %v2295 = vadd.s32 %v2290, %v2292
        %vm2296 = vc.u32 %v2290, %v2292
        %v2297 = vadd.s32 %v2293, 1
        %v2298 = vsel %vm2296, %v2297, %v2293
        %v2299 = vadd.s32 %v2294, %v2298
        %v2300 = vadd.s32 %v2299, 536870912
        %v2301 = vshrl.u32 %v2300, 30
        %v2302 = vshll.u32 %v2301, 30
        %v2303 = vsub.s32 %v2299, %v2302
        %vm2304 = vcmp.lt.s32.totalorder %v2303, 0
        %v2305 = vsub.s32 0, %v2303
        %v2306 = vsel %vm2304, %v2305, %v2303
        %v2307 = vclz %v2306
        %v2308 = vsub.s32 %v2307, 2
        %vm2309 = vcmp.gt.s32.totalorder 0, %v2308
        %v2310 = vsel %vm2309, 0, %v2308
        %v2311 = vsub.s32 32, %v2310
        %v2312 = vshll.u32 %v2303, %v2310
        %v2313 = vshrl.u32 %v2295, %v2311
        %v2314 = vor.u32 %v2312, %v2313
        %v2315 = vsub.s32 4294967266, %v2310
        %v2316 = vadd.s32 %v2315, 127
        %v2317 = vshll.u32 %v2316, 23
        %v2318 = vor.u32 4788187, %v2317
        %v2319 = vand.u32 2147483647, %v2318
        %v2321 = vcvt.s32.f32 %v2314
        %v2322 = vmul.f32 %v2321, %v2319
        %v2323 = vxor.u32 %v2322, 2147483648
        %v2324 = vsel %vm2241, %v2323, %v2322
        %v2325 = vsub.s32 4, %v2301
        %v2326 = vsel %vm2241, %v2325, %v2301
        %v2327 = vsel %vm2240, %v1509, %v2324
        %v2328 = vsel %vm2240, 0, %v2326
        %v2329 = vcosq.f32.pop %v2327
        %v2330 = vsinq.f32.pop %v2327
        %vm2331 = vweird.f32 %v1509
        %v2332 = vadd.s32 %v2328, 3
        %v2333 = vand.u32 %v2332, 3
        %vm2334 = vcmp.lt.s32.totalorder %v2333, 2
        %vm2335 = vcmp.eq.s32.totalorder %v2333, 0
        %v2336 = vxor.u32 %v2330, 2147483648
        %v2337 = vsel %vm2335, %v2329, %v2336
        %vm2338 = vcmp.eq.s32.totalorder %v2333, 2
        %v2339 = vxor.u32 %v2329, 2147483648
        %v2340 = vsel %vm2338, %v2339, %v2330
        %v2341 = vsel %vm2334, %v2337, %v2340
        %v2342 = vsel %vm2331, nan, %v2341
        %v2343 = vadd.f32 %v1614, %v415
        %v2344 = vadd.f32 %v1718, %v416
        %v2345 = vadd.f32 %v1822, %v417
        %v2346 = vadd.f32 %v1926, %v418
        %v2347 = vadd.f32 %v2030, 0.0
        %v2348 = vadd.f32 %v2134, 0.0
        %v2349 = vadd.f32 %v2238, 0.0
        %v2350 = vadd.f32 %v2342, 0.0
        %v2351 = vld [vmem:[%s5] sm:$0xff]
        %v2352 = vld [vmem:[%s5 + $0x8] sm:$0xff]
        %v2353 = vld [vmem:[%s5 + $0x10] sm:$0xff]
        %v2354 = vld [vmem:[%s5 + $0x18] sm:$0xff]
        %v2355 = vld [vmem:[%s6] sm:$0xff]
        %v2356 = vld [vmem:[%s6 + $0x8] sm:$0xff]
        %v2357 = vld [vmem:[%s6 + $0x10] sm:$0xff]
        %v2358 = vld [vmem:[%s6 + $0x18] sm:$0xff]
        %v2359 = vld [vmem:[%s7] sm:$0xff]
        %v2360 = vld [vmem:[%s7 + $0x8] sm:$0xff]
        %v2361 = vld [vmem:[%s7 + $0x10] sm:$0xff]
        %v2362 = vld [vmem:[%s7 + $0x18] sm:$0xff]
        %v2363 = vld [vmem:[%s8] sm:$0xff]
        %v2364 = vld [vmem:[%s8 + $0x8] sm:$0xff]
        %v2365 = vld [vmem:[%s8 + $0x10] sm:$0xff]
        %v2366 = vld [vmem:[%s8 + $0x18] sm:$0xff]
        %2368 = vset.pattern.permute.xlu0 0
        %2369 = vperm.xlu0 %2368, %v2355
        %v2370 = vpop.permute.xlu0 %2369
        %2373 = vset.pattern.permute.xlu0 0
        %2374 = vperm.xlu0 %2373, %v2356
        %v2375 = vpop.permute.xlu0 %2374
        %2378 = vset.pattern.permute.xlu0 0
        %2379 = vperm.xlu0 %2378, %v2357
        %v2380 = vpop.permute.xlu0 %2379
        %2383 = vset.pattern.permute.xlu0 0
        %2384 = vperm.xlu0 %2383, %v2358
        %v2385 = vpop.permute.xlu0 %2384
        %v2388 = vsel %vm1409, %v2351, 0
        %v2391 = vsel %vm1409, %v2352, 0
        %v2394 = vsel %vm1409, %v2353, 0
        %v2397 = vsel %vm1409, %v2354, 0
        %2399 = vmatprep.subr.mxu0 %v2344
        %2400 = vmatpush1.msra.mxu0 %v2343
        %2401 = vmatprep.subr.mxu0 %v2346
        %2402 = vmatpush1.msra.mxu0 %v2345
        %2403 = vmatprep.subr.mxu0 %v2348
        %2404 = vmatpush1.msra.mxu0 %v2347
        %2405 = vmatprep.subr.mxu0 %v2350
        %2406 = vmatpush1.msra.mxu0 %v2349
        %2407 = vmatprep.subr.mxu0 0.0
        %2408 = vmatpush1.msra.mxu0 0.0
        %2409 = vmatprep.subr.mxu0 0.0
        %2410 = vmatpush1.msra.mxu0 0.0
        %2411 = vmatprep.subr.mxu0 0.0
        %2412 = vmatpush1.msra.mxu0 0.0
        %2413 = vmatprep.subr.mxu0 0.0
        %2414 = vmatpush1.msra.mxu0 0.0
        %2415 = vmatprep.subr.mxu0 0.0
        %2416 = vmatpush1.msra.mxu0 0.0
        %2417 = vmatprep.subr.mxu0 0.0
        %2418 = vmatpush1.msra.mxu0 0.0
        %2419 = vmatprep.subr.mxu0 0.0
        %2420 = vmatpush1.msra.mxu0 0.0
        %2421 = vmatprep.subr.mxu0 0.0
        %2422 = vmatpush1.msra.mxu0 0.0
        %2423 = vmatprep.subr.mxu0 0.0
        %2424 = vmatpush1.msra.mxu0 0.0
        %2425 = vmatprep.subr.mxu0 0.0
        %2426 = vmatpush1.msra.mxu0 0.0
        %2427 = vmatprep.subr.mxu0 0.0
        %2428 = vmatpush1.msra.mxu0 0.0
        %2429 = vmatprep.subr.mxu0 0.0
        %2430 = vmatpush1.msra.mxu0 0.0
        %2431 = vmatprep.subr.mxu0 0.0
        %2432 = vmatpush1.msra.mxu0 0.0
        %2433 = vmatprep.subr.mxu0 0.0
        %2434 = vmatpush1.msra.mxu0 0.0
        %2435 = vmatprep.subr.mxu0 0.0
        %2436 = vmatpush1.msra.mxu0 0.0
        %2437 = vmatprep.subr.mxu0 0.0
        %2438 = vmatpush1.msra.mxu0 0.0
        %2439 = vmatprep.subr.mxu0 0.0
        %2440 = vmatpush1.msra.mxu0 0.0
        %2441 = vmatprep.subr.mxu0 0.0
        %2442 = vmatpush1.msra.mxu0 0.0
        %2443 = vmatprep.subr.mxu0 0.0
        %2444 = vmatpush1.msra.mxu0 0.0
        %2445 = vmatprep.subr.mxu0 0.0
        %2446 = vmatpush1.msra.mxu0 0.0
        %2447 = vmatprep.subr.mxu0 0.0
        %2448 = vmatpush1.msra.mxu0 0.0
        %2449 = vmatprep.subr.mxu0 0.0
        %2450 = vmatpush1.msra.mxu0 0.0
        %2451 = vmatprep.subr.mxu0 0.0
        %2452 = vmatpush1.msra.mxu0 0.0
        %2453 = vmatprep.subr.mxu0 0.0
        %2454 = vmatpush1.msra.mxu0 0.0
        %2455 = vmatprep.subr.mxu0 0.0
        %2456 = vmatpush1.msra.mxu0 0.0
        %2457 = vmatprep.subr.mxu0 0.0
        %2458 = vmatpush1.msra.mxu0 0.0
        %2459 = vmatprep.subr.mxu0 0.0
        %2460 = vmatpush1.msra.mxu0 0.0
        %2461 = vmatprep.subr.mxu0 0.0
        %2462 = vmatpush1.msra.mxu0 0.0
        %2463 = vmatprep.mubr.f32.mxu0 0.0
        %2464 = vmatmul.mubr.f32.gmra.mrb[0].mxu0 %v2388
        %v2465 = vpop.f32.mrb[0].mxu0
        %v2466 = vadd.f32 %v2370, %v2465
        %v2467 = vpop.f32.mrb[0].mxu0
        %v2468 = vadd.f32 %v2370, %v2467
        %2469 = vmatprep.mubr.f32.mxu0 0.0
        %2470 = vmatmul.mubr.f32.gmra.mrb[0].mxu0 %v2391
        %v2471 = vpop.f32.mrb[0].mxu0
        %v2472 = vadd.f32 %v2375, %v2471
        %v2473 = vpop.f32.mrb[0].mxu0
        %v2474 = vadd.f32 %v2375, %v2473
        %2475 = vmatprep.mubr.f32.mxu0 0.0
        %2476 = vmatmul.mubr.f32.gmra.mrb[0].mxu0 %v2394
        %v2477 = vpop.f32.mrb[0].mxu0
        %v2478 = vadd.f32 %v2380, %v2477
        %v2479 = vpop.f32.mrb[0].mxu0
        %v2480 = vadd.f32 %v2380, %v2479
        %2481 = vmatprep.mubr.f32.mxu0 0.0
        %2482 = vmatmul.mubr.f32.gmra.mrb[0].mxu0 %v2397
        %v2483 = vpop.f32.mrb[0].mxu0
        %v2484 = vadd.f32 %v2385, %v2483
        %v2485 = vpop.f32.mrb[0].mxu0
        %v2486 = vadd.f32 %v2385, %v2485
        %2487 = vdwg.mxu0
        %v2488 = vand.u32 2147483647, %v2466
        %vm2489 = vcmp.le.f32.partialorder %v2488, 0.7853982
        %vm2490 = vcmp.lt.s32.totalorder %v2466, 0
        %v2491 = vand.u32 %v2466, 2139095040
        %v2492 = vshrl.u32 %v2491, 23
        %v2493 = vsub.s32 %v2492, 127
        %v2494 = vand.u32 2147483647, %v2466
        %v2495 = vand.u32 %v2494, 8388607
        %v2496 = vor.u32 %v2495, 8388608
        %v2497 = vsub.s32 0, %v2496
        %v2498 = vadd.s32 %v2493, 1
        %vm2499 = vcmp.gt.s32.totalorder %v2498, 0
        %v2500 = vsel %vm2499, %v2498, 0
        %v2501 = vshrl.u32 %v2500, 5
        %v2502 = vand.u32 %v2500, 31
        %v2503 = vsub.s32 32, %v2502
        %v2504 = vshrl.u32 683565275, %v2503
        %v2505 = vshll.u32 683565275, %v2502
        %v2506 = vshrl.u32 2475754826, %v2503
        %v2507 = vor.u32 %v2505, %v2506
        %v2508 = vshll.u32 2475754826, %v2502
        %v2509 = vshrl.u32 2131351028, %v2503
        %v2510 = vor.u32 %v2508, %v2509
        %v2511 = vshll.u32 2131351028, %v2502
        %v2512 = vshrl.u32 2102212464, %v2503
        %v2513 = vor.u32 %v2511, %v2512
        %v2514 = vshll.u32 2102212464, %v2502
        %v2515 = vshrl.u32 920167782, %v2503
        %v2516 = vor.u32 %v2514, %v2515
        %v2517 = vshll.u32 920167782, %v2502
        %v2518 = vshrl.u32 1326507024, %v2503
        %v2519 = vor.u32 %v2517, %v2518
        %vm2520 = vcmp.lt.s32.totalorder %v2501, 1
        %vm2521 = vcmp.lt.s32.totalorder %v2501, 2
        %vm2522 = vcmp.lt.s32.totalorder %v2501, 3
        %vm2523 = vcmp.lt.s32.totalorder %v2501, 4
        %v2524 = vsel %vm2520, %v2504, %v2507
        %v2525 = vsel %vm2523, %v2513, 2102212464
        %v2526 = vsel %vm2522, %v2510, %v2525
        %v2527 = vsel %vm2521, %v2524, %v2526
        %v2528 = vsel %vm2520, %v2507, %v2510
        %v2529 = vsel %vm2523, %v2516, 920167782
        %v2530 = vsel %vm2522, %v2513, %v2529
        %v2531 = vsel %vm2521, %v2528, %v2530
        %v2532 = vsel %vm2520, %v2510, %v2513
        %v2533 = vsel %vm2523, %v2519, 1326507024
        %v2534 = vsel %vm2522, %v2516, %v2533
        %v2535 = vsel %vm2521, %v2532, %v2534
        %v2536 = vshll.u32 %v2496, 8
        %v2537 = vmul.u32.u64.compose %v2536, %v2535
        %v2538 = vextract.low.u32 %v2537
        %v2539 = vextract.high.u32 %v2537
        %v2540 = vmul.u32.u64.compose %v2536, %v2531
        %v2541 = vextract.low.u32 %v2540
        %v2542 = vextract.high.u32 %v2540
        %v2543 = vmul.u32 %v2536, %v2527
        %v2544 = vadd.s32 %v2539, %v2541
        %vm2545 = vc.u32 %v2539, %v2541
        %v2546 = vadd.s32 %v2542, 1
        %v2547 = vsel %vm2545, %v2546, %v2542
        %v2548 = vadd.s32 %v2543, %v2547
        %v2549 = vadd.s32 %v2548, 536870912
        %v2550 = vshrl.u32 %v2549, 30
        %v2551 = vshll.u32 %v2550, 30
        %v2552 = vsub.s32 %v2548, %v2551
        %vm2553 = vcmp.lt.s32.totalorder %v2552, 0
        %v2554 = vsub.s32 0, %v2552
        %v2555 = vsel %vm2553, %v2554, %v2552
        %v2556 = vclz %v2555
        %v2557 = vsub.s32 %v2556, 2
        %vm2558 = vcmp.gt.s32.totalorder 0, %v2557
        %v2559 = vsel %vm2558, 0, %v2557
        %v2560 = vsub.s32 32, %v2559
        %v2561 = vshll.u32 %v2552, %v2559
        %v2562 = vshrl.u32 %v2544, %v2560
        %v2563 = vor.u32 %v2561, %v2562
        %v2564 = vsub.s32 4294967266, %v2559
        %v2565 = vadd.s32 %v2564, 127
        %v2566 = vshll.u32 %v2565, 23
        %v2567 = vor.u32 4788187, %v2566
        %v2568 = vand.u32 2147483647, %v2567
        %v2570 = vcvt.s32.f32 %v2563
        %v2571 = vmul.f32 %v2570, %v2568
        %v2572 = vxor.u32 %v2571, 2147483648
        %v2573 = vsel %vm2490, %v2572, %v2571
        %v2574 = vsub.s32 4, %v2550
        %v2575 = vsel %vm2490, %v2574, %v2550
        %v2576 = vsel %vm2489, %v2466, %v2573
        %v2577 = vsel %vm2489, 0, %v2575
        %v2578 = vcosq.f32.pop %v2576
        %v2579 = vsinq.f32.pop %v2576
        %vm2580 = vweird.f32 %v2466
        %v2581 = vadd.s32 %v2577, 3
        %v2582 = vand.u32 %v2581, 3
        %vm2583 = vcmp.lt.s32.totalorder %v2582, 2
        %vm2584 = vcmp.eq.s32.totalorder %v2582, 0
        %v2585 = vxor.u32 %v2579, 2147483648
        %v2586 = vsel %vm2584, %v2578, %v2585
        %vm2587 = vcmp.eq.s32.totalorder %v2582, 2
        %v2588 = vxor.u32 %v2578, 2147483648
        %v2589 = vsel %vm2587, %v2588, %v2579
        %v2590 = vsel %vm2583, %v2586, %v2589
        %v2591 = vsel %vm2580, nan, %v2590
        %v2592 = vand.u32 2147483647, %v2468
        %vm2593 = vcmp.le.f32.partialorder %v2592, 0.7853982
        %vm2594 = vcmp.lt.s32.totalorder %v2468, 0
        %v2595 = vand.u32 %v2468, 2139095040
        %v2596 = vshrl.u32 %v2595, 23
        %v2597 = vsub.s32 %v2596, 127
        %v2598 = vand.u32 2147483647, %v2468
        %v2599 = vand.u32 %v2598, 8388607
        %v2600 = vor.u32 %v2599, 8388608
        %v2601 = vsub.s32 0, %v2600
        %v2602 = vadd.s32 %v2597, 1
        %vm2603 = vcmp.gt.s32.totalorder %v2602, 0
        %v2604 = vsel %vm2603, %v2602, 0
        %v2605 = vshrl.u32 %v2604, 5
        %v2606 = vand.u32 %v2604, 31
        %v2607 = vsub.s32 32, %v2606
        %v2608 = vshrl.u32 683565275, %v2607
        %v2609 = vshll.u32 683565275, %v2606
        %v2610 = vshrl.u32 2475754826, %v2607
        %v2611 = vor.u32 %v2609, %v2610
        %v2612 = vshll.u32 2475754826, %v2606
        %v2613 = vshrl.u32 2131351028, %v2607
        %v2614 = vor.u32 %v2612, %v2613
        %v2615 = vshll.u32 2131351028, %v2606
        %v2616 = vshrl.u32 2102212464, %v2607
        %v2617 = vor.u32 %v2615, %v2616
        %v2618 = vshll.u32 2102212464, %v2606
        %v2619 = vshrl.u32 920167782, %v2607
        %v2620 = vor.u32 %v2618, %v2619
        %v2621 = vshll.u32 920167782, %v2606
        %v2622 = vshrl.u32 1326507024, %v2607
        %v2623 = vor.u32 %v2621, %v2622
        %vm2624 = vcmp.lt.s32.totalorder %v2605, 1
        %vm2625 = vcmp.lt.s32.totalorder %v2605, 2
        %vm2626 = vcmp.lt.s32.totalorder %v2605, 3
        %vm2627 = vcmp.lt.s32.totalorder %v2605, 4
        %v2628 = vsel %vm2624, %v2608, %v2611
        %v2629 = vsel %vm2627, %v2617, 2102212464
        %v2630 = vsel %vm2626, %v2614, %v2629
        %v2631 = vsel %vm2625, %v2628, %v2630
        %v2632 = vsel %vm2624, %v2611, %v2614
        %v2633 = vsel %vm2627, %v2620, 920167782
        %v2634 = vsel %vm2626, %v2617, %v2633
        %v2635 = vsel %vm2625, %v2632, %v2634
        %v2636 = vsel %vm2624, %v2614, %v2617
        %v2637 = vsel %vm2627, %v2623, 1326507024
        %v2638 = vsel %vm2626, %v2620, %v2637
        %v2639 = vsel %vm2625, %v2636, %v2638
        %v2640 = vshll.u32 %v2600, 8
        %v2641 = vmul.u32.u64.compose %v2640, %v2639
        %v2642 = vextract.low.u32 %v2641
        %v2643 = vextract.high.u32 %v2641
        %v2644 = vmul.u32.u64.compose %v2640, %v2635
        %v2645 = vextract.low.u32 %v2644
        %v2646 = vextract.high.u32 %v2644
        %v2647 = vmul.u32 %v2640, %v2631
        %v2648 = vadd.s32 %v2643, %v2645
        %vm2649 = vc.u32 %v2643, %v2645
        %v2650 = vadd.s32 %v2646, 1
        %v2651 = vsel %vm2649, %v2650, %v2646
        %v2652 = vadd.s32 %v2647, %v2651
        %v2653 = vadd.s32 %v2652, 536870912
        %v2654 = vshrl.u32 %v2653, 30
        %v2655 = vshll.u32 %v2654, 30
        %v2656 = vsub.s32 %v2652, %v2655
        %vm2657 = vcmp.lt.s32.totalorder %v2656, 0
        %v2658 = vsub.s32 0, %v2656
        %v2659 = vsel %vm2657, %v2658, %v2656
        %v2660 = vclz %v2659
        %v2661 = vsub.s32 %v2660, 2
        %vm2662 = vcmp.gt.s32.totalorder 0, %v2661
        %v2663 = vsel %vm2662, 0, %v2661
        %v2664 = vsub.s32 32, %v2663
        %v2665 = vshll.u32 %v2656, %v2663
        %v2666 = vshrl.u32 %v2648, %v2664
        %v2667 = vor.u32 %v2665, %v2666
        %v2668 = vsub.s32 4294967266, %v2663
        %v2669 = vadd.s32 %v2668, 127
        %v2670 = vshll.u32 %v2669, 23
        %v2671 = vor.u32 4788187, %v2670
        %v2672 = vand.u32 2147483647, %v2671
        %v2674 = vcvt.s32.f32 %v2667
        %v2675 = vmul.f32 %v2674, %v2672
        %v2676 = vxor.u32 %v2675, 2147483648
        %v2677 = vsel %vm2594, %v2676, %v2675
        %v2678 = vsub.s32 4, %v2654
        %v2679 = vsel %vm2594, %v2678, %v2654
        %v2680 = vsel %vm2593, %v2468, %v2677
        %v2681 = vsel %vm2593, 0, %v2679
        %v2682 = vcosq.f32.pop %v2680
        %v2683 = vsinq.f32.pop %v2680
        %vm2684 = vweird.f32 %v2468
        %v2685 = vadd.s32 %v2681, 3
        %v2686 = vand.u32 %v2685, 3
        %vm2687 = vcmp.lt.s32.totalorder %v2686, 2
        %vm2688 = vcmp.eq.s32.totalorder %v2686, 0
        %v2689 = vxor.u32 %v2683, 2147483648
        %v2690 = vsel %vm2688, %v2682, %v2689
        %vm2691 = vcmp.eq.s32.totalorder %v2686, 2
        %v2692 = vxor.u32 %v2682, 2147483648
        %v2693 = vsel %vm2691, %v2692, %v2683
        %v2694 = vsel %vm2687, %v2690, %v2693
        %v2695 = vsel %vm2684, nan, %v2694
        %v2696 = vand.u32 2147483647, %v2472
        %vm2697 = vcmp.le.f32.partialorder %v2696, 0.7853982
        %vm2698 = vcmp.lt.s32.totalorder %v2472, 0
        %v2699 = vand.u32 %v2472, 2139095040
        %v2700 = vshrl.u32 %v2699, 23
        %v2701 = vsub.s32 %v2700, 127
        %v2702 = vand.u32 2147483647, %v2472
        %v2703 = vand.u32 %v2702, 8388607
        %v2704 = vor.u32 %v2703, 8388608
        %v2705 = vsub.s32 0, %v2704
        %v2706 = vadd.s32 %v2701, 1
        %vm2707 = vcmp.gt.s32.totalorder %v2706, 0
        %v2708 = vsel %vm2707, %v2706, 0
        %v2709 = vshrl.u32 %v2708, 5
        %v2710 = vand.u32 %v2708, 31
        %v2711 = vsub.s32 32, %v2710
        %v2712 = vshrl.u32 683565275, %v2711
        %v2713 = vshll.u32 683565275, %v2710
        %v2714 = vshrl.u32 2475754826, %v2711
        %v2715 = vor.u32 %v2713, %v2714
        %v2716 = vshll.u32 2475754826, %v2710
        %v2717 = vshrl.u32 2131351028, %v2711
        %v2718 = vor.u32 %v2716, %v2717
        %v2719 = vshll.u32 2131351028, %v2710
        %v2720 = vshrl.u32 2102212464, %v2711
        %v2721 = vor.u32 %v2719, %v2720
        %v2722 = vshll.u32 2102212464, %v2710
        %v2723 = vshrl.u32 920167782, %v2711
        %v2724 = vor.u32 %v2722, %v2723
        %v2725 = vshll.u32 920167782, %v2710
        %v2726 = vshrl.u32 1326507024, %v2711
        %v2727 = vor.u32 %v2725, %v2726
        %vm2728 = vcmp.lt.s32.totalorder %v2709, 1
        %vm2729 = vcmp.lt.s32.totalorder %v2709, 2
        %vm2730 = vcmp.lt.s32.totalorder %v2709, 3
        %vm2731 = vcmp.lt.s32.totalorder %v2709, 4
        %v2732 = vsel %vm2728, %v2712, %v2715
        %v2733 = vsel %vm2731, %v2721, 2102212464
        %v2734 = vsel %vm2730, %v2718, %v2733
        %v2735 = vsel %vm2729, %v2732, %v2734
        %v2736 = vsel %vm2728, %v2715, %v2718
        %v2737 = vsel %vm2731, %v2724, 920167782
        %v2738 = vsel %vm2730, %v2721, %v2737
        %v2739 = vsel %vm2729, %v2736, %v2738
        %v2740 = vsel %vm2728, %v2718, %v2721
        %v2741 = vsel %vm2731, %v2727, 1326507024
        %v2742 = vsel %vm2730, %v2724, %v2741
        %v2743 = vsel %vm2729, %v2740, %v2742
        %v2744 = vshll.u32 %v2704, 8
        %v2745 = vmul.u32.u64.compose %v2744, %v2743
        %v2746 = vextract.low.u32 %v2745
        %v2747 = vextract.high.u32 %v2745
        %v2748 = vmul.u32.u64.compose %v2744, %v2739
        %v2749 = vextract.low.u32 %v2748
        %v2750 = vextract.high.u32 %v2748
        %v2751 = vmul.u32 %v2744, %v2735
        %v2752 = vadd.s32 %v2747, %v2749
        %vm2753 = vc.u32 %v2747, %v2749
        %v2754 = vadd.s32 %v2750, 1
        %v2755 = vsel %vm2753, %v2754, %v2750
        %v2756 = vadd.s32 %v2751, %v2755
        %v2757 = vadd.s32 %v2756, 536870912
        %v2758 = vshrl.u32 %v2757, 30
        %v2759 = vshll.u32 %v2758, 30
        %v2760 = vsub.s32 %v2756, %v2759
        %vm2761 = vcmp.lt.s32.totalorder %v2760, 0
        %v2762 = vsub.s32 0, %v2760
        %v2763 = vsel %vm2761, %v2762, %v2760
        %v2764 = vclz %v2763
        %v2765 = vsub.s32 %v2764, 2
        %vm2766 = vcmp.gt.s32.totalorder 0, %v2765
        %v2767 = vsel %vm2766, 0, %v2765
        %v2768 = vsub.s32 32, %v2767
        %v2769 = vshll.u32 %v2760, %v2767
        %v2770 = vshrl.u32 %v2752, %v2768
        %v2771 = vor.u32 %v2769, %v2770
        %v2772 = vsub.s32 4294967266, %v2767
        %v2773 = vadd.s32 %v2772, 127
        %v2774 = vshll.u32 %v2773, 23
        %v2775 = vor.u32 4788187, %v2774
        %v2776 = vand.u32 2147483647, %v2775
        %v2778 = vcvt.s32.f32 %v2771
        %v2779 = vmul.f32 %v2778, %v2776
        %v2780 = vxor.u32 %v2779, 2147483648
        %v2781 = vsel %vm2698, %v2780, %v2779
        %v2782 = vsub.s32 4, %v2758
        %v2783 = vsel %vm2698, %v2782, %v2758
        %v2784 = vsel %vm2697, %v2472, %v2781
        %v2785 = vsel %vm2697, 0, %v2783
        %v2786 = vcosq.f32.pop %v2784
        %v2787 = vsinq.f32.pop %v2784
        %vm2788 = vweird.f32 %v2472
        %v2789 = vadd.s32 %v2785, 3
        %v2790 = vand.u32 %v2789, 3
        %vm2791 = vcmp.lt.s32.totalorder %v2790, 2
        %vm2792 = vcmp.eq.s32.totalorder %v2790, 0
        %v2793 = vxor.u32 %v2787, 2147483648
        %v2794 = vsel %vm2792, %v2786, %v2793
        %vm2795 = vcmp.eq.s32.totalorder %v2790, 2
        %v2796 = vxor.u32 %v2786, 2147483648
        %v2797 = vsel %vm2795, %v2796, %v2787
        %v2798 = vsel %vm2791, %v2794, %v2797
        %v2799 = vsel %vm2788, nan, %v2798
        %v2800 = vand.u32 2147483647, %v2474
        %vm2801 = vcmp.le.f32.partialorder %v2800, 0.7853982
        %vm2802 = vcmp.lt.s32.totalorder %v2474, 0
        %v2803 = vand.u32 %v2474, 2139095040
        %v2804 = vshrl.u32 %v2803, 23
        %v2805 = vsub.s32 %v2804, 127
        %v2806 = vand.u32 2147483647, %v2474
        %v2807 = vand.u32 %v2806, 8388607
        %v2808 = vor.u32 %v2807, 8388608
        %v2809 = vsub.s32 0, %v2808
        %v2810 = vadd.s32 %v2805, 1
        %vm2811 = vcmp.gt.s32.totalorder %v2810, 0
        %v2812 = vsel %vm2811, %v2810, 0
        %v2813 = vshrl.u32 %v2812, 5
        %v2814 = vand.u32 %v2812, 31
        %v2815 = vsub.s32 32, %v2814
        %v2816 = vshrl.u32 683565275, %v2815
        %v2817 = vshll.u32 683565275, %v2814
        %v2818 = vshrl.u32 2475754826, %v2815
        %v2819 = vor.u32 %v2817, %v2818
        %v2820 = vshll.u32 2475754826, %v2814
        %v2821 = vshrl.u32 2131351028, %v2815
        %v2822 = vor.u32 %v2820, %v2821
        %v2823 = vshll.u32 2131351028, %v2814
        %v2824 = vshrl.u32 2102212464, %v2815
        %v2825 = vor.u32 %v2823, %v2824
        %v2826 = vshll.u32 2102212464, %v2814
        %v2827 = vshrl.u32 920167782, %v2815
        %v2828 = vor.u32 %v2826, %v2827
        %v2829 = vshll.u32 920167782, %v2814
        %v2830 = vshrl.u32 1326507024, %v2815
        %v2831 = vor.u32 %v2829, %v2830
        %vm2832 = vcmp.lt.s32.totalorder %v2813, 1
        %vm2833 = vcmp.lt.s32.totalorder %v2813, 2
        %vm2834 = vcmp.lt.s32.totalorder %v2813, 3
        %vm2835 = vcmp.lt.s32.totalorder %v2813, 4
        %v2836 = vsel %vm2832, %v2816, %v2819
        %v2837 = vsel %vm2835, %v2825, 2102212464
        %v2838 = vsel %vm2834, %v2822, %v2837
        %v2839 = vsel %vm2833, %v2836, %v2838
        %v2840 = vsel %vm2832, %v2819, %v2822
        %v2841 = vsel %vm2835, %v2828, 920167782
        %v2842 = vsel %vm2834, %v2825, %v2841
        %v2843 = vsel %vm2833, %v2840, %v2842
        %v2844 = vsel %vm2832, %v2822, %v2825
        %v2845 = vsel %vm2835, %v2831, 1326507024
        %v2846 = vsel %vm2834, %v2828, %v2845
        %v2847 = vsel %vm2833, %v2844, %v2846
        %v2848 = vshll.u32 %v2808, 8
        %v2849 = vmul.u32.u64.compose %v2848, %v2847
        %v2850 = vextract.low.u32 %v2849
        %v2851 = vextract.high.u32 %v2849
        %v2852 = vmul.u32.u64.compose %v2848, %v2843
        %v2853 = vextract.low.u32 %v2852
        %v2854 = vextract.high.u32 %v2852
        %v2855 = vmul.u32 %v2848, %v2839
        %v2856 = vadd.s32 %v2851, %v2853
        %vm2857 = vc.u32 %v2851, %v2853
        %v2858 = vadd.s32 %v2854, 1
        %v2859 = vsel %vm2857, %v2858, %v2854
        %v2860 = vadd.s32 %v2855, %v2859
        %v2861 = vadd.s32 %v2860, 536870912
        %v2862 = vshrl.u32 %v2861, 30
        %v2863 = vshll.u32 %v2862, 30
        %v2864 = vsub.s32 %v2860, %v2863
        %vm2865 = vcmp.lt.s32.totalorder %v2864, 0
        %v2866 = vsub.s32 0, %v2864
        %v2867 = vsel %vm2865, %v2866, %v2864
        %v2868 = vclz %v2867
        %v2869 = vsub.s32 %v2868, 2
        %vm2870 = vcmp.gt.s32.totalorder 0, %v2869
        %v2871 = vsel %vm2870, 0, %v2869
        %v2872 = vsub.s32 32, %v2871
        %v2873 = vshll.u32 %v2864, %v2871
        %v2874 = vshrl.u32 %v2856, %v2872
        %v2875 = vor.u32 %v2873, %v2874
        %v2876 = vsub.s32 4294967266, %v2871
        %v2877 = vadd.s32 %v2876, 127
        %v2878 = vshll.u32 %v2877, 23
        %v2879 = vor.u32 4788187, %v2878
        %v2880 = vand.u32 2147483647, %v2879
        %v2882 = vcvt.s32.f32 %v2875
        %v2883 = vmul.f32 %v2882, %v2880
        %v2884 = vxor.u32 %v2883, 2147483648
        %v2885 = vsel %vm2802, %v2884, %v2883
        %v2886 = vsub.s32 4, %v2862
        %v2887 = vsel %vm2802, %v2886, %v2862
        %v2888 = vsel %vm2801, %v2474, %v2885
        %v2889 = vsel %vm2801, 0, %v2887
        %v2890 = vcosq.f32.pop %v2888
        %v2891 = vsinq.f32.pop %v2888
        %vm2892 = vweird.f32 %v2474
        %v2893 = vadd.s32 %v2889, 3
        %v2894 = vand.u32 %v2893, 3
        %vm2895 = vcmp.lt.s32.totalorder %v2894, 2
        %vm2896 = vcmp.eq.s32.totalorder %v2894, 0
        %v2897 = vxor.u32 %v2891, 2147483648
        %v2898 = vsel %vm2896, %v2890, %v2897
        %vm2899 = vcmp.eq.s32.totalorder %v2894, 2
        %v2900 = vxor.u32 %v2890, 2147483648
        %v2901 = vsel %vm2899, %v2900, %v2891
        %v2902 = vsel %vm2895, %v2898, %v2901
        %v2903 = vsel %vm2892, nan, %v2902
        %v2904 = vand.u32 2147483647, %v2478
        %vm2905 = vcmp.le.f32.partialorder %v2904, 0.7853982
        %vm2906 = vcmp.lt.s32.totalorder %v2478, 0
        %v2907 = vand.u32 %v2478, 2139095040
        %v2908 = vshrl.u32 %v2907, 23
        %v2909 = vsub.s32 %v2908, 127
        %v2910 = vand.u32 2147483647, %v2478
        %v2911 = vand.u32 %v2910, 8388607
        %v2912 = vor.u32 %v2911, 8388608
        %v2913 = vsub.s32 0, %v2912
        %v2914 = vadd.s32 %v2909, 1
        %vm2915 = vcmp.gt.s32.totalorder %v2914, 0
        %v2916 = vsel %vm2915, %v2914, 0
        %v2917 = vshrl.u32 %v2916, 5
        %v2918 = vand.u32 %v2916, 31
        %v2919 = vsub.s32 32, %v2918
        %v2920 = vshrl.u32 683565275, %v2919
        %v2921 = vshll.u32 683565275, %v2918
        %v2922 = vshrl.u32 2475754826, %v2919
        %v2923 = vor.u32 %v2921, %v2922
        %v2924 = vshll.u32 2475754826, %v2918
        %v2925 = vshrl.u32 2131351028, %v2919
        %v2926 = vor.u32 %v2924, %v2925
        %v2927 = vshll.u32 2131351028, %v2918
        %v2928 = vshrl.u32 2102212464, %v2919
        %v2929 = vor.u32 %v2927, %v2928
        %v2930 = vshll.u32 2102212464, %v2918
        %v2931 = vshrl.u32 920167782, %v2919
        %v2932 = vor.u32 %v2930, %v2931
        %v2933 = vshll.u32 920167782, %v2918
        %v2934 = vshrl.u32 1326507024, %v2919
        %v2935 = vor.u32 %v2933, %v2934
        %vm2936 = vcmp.lt.s32.totalorder %v2917, 1
        %vm2937 = vcmp.lt.s32.totalorder %v2917, 2
        %vm2938 = vcmp.lt.s32.totalorder %v2917, 3
        %vm2939 = vcmp.lt.s32.totalorder %v2917, 4
        %v2940 = vsel %vm2936, %v2920, %v2923
        %v2941 = vsel %vm2939, %v2929, 2102212464
        %v2942 = vsel %vm2938, %v2926, %v2941
        %v2943 = vsel %vm2937, %v2940, %v2942
        %v2944 = vsel %vm2936, %v2923, %v2926
        %v2945 = vsel %vm2939, %v2932, 920167782
        %v2946 = vsel %vm2938, %v2929, %v2945
        %v2947 = vsel %vm2937, %v2944, %v2946
        %v2948 = vsel %vm2936, %v2926, %v2929
        %v2949 = vsel %vm2939, %v2935, 1326507024
        %v2950 = vsel %vm2938, %v2932, %v2949
        %v2951 = vsel %vm2937, %v2948, %v2950
        %v2952 = vshll.u32 %v2912, 8
        %v2953 = vmul.u32.u64.compose %v2952, %v2951
        %v2954 = vextract.low.u32 %v2953
        %v2955 = vextract.high.u32 %v2953
        %v2956 = vmul.u32.u64.compose %v2952, %v2947
        %v2957 = vextract.low.u32 %v2956
        %v2958 = vextract.high.u32 %v2956
        %v2959 = vmul.u32 %v2952, %v2943
        %v2960 = vadd.s32 %v2955, %v2957
        %vm2961 = vc.u32 %v2955, %v2957
        %v2962 = vadd.s32 %v2958, 1
        %v2963 = vsel %vm2961, %v2962, %v2958
        %v2964 = vadd.s32 %v2959, %v2963
        %v2965 = vadd.s32 %v2964, 536870912
        %v2966 = vshrl.u32 %v2965, 30
        %v2967 = vshll.u32 %v2966, 30
        %v2968 = vsub.s32 %v2964, %v2967
        %vm2969 = vcmp.lt.s32.totalorder %v2968, 0
        %v2970 = vsub.s32 0, %v2968
        %v2971 = vsel %vm2969, %v2970, %v2968
        %v2972 = vclz %v2971
        %v2973 = vsub.s32 %v2972, 2
        %vm2974 = vcmp.gt.s32.totalorder 0, %v2973
        %v2975 = vsel %vm2974, 0, %v2973
        %v2976 = vsub.s32 32, %v2975
        %v2977 = vshll.u32 %v2968, %v2975
        %v2978 = vshrl.u32 %v2960, %v2976
        %v2979 = vor.u32 %v2977, %v2978
        %v2980 = vsub.s32 4294967266, %v2975
        %v2981 = vadd.s32 %v2980, 127
        %v2982 = vshll.u32 %v2981, 23
        %v2983 = vor.u32 4788187, %v2982
        %v2984 = vand.u32 2147483647, %v2983
        %v2986 = vcvt.s32.f32 %v2979
        %v2987 = vmul.f32 %v2986, %v2984
        %v2988 = vxor.u32 %v2987, 2147483648
        %v2989 = vsel %vm2906, %v2988, %v2987
        %v2990 = vsub.s32 4, %v2966
        %v2991 = vsel %vm2906, %v2990, %v2966
        %v2992 = vsel %vm2905, %v2478, %v2989
        %v2993 = vsel %vm2905, 0, %v2991
        %v2994 = vcosq.f32.pop %v2992
        %v2995 = vsinq.f32.pop %v2992
        %vm2996 = vweird.f32 %v2478
        %v2997 = vadd.s32 %v2993, 3
        %v2998 = vand.u32 %v2997, 3
        %vm2999 = vcmp.lt.s32.totalorder %v2998, 2
        %vm3000 = vcmp.eq.s32.totalorder %v2998, 0
        %v3001 = vxor.u32 %v2995, 2147483648
        %v3002 = vsel %vm3000, %v2994, %v3001
        %vm3003 = vcmp.eq.s32.totalorder %v2998, 2
        %v3004 = vxor.u32 %v2994, 2147483648
        %v3005 = vsel %vm3003, %v3004, %v2995
        %v3006 = vsel %vm2999, %v3002, %v3005
        %v3007 = vsel %vm2996, nan, %v3006
        %v3008 = vand.u32 2147483647, %v2480
        %vm3009 = vcmp.le.f32.partialorder %v3008, 0.7853982
        %vm3010 = vcmp.lt.s32.totalorder %v2480, 0
        %v3011 = vand.u32 %v2480, 2139095040
        %v3012 = vshrl.u32 %v3011, 23
        %v3013 = vsub.s32 %v3012, 127
        %v3014 = vand.u32 2147483647, %v2480
        %v3015 = vand.u32 %v3014, 8388607
        %v3016 = vor.u32 %v3015, 8388608
        %v3017 = vsub.s32 0, %v3016
        %v3018 = vadd.s32 %v3013, 1
        %vm3019 = vcmp.gt.s32.totalorder %v3018, 0
        %v3020 = vsel %vm3019, %v3018, 0
        %v3021 = vshrl.u32 %v3020, 5
        %v3022 = vand.u32 %v3020, 31
        %v3023 = vsub.s32 32, %v3022
        %v3024 = vshrl.u32 683565275, %v3023
        %v3025 = vshll.u32 683565275, %v3022
        %v3026 = vshrl.u32 2475754826, %v3023
        %v3027 = vor.u32 %v3025, %v3026
        %v3028 = vshll.u32 2475754826, %v3022
        %v3029 = vshrl.u32 2131351028, %v3023
        %v3030 = vor.u32 %v3028, %v3029
        %v3031 = vshll.u32 2131351028, %v3022
        %v3032 = vshrl.u32 2102212464, %v3023
        %v3033 = vor.u32 %v3031, %v3032
        %v3034 = vshll.u32 2102212464, %v3022
        %v3035 = vshrl.u32 920167782, %v3023
        %v3036 = vor.u32 %v3034, %v3035
        %v3037 = vshll.u32 920167782, %v3022
        %v3038 = vshrl.u32 1326507024, %v3023
        %v3039 = vor.u32 %v3037, %v3038
        %vm3040 = vcmp.lt.s32.totalorder %v3021, 1
        %vm3041 = vcmp.lt.s32.totalorder %v3021, 2
        %vm3042 = vcmp.lt.s32.totalorder %v3021, 3
        %vm3043 = vcmp.lt.s32.totalorder %v3021, 4
        %v3044 = vsel %vm3040, %v3024, %v3027
        %v3045 = vsel %vm3043, %v3033, 2102212464
        %v3046 = vsel %vm3042, %v3030, %v3045
        %v3047 = vsel %vm3041, %v3044, %v3046
        %v3048 = vsel %vm3040, %v3027, %v3030
        %v3049 = vsel %vm3043, %v3036, 920167782
        %v3050 = vsel %vm3042, %v3033, %v3049
        %v3051 = vsel %vm3041, %v3048, %v3050
        %v3052 = vsel %vm3040, %v3030, %v3033
        %v3053 = vsel %vm3043, %v3039, 1326507024
        %v3054 = vsel %vm3042, %v3036, %v3053
        %v3055 = vsel %vm3041, %v3052, %v3054
        %v3056 = vshll.u32 %v3016, 8
        %v3057 = vmul.u32.u64.compose %v3056, %v3055
        %v3058 = vextract.low.u32 %v3057
        %v3059 = vextract.high.u32 %v3057
        %v3060 = vmul.u32.u64.compose %v3056, %v3051
        %v3061 = vextract.low.u32 %v3060
        %v3062 = vextract.high.u32 %v3060
        %v3063 = vmul.u32 %v3056, %v3047
        %v3064 = vadd.s32 %v3059, %v3061
        %vm3065 = vc.u32 %v3059, %v3061
        %v3066 = vadd.s32 %v3062, 1
        %v3067 = vsel %vm3065, %v3066, %v3062
        %v3068 = vadd.s32 %v3063, %v3067
        %v3069 = vadd.s32 %v3068, 536870912
        %v3070 = vshrl.u32 %v3069, 30
        %v3071 = vshll.u32 %v3070, 30
        %v3072 = vsub.s32 %v3068, %v3071
        %vm3073 = vcmp.lt.s32.totalorder %v3072, 0
        %v3074 = vsub.s32 0, %v3072
        %v3075 = vsel %vm3073, %v3074, %v3072
        %v3076 = vclz %v3075
        %v3077 = vsub.s32 %v3076, 2
        %vm3078 = vcmp.gt.s32.totalorder 0, %v3077
        %v3079 = vsel %vm3078, 0, %v3077
        %v3080 = vsub.s32 32, %v3079
        %v3081 = vshll.u32 %v3072, %v3079
        %v3082 = vshrl.u32 %v3064, %v3080
        %v3083 = vor.u32 %v3081, %v3082
        %v3084 = vsub.s32 4294967266, %v3079
        %v3085 = vadd.s32 %v3084, 127
        %v3086 = vshll.u32 %v3085, 23
        %v3087 = vor.u32 4788187, %v3086
        %v3088 = vand.u32 2147483647, %v3087
        %v3090 = vcvt.s32.f32 %v3083
        %v3091 = vmul.f32 %v3090, %v3088
        %v3092 = vxor.u32 %v3091, 2147483648
        %v3093 = vsel %vm3010, %v3092, %v3091
        %v3094 = vsub.s32 4, %v3070
        %v3095 = vsel %vm3010, %v3094, %v3070
        %v3096 = vsel %vm3009, %v2480, %v3093
        %v3097 = vsel %vm3009, 0, %v3095
        %v3098 = vcosq.f32.pop %v3096
        %v3099 = vsinq.f32.pop %v3096
        %vm3100 = vweird.f32 %v2480
        %v3101 = vadd.s32 %v3097, 3
        %v3102 = vand.u32 %v3101, 3
        %vm3103 = vcmp.lt.s32.totalorder %v3102, 2
        %vm3104 = vcmp.eq.s32.totalorder %v3102, 0
        %v3105 = vxor.u32 %v3099, 2147483648
        %v3106 = vsel %vm3104, %v3098, %v3105
        %vm3107 = vcmp.eq.s32.totalorder %v3102, 2
        %v3108 = vxor.u32 %v3098, 2147483648
        %v3109 = vsel %vm3107, %v3108, %v3099
        %v3110 = vsel %vm3103, %v3106, %v3109
        %v3111 = vsel %vm3100, nan, %v3110
        %v3112 = vand.u32 2147483647, %v2484
        %vm3113 = vcmp.le.f32.partialorder %v3112, 0.7853982
        %vm3114 = vcmp.lt.s32.totalorder %v2484, 0
        %v3115 = vand.u32 %v2484, 2139095040
        %v3116 = vshrl.u32 %v3115, 23
        %v3117 = vsub.s32 %v3116, 127
        %v3118 = vand.u32 2147483647, %v2484
        %v3119 = vand.u32 %v3118, 8388607
        %v3120 = vor.u32 %v3119, 8388608
        %v3121 = vsub.s32 0, %v3120
        %v3122 = vadd.s32 %v3117, 1
        %vm3123 = vcmp.gt.s32.totalorder %v3122, 0
        %v3124 = vsel %vm3123, %v3122, 0
        %v3125 = vshrl.u32 %v3124, 5
        %v3126 = vand.u32 %v3124, 31
        %v3127 = vsub.s32 32, %v3126
        %v3128 = vshrl.u32 683565275, %v3127
        %v3129 = vshll.u32 683565275, %v3126
        %v3130 = vshrl.u32 2475754826, %v3127
        %v3131 = vor.u32 %v3129, %v3130
        %v3132 = vshll.u32 2475754826, %v3126
        %v3133 = vshrl.u32 2131351028, %v3127
        %v3134 = vor.u32 %v3132, %v3133
        %v3135 = vshll.u32 2131351028, %v3126
        %v3136 = vshrl.u32 2102212464, %v3127
        %v3137 = vor.u32 %v3135, %v3136
        %v3138 = vshll.u32 2102212464, %v3126
        %v3139 = vshrl.u32 920167782, %v3127
        %v3140 = vor.u32 %v3138, %v3139
        %v3141 = vshll.u32 920167782, %v3126
        %v3142 = vshrl.u32 1326507024, %v3127
        %v3143 = vor.u32 %v3141, %v3142
        %vm3144 = vcmp.lt.s32.totalorder %v3125, 1
        %vm3145 = vcmp.lt.s32.totalorder %v3125, 2
        %vm3146 = vcmp.lt.s32.totalorder %v3125, 3
        %vm3147 = vcmp.lt.s32.totalorder %v3125, 4
        %v3148 = vsel %vm3144, %v3128, %v3131
        %v3149 = vsel %vm3147, %v3137, 2102212464
        %v3150 = vsel %vm3146, %v3134, %v3149
        %v3151 = vsel %vm3145, %v3148, %v3150
        %v3152 = vsel %vm3144, %v3131, %v3134
        %v3153 = vsel %vm3147, %v3140, 920167782
        %v3154 = vsel %vm3146, %v3137, %v3153
        %v3155 = vsel %vm3145, %v3152, %v3154
        %v3156 = vsel %vm3144, %v3134, %v3137
        %v3157 = vsel %vm3147, %v3143, 1326507024
        %v3158 = vsel %vm3146, %v3140, %v3157
        %v3159 = vsel %vm3145, %v3156, %v3158
        %v3160 = vshll.u32 %v3120, 8
        %v3161 = vmul.u32.u64.compose %v3160, %v3159
        %v3162 = vextract.low.u32 %v3161
        %v3163 = vextract.high.u32 %v3161
        %v3164 = vmul.u32.u64.compose %v3160, %v3155
        %v3165 = vextract.low.u32 %v3164
        %v3166 = vextract.high.u32 %v3164
        %v3167 = vmul.u32 %v3160, %v3151
        %v3168 = vadd.s32 %v3163, %v3165
        %vm3169 = vc.u32 %v3163, %v3165
        %v3170 = vadd.s32 %v3166, 1
        %v3171 = vsel %vm3169, %v3170, %v3166
        %v3172 = vadd.s32 %v3167, %v3171
        %v3173 = vadd.s32 %v3172, 536870912
        %v3174 = vshrl.u32 %v3173, 30
        %v3175 = vshll.u32 %v3174, 30
        %v3176 = vsub.s32 %v3172, %v3175
        %vm3177 = vcmp.lt.s32.totalorder %v3176, 0
        %v3178 = vsub.s32 0, %v3176
        %v3179 = vsel %vm3177, %v3178, %v3176
        %v3180 = vclz %v3179
        %v3181 = vsub.s32 %v3180, 2
        %vm3182 = vcmp.gt.s32.totalorder 0, %v3181
        %v3183 = vsel %vm3182, 0, %v3181
        %v3184 = vsub.s32 32, %v3183
        %v3185 = vshll.u32 %v3176, %v3183
        %v3186 = vshrl.u32 %v3168, %v3184
        %v3187 = vor.u32 %v3185, %v3186
        %v3188 = vsub.s32 4294967266, %v3183
        %v3189 = vadd.s32 %v3188, 127
        %v3190 = vshll.u32 %v3189, 23
        %v3191 = vor.u32 4788187, %v3190
        %v3192 = vand.u32 2147483647, %v3191
        %v3194 = vcvt.s32.f32 %v3187
        %v3195 = vmul.f32 %v3194, %v3192
        %v3196 = vxor.u32 %v3195, 2147483648
        %v3197 = vsel %vm3114, %v3196, %v3195
        %v3198 = vsub.s32 4, %v3174
        %v3199 = vsel %vm3114, %v3198, %v3174
        %v3200 = vsel %vm3113, %v2484, %v3197
        %v3201 = vsel %vm3113, 0, %v3199
        %v3202 = vcosq.f32.pop %v3200
        %v3203 = vsinq.f32.pop %v3200
        %vm3204 = vweird.f32 %v2484
        %v3205 = vadd.s32 %v3201, 3
        %v3206 = vand.u32 %v3205, 3
        %vm3207 = vcmp.lt.s32.totalorder %v3206, 2
        %vm3208 = vcmp.eq.s32.totalorder %v3206, 0
        %v3209 = vxor.u32 %v3203, 2147483648
        %v3210 = vsel %vm3208, %v3202, %v3209
        %vm3211 = vcmp.eq.s32.totalorder %v3206, 2
        %v3212 = vxor.u32 %v3202, 2147483648
        %v3213 = vsel %vm3211, %v3212, %v3203
        %v3214 = vsel %vm3207, %v3210, %v3213
        %v3215 = vsel %vm3204, nan, %v3214
        %v3216 = vand.u32 2147483647, %v2486
        %vm3217 = vcmp.le.f32.partialorder %v3216, 0.7853982
        %vm3218 = vcmp.lt.s32.totalorder %v2486, 0
        %v3219 = vand.u32 %v2486, 2139095040
        %v3220 = vshrl.u32 %v3219, 23
        %v3221 = vsub.s32 %v3220, 127
        %v3222 = vand.u32 2147483647, %v2486
        %v3223 = vand.u32 %v3222, 8388607
        %v3224 = vor.u32 %v3223, 8388608
        %v3225 = vsub.s32 0, %v3224
        %v3226 = vadd.s32 %v3221, 1
        %vm3227 = vcmp.gt.s32.totalorder %v3226, 0
        %v3228 = vsel %vm3227, %v3226, 0
        %v3229 = vshrl.u32 %v3228, 5
        %v3230 = vand.u32 %v3228, 31
        %v3231 = vsub.s32 32, %v3230
        %v3232 = vshrl.u32 683565275, %v3231
        %v3233 = vshll.u32 683565275, %v3230
        %v3234 = vshrl.u32 2475754826, %v3231
        %v3235 = vor.u32 %v3233, %v3234
        %v3236 = vshll.u32 2475754826, %v3230
        %v3237 = vshrl.u32 2131351028, %v3231
        %v3238 = vor.u32 %v3236, %v3237
        %v3239 = vshll.u32 2131351028, %v3230
        %v3240 = vshrl.u32 2102212464, %v3231
        %v3241 = vor.u32 %v3239, %v3240
        %v3242 = vshll.u32 2102212464, %v3230
        %v3243 = vshrl.u32 920167782, %v3231
        %v3244 = vor.u32 %v3242, %v3243
        %v3245 = vshll.u32 920167782, %v3230
        %v3246 = vshrl.u32 1326507024, %v3231
        %v3247 = vor.u32 %v3245, %v3246
        %vm3248 = vcmp.lt.s32.totalorder %v3229, 1
        %vm3249 = vcmp.lt.s32.totalorder %v3229, 2
        %vm3250 = vcmp.lt.s32.totalorder %v3229, 3
        %vm3251 = vcmp.lt.s32.totalorder %v3229, 4
        %v3252 = vsel %vm3248, %v3232, %v3235
        %v3253 = vsel %vm3251, %v3241, 2102212464
        %v3254 = vsel %vm3250, %v3238, %v3253
        %v3255 = vsel %vm3249, %v3252, %v3254
        %v3256 = vsel %vm3248, %v3235, %v3238
        %v3257 = vsel %vm3251, %v3244, 920167782
        %v3258 = vsel %vm3250, %v3241, %v3257
        %v3259 = vsel %vm3249, %v3256, %v3258
        %v3260 = vsel %vm3248, %v3238, %v3241
        %v3261 = vsel %vm3251, %v3247, 1326507024
        %v3262 = vsel %vm3250, %v3244, %v3261
        %v3263 = vsel %vm3249, %v3260, %v3262
        %v3264 = vshll.u32 %v3224, 8
        %v3265 = vmul.u32.u64.compose %v3264, %v3263
        %v3266 = vextract.low.u32 %v3265
        %v3267 = vextract.high.u32 %v3265
        %v3268 = vmul.u32.u64.compose %v3264, %v3259
        %v3269 = vextract.low.u32 %v3268
        %v3270 = vextract.high.u32 %v3268
        %v3271 = vmul.u32 %v3264, %v3255
        %v3272 = vadd.s32 %v3267, %v3269
        %vm3273 = vc.u32 %v3267, %v3269
        %v3274 = vadd.s32 %v3270, 1
        %v3275 = vsel %vm3273, %v3274, %v3270
        %v3276 = vadd.s32 %v3271, %v3275
        %v3277 = vadd.s32 %v3276, 536870912
        %v3278 = vshrl.u32 %v3277, 30
        %v3279 = vshll.u32 %v3278, 30
        %v3280 = vsub.s32 %v3276, %v3279
        %vm3281 = vcmp.lt.s32.totalorder %v3280, 0
        %v3282 = vsub.s32 0, %v3280
        %v3283 = vsel %vm3281, %v3282, %v3280
        %v3284 = vclz %v3283
        %v3285 = vsub.s32 %v3284, 2
        %vm3286 = vcmp.gt.s32.totalorder 0, %v3285
        %v3287 = vsel %vm3286, 0, %v3285
        %v3288 = vsub.s32 32, %v3287
        %v3289 = vshll.u32 %v3280, %v3287
        %v3290 = vshrl.u32 %v3272, %v3288
        %v3291 = vor.u32 %v3289, %v3290
        %v3292 = vsub.s32 4294967266, %v3287
        %v3293 = vadd.s32 %v3292, 127
        %v3294 = vshll.u32 %v3293, 23
        %v3295 = vor.u32 4788187, %v3294
        %v3296 = vand.u32 2147483647, %v3295
        %v3298 = vcvt.s32.f32 %v3291
        %v3299 = vmul.f32 %v3298, %v3296
        %v3300 = vxor.u32 %v3299, 2147483648
        %v3301 = vsel %vm3218, %v3300, %v3299
        %v3302 = vsub.s32 4, %v3278
        %v3303 = vsel %vm3218, %v3302, %v3278
        %v3304 = vsel %vm3217, %v2486, %v3301
        %v3305 = vsel %vm3217, 0, %v3303
        %v3306 = vcosq.f32.pop %v3304
        %v3307 = vsinq.f32.pop %v3304
        %vm3308 = vweird.f32 %v2486
        %v3309 = vadd.s32 %v3305, 3
        %v3310 = vand.u32 %v3309, 3
        %vm3311 = vcmp.lt.s32.totalorder %v3310, 2
        %vm3312 = vcmp.eq.s32.totalorder %v3310, 0
        %v3313 = vxor.u32 %v3307, 2147483648
        %v3314 = vsel %vm3312, %v3306, %v3313
        %vm3315 = vcmp.eq.s32.totalorder %v3310, 2
        %v3316 = vxor.u32 %v3306, 2147483648
        %v3317 = vsel %vm3315, %v3316, %v3307
        %v3318 = vsel %vm3311, %v3314, %v3317
        %v3319 = vsel %vm3308, nan, %v3318
        %3321 = vset.pattern.permute.xlu0 0
        %3322 = vperm.xlu0 %3321, %v2363
        %v3323 = vpop.permute.xlu0 %3322
        %3326 = vset.pattern.permute.xlu0 0
        %3327 = vperm.xlu0 %3326, %v2364
        %v3328 = vpop.permute.xlu0 %3327
        %3331 = vset.pattern.permute.xlu0 0
        %3332 = vperm.xlu0 %3331, %v2365
        %v3333 = vpop.permute.xlu0 %3332
        %3336 = vset.pattern.permute.xlu0 0
        %3337 = vperm.xlu0 %3336, %v2366
        %v3338 = vpop.permute.xlu0 %3337
        %v3341 = vsel %vm1409, %v2359, 0
        %v3344 = vsel %vm1409, %v2360, 0
        %v3347 = vsel %vm1409, %v2361, 0
        %v3350 = vsel %vm1409, %v2362, 0
        %3352 = vmatprep.subr.mxu0 %v2695
        %3353 = vmatpush1.msra.mxu0 %v2591
        %3354 = vmatprep.subr.mxu0 %v2903
        %3355 = vmatpush1.msra.mxu0 %v2799
        %3356 = vmatprep.subr.mxu0 %v3111
        %3357 = vmatpush1.msra.mxu0 %v3007
        %3358 = vmatprep.subr.mxu0 %v3319
        %3359 = vmatpush1.msra.mxu0 %v3215
        %3360 = vmatprep.subr.mxu0 0.0
        %3361 = vmatpush1.msra.mxu0 0.0
        %3362 = vmatprep.subr.mxu0 0.0
        %3363 = vmatpush1.msra.mxu0 0.0
        %3364 = vmatprep.subr.mxu0 0.0
        %3365 = vmatpush1.msra.mxu0 0.0
        %3366 = vmatprep.subr.mxu0 0.0
        %3367 = vmatpush1.msra.mxu0 0.0
        %3368 = vmatprep.subr.mxu0 0.0
        %3369 = vmatpush1.msra.mxu0 0.0
        %3370 = vmatprep.subr.mxu0 0.0
        %3371 = vmatpush1.msra.mxu0 0.0
        %3372 = vmatprep.subr.mxu0 0.0
        %3373 = vmatpush1.msra.mxu0 0.0
        %3374 = vmatprep.subr.mxu0 0.0
        %3375 = vmatpush1.msra.mxu0 0.0
        %3376 = vmatprep.subr.mxu0 0.0
        %3377 = vmatpush1.msra.mxu0 0.0
        %3378 = vmatprep.subr.mxu0 0.0
        %3379 = vmatpush1.msra.mxu0 0.0
        %3380 = vmatprep.subr.mxu0 0.0
        %3381 = vmatpush1.msra.mxu0 0.0
        %3382 = vmatprep.subr.mxu0 0.0
        %3383 = vmatpush1.msra.mxu0 0.0
        %3384 = vmatprep.subr.mxu0 0.0
        %3385 = vmatpush1.msra.mxu0 0.0
        %3386 = vmatprep.subr.mxu0 0.0
        %3387 = vmatpush1.msra.mxu0 0.0
        %3388 = vmatprep.subr.mxu0 0.0
        %3389 = vmatpush1.msra.mxu0 0.0
        %3390 = vmatprep.subr.mxu0 0.0
        %3391 = vmatpush1.msra.mxu0 0.0
        %3392 = vmatprep.subr.mxu0 0.0
        %3393 = vmatpush1.msra.mxu0 0.0
        %3394 = vmatprep.subr.mxu0 0.0
        %3395 = vmatpush1.msra.mxu0 0.0
        %3396 = vmatprep.subr.mxu0 0.0
        %3397 = vmatpush1.msra.mxu0 0.0
        %3398 = vmatprep.subr.mxu0 0.0
        %3399 = vmatpush1.msra.mxu0 0.0
        %3400 = vmatprep.subr.mxu0 0.0
        %3401 = vmatpush1.msra.mxu0 0.0
        %3402 = vmatprep.subr.mxu0 0.0
        %3403 = vmatpush1.msra.mxu0 0.0
        %3404 = vmatprep.subr.mxu0 0.0
        %3405 = vmatpush1.msra.mxu0 0.0
        %3406 = vmatprep.subr.mxu0 0.0
        %3407 = vmatpush1.msra.mxu0 0.0
        %3408 = vmatprep.subr.mxu0 0.0
        %3409 = vmatpush1.msra.mxu0 0.0
        %3410 = vmatprep.subr.mxu0 0.0
        %3411 = vmatpush1.msra.mxu0 0.0
        %3412 = vmatprep.subr.mxu0 0.0
        %3413 = vmatpush1.msra.mxu0 0.0
        %3414 = vmatprep.subr.mxu0 0.0
        %3415 = vmatpush1.msra.mxu0 0.0
        %3416 = vmatprep.mubr.f32.mxu0 0.0
        %3417 = vmatmul.mubr.f32.gmra.mrb[0].mxu0 %v3341
        %v3418 = vpop.f32.mrb[0].mxu0
        %v3419 = vadd.f32 %v3323, %v3418
        %v3420 = vpop.f32.mrb[0].mxu0
        %v3421 = vadd.f32 %v3323, %v3420
        %3422 = vmatprep.mubr.f32.mxu0 0.0
        %3423 = vmatmul.mubr.f32.gmra.mrb[0].mxu0 %v3344
        %v3424 = vpop.f32.mrb[0].mxu0
        %v3425 = vadd.f32 %v3328, %v3424
        %v3426 = vpop.f32.mrb[0].mxu0
        %v3427 = vadd.f32 %v3328, %v3426
        %3428 = vmatprep.mubr.f32.mxu0 0.0
        %3429 = vmatmul.mubr.f32.gmra.mrb[0].mxu0 %v3347
        %v3430 = vpop.f32.mrb[0].mxu0
        %v3431 = vadd.f32 %v3333, %v3430
        %v3432 = vpop.f32.mrb[0].mxu0
        %v3433 = vadd.f32 %v3333, %v3432
        %3434 = vmatprep.mubr.f32.mxu0 0.0
        %3435 = vmatmul.mubr.f32.gmra.mrb[0].mxu0 %v3350
        %v3436 = vpop.f32.mrb[0].mxu0
        %v3437 = vadd.f32 %v3338, %v3436
        %v3438 = vpop.f32.mrb[0].mxu0
        %v3439 = vadd.f32 %v3338, %v3438
        %3440 = vdwg.mxu0
        %v3441 = vand.u32 2147483647, %v3419
        %vm3442 = vcmp.le.f32.partialorder %v3441, 0.7853982
        %vm3443 = vcmp.lt.s32.totalorder %v3419, 0
        %v3444 = vand.u32 %v3419, 2139095040
        %v3445 = vshrl.u32 %v3444, 23
        %v3446 = vsub.s32 %v3445, 127
        %v3447 = vand.u32 2147483647, %v3419
        %v3448 = vand.u32 %v3447, 8388607
        %v3449 = vor.u32 %v3448, 8388608
        %v3450 = vsub.s32 0, %v3449
        %v3451 = vadd.s32 %v3446, 1
        %vm3452 = vcmp.gt.s32.totalorder %v3451, 0
        %v3453 = vsel %vm3452, %v3451, 0
        %v3454 = vshrl.u32 %v3453, 5
        %v3455 = vand.u32 %v3453, 31
        %v3456 = vsub.s32 32, %v3455
        %v3457 = vshrl.u32 683565275, %v3456
        %v3458 = vshll.u32 683565275, %v3455
        %v3459 = vshrl.u32 2475754826, %v3456
        %v3460 = vor.u32 %v3458, %v3459
        %v3461 = vshll.u32 2475754826, %v3455
        %v3462 = vshrl.u32 2131351028, %v3456
        %v3463 = vor.u32 %v3461, %v3462
        %v3464 = vshll.u32 2131351028, %v3455
        %v3465 = vshrl.u32 2102212464, %v3456
        %v3466 = vor.u32 %v3464, %v3465
        %v3467 = vshll.u32 2102212464, %v3455
        %v3468 = vshrl.u32 920167782, %v3456
        %v3469 = vor.u32 %v3467, %v3468
        %v3470 = vshll.u32 920167782, %v3455
        %v3471 = vshrl.u32 1326507024, %v3456
        %v3472 = vor.u32 %v3470, %v3471
        %vm3473 = vcmp.lt.s32.totalorder %v3454, 1
        %vm3474 = vcmp.lt.s32.totalorder %v3454, 2
        %vm3475 = vcmp.lt.s32.totalorder %v3454, 3
        %vm3476 = vcmp.lt.s32.totalorder %v3454, 4
        %v3477 = vsel %vm3473, %v3457, %v3460
        %v3478 = vsel %vm3476, %v3466, 2102212464
        %v3479 = vsel %vm3475, %v3463, %v3478
        %v3480 = vsel %vm3474, %v3477, %v3479
        %v3481 = vsel %vm3473, %v3460, %v3463
        %v3482 = vsel %vm3476, %v3469, 920167782
        %v3483 = vsel %vm3475, %v3466, %v3482
        %v3484 = vsel %vm3474, %v3481, %v3483
        %v3485 = vsel %vm3473, %v3463, %v3466
        %v3486 = vsel %vm3476, %v3472, 1326507024
        %v3487 = vsel %vm3475, %v3469, %v3486
        %v3488 = vsel %vm3474, %v3485, %v3487
        %v3489 = vshll.u32 %v3449, 8
        %v3490 = vmul.u32.u64.compose %v3489, %v3488
        %v3491 = vextract.low.u32 %v3490
        %v3492 = vextract.high.u32 %v3490
        %v3493 = vmul.u32.u64.compose %v3489, %v3484
        %v3494 = vextract.low.u32 %v3493
        %v3495 = vextract.high.u32 %v3493
        %v3496 = vmul.u32 %v3489, %v3480
        %v3497 = vadd.s32 %v3492, %v3494
        %vm3498 = vc.u32 %v3492, %v3494
        %v3499 = vadd.s32 %v3495, 1
        %v3500 = vsel %vm3498, %v3499, %v3495
        %v3501 = vadd.s32 %v3496, %v3500
        %v3502 = vadd.s32 %v3501, 536870912
        %v3503 = vshrl.u32 %v3502, 30
        %v3504 = vshll.u32 %v3503, 30
        %v3505 = vsub.s32 %v3501, %v3504
        %vm3506 = vcmp.lt.s32.totalorder %v3505, 0
        %v3507 = vsub.s32 0, %v3505
        %v3508 = vsel %vm3506, %v3507, %v3505
        %v3509 = vclz %v3508
        %v3510 = vsub.s32 %v3509, 2
        %vm3511 = vcmp.gt.s32.totalorder 0, %v3510
        %v3512 = vsel %vm3511, 0, %v3510
        %v3513 = vsub.s32 32, %v3512
        %v3514 = vshll.u32 %v3505, %v3512
        %v3515 = vshrl.u32 %v3497, %v3513
        %v3516 = vor.u32 %v3514, %v3515
        %v3517 = vsub.s32 4294967266, %v3512
        %v3518 = vadd.s32 %v3517, 127
        %v3519 = vshll.u32 %v3518, 23
        %v3520 = vor.u32 4788187, %v3519
        %v3521 = vand.u32 2147483647, %v3520
        %v3523 = vcvt.s32.f32 %v3516
        %v3524 = vmul.f32 %v3523, %v3521
        %v3525 = vxor.u32 %v3524, 2147483648
        %v3526 = vsel %vm3443, %v3525, %v3524
        %v3527 = vsub.s32 4, %v3503
        %v3528 = vsel %vm3443, %v3527, %v3503
        %v3529 = vsel %vm3442, %v3419, %v3526
        %v3530 = vsel %vm3442, 0, %v3528
        %v3531 = vcosq.f32.pop %v3529
        %v3532 = vsinq.f32.pop %v3529
        %vm3533 = vweird.f32 %v3419
        %v3534 = vadd.s32 %v3530, 3
        %v3535 = vand.u32 %v3534, 3
        %vm3536 = vcmp.lt.s32.totalorder %v3535, 2
        %vm3537 = vcmp.eq.s32.totalorder %v3535, 0
        %v3538 = vxor.u32 %v3532, 2147483648
        %v3539 = vsel %vm3537, %v3531, %v3538
        %vm3540 = vcmp.eq.s32.totalorder %v3535, 2
        %v3541 = vxor.u32 %v3531, 2147483648
        %v3542 = vsel %vm3540, %v3541, %v3532
        %v3543 = vsel %vm3536, %v3539, %v3542
        %v3544 = vsel %vm3533, nan, %v3543
        %v3545 = vand.u32 2147483647, %v3421
        %vm3546 = vcmp.le.f32.partialorder %v3545, 0.7853982
        %vm3547 = vcmp.lt.s32.totalorder %v3421, 0
        %v3548 = vand.u32 %v3421, 2139095040
        %v3549 = vshrl.u32 %v3548, 23
        %v3550 = vsub.s32 %v3549, 127
        %v3551 = vand.u32 2147483647, %v3421
        %v3552 = vand.u32 %v3551, 8388607
        %v3553 = vor.u32 %v3552, 8388608
        %v3554 = vsub.s32 0, %v3553
        %v3555 = vadd.s32 %v3550, 1
        %vm3556 = vcmp.gt.s32.totalorder %v3555, 0
        %v3557 = vsel %vm3556, %v3555, 0
        %v3558 = vshrl.u32 %v3557, 5
        %v3559 = vand.u32 %v3557, 31
        %v3560 = vsub.s32 32, %v3559
        %v3561 = vshrl.u32 683565275, %v3560
        %v3562 = vshll.u32 683565275, %v3559
        %v3563 = vshrl.u32 2475754826, %v3560
        %v3564 = vor.u32 %v3562, %v3563
        %v3565 = vshll.u32 2475754826, %v3559
        %v3566 = vshrl.u32 2131351028, %v3560
        %v3567 = vor.u32 %v3565, %v3566
        %v3568 = vshll.u32 2131351028, %v3559
        %v3569 = vshrl.u32 2102212464, %v3560
        %v3570 = vor.u32 %v3568, %v3569
        %v3571 = vshll.u32 2102212464, %v3559
        %v3572 = vshrl.u32 920167782, %v3560
        %v3573 = vor.u32 %v3571, %v3572
        %v3574 = vshll.u32 920167782, %v3559
        %v3575 = vshrl.u32 1326507024, %v3560
        %v3576 = vor.u32 %v3574, %v3575
        %vm3577 = vcmp.lt.s32.totalorder %v3558, 1
        %vm3578 = vcmp.lt.s32.totalorder %v3558, 2
        %vm3579 = vcmp.lt.s32.totalorder %v3558, 3
        %vm3580 = vcmp.lt.s32.totalorder %v3558, 4
        %v3581 = vsel %vm3577, %v3561, %v3564
        %v3582 = vsel %vm3580, %v3570, 2102212464
        %v3583 = vsel %vm3579, %v3567, %v3582
        %v3584 = vsel %vm3578, %v3581, %v3583
        %v3585 = vsel %vm3577, %v3564, %v3567
        %v3586 = vsel %vm3580, %v3573, 920167782
        %v3587 = vsel %vm3579, %v3570, %v3586
        %v3588 = vsel %vm3578, %v3585, %v3587
        %v3589 = vsel %vm3577, %v3567, %v3570
        %v3590 = vsel %vm3580, %v3576, 1326507024
        %v3591 = vsel %vm3579, %v3573, %v3590
        %v3592 = vsel %vm3578, %v3589, %v3591
        %v3593 = vshll.u32 %v3553, 8
        %v3594 = vmul.u32.u64.compose %v3593, %v3592
        %v3595 = vextract.low.u32 %v3594
        %v3596 = vextract.high.u32 %v3594
        %v3597 = vmul.u32.u64.compose %v3593, %v3588
        %v3598 = vextract.low.u32 %v3597
        %v3599 = vextract.high.u32 %v3597
        %v3600 = vmul.u32 %v3593, %v3584
        %v3601 = vadd.s32 %v3596, %v3598
        %vm3602 = vc.u32 %v3596, %v3598
        %v3603 = vadd.s32 %v3599, 1
        %v3604 = vsel %vm3602, %v3603, %v3599
        %v3605 = vadd.s32 %v3600, %v3604
        %v3606 = vadd.s32 %v3605, 536870912
        %v3607 = vshrl.u32 %v3606, 30
        %v3608 = vshll.u32 %v3607, 30
        %v3609 = vsub.s32 %v3605, %v3608
        %vm3610 = vcmp.lt.s32.totalorder %v3609, 0
        %v3611 = vsub.s32 0, %v3609
        %v3612 = vsel %vm3610, %v3611, %v3609
        %v3613 = vclz %v3612
        %v3614 = vsub.s32 %v3613, 2
        %vm3615 = vcmp.gt.s32.totalorder 0, %v3614
        %v3616 = vsel %vm3615, 0, %v3614
        %v3617 = vsub.s32 32, %v3616
        %v3618 = vshll.u32 %v3609, %v3616
        %v3619 = vshrl.u32 %v3601, %v3617
        %v3620 = vor.u32 %v3618, %v3619
        %v3621 = vsub.s32 4294967266, %v3616
        %v3622 = vadd.s32 %v3621, 127
        %v3623 = vshll.u32 %v3622, 23
        %v3624 = vor.u32 4788187, %v3623
        %v3625 = vand.u32 2147483647, %v3624
        %v3627 = vcvt.s32.f32 %v3620
        %v3628 = vmul.f32 %v3627, %v3625
        %v3629 = vxor.u32 %v3628, 2147483648
        %v3630 = vsel %vm3547, %v3629, %v3628
        %v3631 = vsub.s32 4, %v3607
        %v3632 = vsel %vm3547, %v3631, %v3607
        %v3633 = vsel %vm3546, %v3421, %v3630
        %v3634 = vsel %vm3546, 0, %v3632
        %v3635 = vcosq.f32.pop %v3633
        %v3636 = vsinq.f32.pop %v3633
        %vm3637 = vweird.f32 %v3421
        %v3638 = vadd.s32 %v3634, 3
        %v3639 = vand.u32 %v3638, 3
        %vm3640 = vcmp.lt.s32.totalorder %v3639, 2
        %vm3641 = vcmp.eq.s32.totalorder %v3639, 0
        %v3642 = vxor.u32 %v3636, 2147483648
        %v3643 = vsel %vm3641, %v3635, %v3642
        %vm3644 = vcmp.eq.s32.totalorder %v3639, 2
        %v3645 = vxor.u32 %v3635, 2147483648
        %v3646 = vsel %vm3644, %v3645, %v3636
        %v3647 = vsel %vm3640, %v3643, %v3646
        %v3648 = vsel %vm3637, nan, %v3647
        %v3649 = vand.u32 2147483647, %v3425
        %vm3650 = vcmp.le.f32.partialorder %v3649, 0.7853982
        %vm3651 = vcmp.lt.s32.totalorder %v3425, 0
        %v3652 = vand.u32 %v3425, 2139095040
        %v3653 = vshrl.u32 %v3652, 23
        %v3654 = vsub.s32 %v3653, 127
        %v3655 = vand.u32 2147483647, %v3425
        %v3656 = vand.u32 %v3655, 8388607
        %v3657 = vor.u32 %v3656, 8388608
        %v3658 = vsub.s32 0, %v3657
        %v3659 = vadd.s32 %v3654, 1
        %vm3660 = vcmp.gt.s32.totalorder %v3659, 0
        %v3661 = vsel %vm3660, %v3659, 0
        %v3662 = vshrl.u32 %v3661, 5
        %v3663 = vand.u32 %v3661, 31
        %v3664 = vsub.s32 32, %v3663
        %v3665 = vshrl.u32 683565275, %v3664
        %v3666 = vshll.u32 683565275, %v3663
        %v3667 = vshrl.u32 2475754826, %v3664
        %v3668 = vor.u32 %v3666, %v3667
        %v3669 = vshll.u32 2475754826, %v3663
        %v3670 = vshrl.u32 2131351028, %v3664
        %v3671 = vor.u32 %v3669, %v3670
        %v3672 = vshll.u32 2131351028, %v3663
        %v3673 = vshrl.u32 2102212464, %v3664
        %v3674 = vor.u32 %v3672, %v3673
        %v3675 = vshll.u32 2102212464, %v3663
        %v3676 = vshrl.u32 920167782, %v3664
        %v3677 = vor.u32 %v3675, %v3676
        %v3678 = vshll.u32 920167782, %v3663
        %v3679 = vshrl.u32 1326507024, %v3664
        %v3680 = vor.u32 %v3678, %v3679
        %vm3681 = vcmp.lt.s32.totalorder %v3662, 1
        %vm3682 = vcmp.lt.s32.totalorder %v3662, 2
        %vm3683 = vcmp.lt.s32.totalorder %v3662, 3
        %vm3684 = vcmp.lt.s32.totalorder %v3662, 4
        %v3685 = vsel %vm3681, %v3665, %v3668
        %v3686 = vsel %vm3684, %v3674, 2102212464
        %v3687 = vsel %vm3683, %v3671, %v3686
        %v3688 = vsel %vm3682, %v3685, %v3687
        %v3689 = vsel %vm3681, %v3668, %v3671
        %v3690 = vsel %vm3684, %v3677, 920167782
        %v3691 = vsel %vm3683, %v3674, %v3690
        %v3692 = vsel %vm3682, %v3689, %v3691
        %v3693 = vsel %vm3681, %v3671, %v3674
        %v3694 = vsel %vm3684, %v3680, 1326507024
        %v3695 = vsel %vm3683, %v3677, %v3694
        %v3696 = vsel %vm3682, %v3693, %v3695
        %v3697 = vshll.u32 %v3657, 8
        %v3698 = vmul.u32.u64.compose %v3697, %v3696
        %v3699 = vextract.low.u32 %v3698
        %v3700 = vextract.high.u32 %v3698
        %v3701 = vmul.u32.u64.compose %v3697, %v3692
        %v3702 = vextract.low.u32 %v3701
        %v3703 = vextract.high.u32 %v3701
        %v3704 = vmul.u32 %v3697, %v3688
        %v3705 = vadd.s32 %v3700, %v3702
        %vm3706 = vc.u32 %v3700, %v3702
        %v3707 = vadd.s32 %v3703, 1
        %v3708 = vsel %vm3706, %v3707, %v3703
        %v3709 = vadd.s32 %v3704, %v3708
        %v3710 = vadd.s32 %v3709, 536870912
        %v3711 = vshrl.u32 %v3710, 30
        %v3712 = vshll.u32 %v3711, 30
        %v3713 = vsub.s32 %v3709, %v3712
        %vm3714 = vcmp.lt.s32.totalorder %v3713, 0
        %v3715 = vsub.s32 0, %v3713
        %v3716 = vsel %vm3714, %v3715, %v3713
        %v3717 = vclz %v3716
        %v3718 = vsub.s32 %v3717, 2
        %vm3719 = vcmp.gt.s32.totalorder 0, %v3718
        %v3720 = vsel %vm3719, 0, %v3718
        %v3721 = vsub.s32 32, %v3720
        %v3722 = vshll.u32 %v3713, %v3720
        %v3723 = vshrl.u32 %v3705, %v3721
        %v3724 = vor.u32 %v3722, %v3723
        %v3725 = vsub.s32 4294967266, %v3720
        %v3726 = vadd.s32 %v3725, 127
        %v3727 = vshll.u32 %v3726, 23
        %v3728 = vor.u32 4788187, %v3727
        %v3729 = vand.u32 2147483647, %v3728
        %v3731 = vcvt.s32.f32 %v3724
        %v3732 = vmul.f32 %v3731, %v3729
        %v3733 = vxor.u32 %v3732, 2147483648
        %v3734 = vsel %vm3651, %v3733, %v3732
        %v3735 = vsub.s32 4, %v3711
        %v3736 = vsel %vm3651, %v3735, %v3711
        %v3737 = vsel %vm3650, %v3425, %v3734
        %v3738 = vsel %vm3650, 0, %v3736
        %v3739 = vcosq.f32.pop %v3737
        %v3740 = vsinq.f32.pop %v3737
        %vm3741 = vweird.f32 %v3425
        %v3742 = vadd.s32 %v3738, 3
        %v3743 = vand.u32 %v3742, 3
        %vm3744 = vcmp.lt.s32.totalorder %v3743, 2
        %vm3745 = vcmp.eq.s32.totalorder %v3743, 0
        %v3746 = vxor.u32 %v3740, 2147483648
        %v3747 = vsel %vm3745, %v3739, %v3746
        %vm3748 = vcmp.eq.s32.totalorder %v3743, 2
        %v3749 = vxor.u32 %v3739, 2147483648
        %v3750 = vsel %vm3748, %v3749, %v3740
        %v3751 = vsel %vm3744, %v3747, %v3750
        %v3752 = vsel %vm3741, nan, %v3751
        %v3753 = vand.u32 2147483647, %v3427
        %vm3754 = vcmp.le.f32.partialorder %v3753, 0.7853982
        %vm3755 = vcmp.lt.s32.totalorder %v3427, 0
        %v3756 = vand.u32 %v3427, 2139095040
        %v3757 = vshrl.u32 %v3756, 23
        %v3758 = vsub.s32 %v3757, 127
        %v3759 = vand.u32 2147483647, %v3427
        %v3760 = vand.u32 %v3759, 8388607
        %v3761 = vor.u32 %v3760, 8388608
        %v3762 = vsub.s32 0, %v3761
        %v3763 = vadd.s32 %v3758, 1
        %vm3764 = vcmp.gt.s32.totalorder %v3763, 0
        %v3765 = vsel %vm3764, %v3763, 0
        %v3766 = vshrl.u32 %v3765, 5
        %v3767 = vand.u32 %v3765, 31
        %v3768 = vsub.s32 32, %v3767
        %v3769 = vshrl.u32 683565275, %v3768
        %v3770 = vshll.u32 683565275, %v3767
        %v3771 = vshrl.u32 2475754826, %v3768
        %v3772 = vor.u32 %v3770, %v3771
        %v3773 = vshll.u32 2475754826, %v3767
        %v3774 = vshrl.u32 2131351028, %v3768
        %v3775 = vor.u32 %v3773, %v3774
        %v3776 = vshll.u32 2131351028, %v3767
        %v3777 = vshrl.u32 2102212464, %v3768
        %v3778 = vor.u32 %v3776, %v3777
        %v3779 = vshll.u32 2102212464, %v3767
        %v3780 = vshrl.u32 920167782, %v3768
        %v3781 = vor.u32 %v3779, %v3780
        %v3782 = vshll.u32 920167782, %v3767
        %v3783 = vshrl.u32 1326507024, %v3768
        %v3784 = vor.u32 %v3782, %v3783
        %vm3785 = vcmp.lt.s32.totalorder %v3766, 1
        %vm3786 = vcmp.lt.s32.totalorder %v3766, 2
        %vm3787 = vcmp.lt.s32.totalorder %v3766, 3
        %vm3788 = vcmp.lt.s32.totalorder %v3766, 4
        %v3789 = vsel %vm3785, %v3769, %v3772
        %v3790 = vsel %vm3788, %v3778, 2102212464
        %v3791 = vsel %vm3787, %v3775, %v3790
        %v3792 = vsel %vm3786, %v3789, %v3791
        %v3793 = vsel %vm3785, %v3772, %v3775
        %v3794 = vsel %vm3788, %v3781, 920167782
        %v3795 = vsel %vm3787, %v3778, %v3794
        %v3796 = vsel %vm3786, %v3793, %v3795
        %v3797 = vsel %vm3785, %v3775, %v3778
        %v3798 = vsel %vm3788, %v3784, 1326507024
        %v3799 = vsel %vm3787, %v3781, %v3798
        %v3800 = vsel %vm3786, %v3797, %v3799
        %v3801 = vshll.u32 %v3761, 8
        %v3802 = vmul.u32.u64.compose %v3801, %v3800
        %v3803 = vextract.low.u32 %v3802
        %v3804 = vextract.high.u32 %v3802
        %v3805 = vmul.u32.u64.compose %v3801, %v3796
        %v3806 = vextract.low.u32 %v3805
        %v3807 = vextract.high.u32 %v3805
        %v3808 = vmul.u32 %v3801, %v3792
        %v3809 = vadd.s32 %v3804, %v3806
        %vm3810 = vc.u32 %v3804, %v3806
        %v3811 = vadd.s32 %v3807, 1
        %v3812 = vsel %vm3810, %v3811, %v3807
        %v3813 = vadd.s32 %v3808, %v3812
        %v3814 = vadd.s32 %v3813, 536870912
        %v3815 = vshrl.u32 %v3814, 30
        %v3816 = vshll.u32 %v3815, 30
        %v3817 = vsub.s32 %v3813, %v3816
        %vm3818 = vcmp.lt.s32.totalorder %v3817, 0
        %v3819 = vsub.s32 0, %v3817
        %v3820 = vsel %vm3818, %v3819, %v3817
        %v3821 = vclz %v3820
        %v3822 = vsub.s32 %v3821, 2
        %vm3823 = vcmp.gt.s32.totalorder 0, %v3822
        %v3824 = vsel %vm3823, 0, %v3822
        %v3825 = vsub.s32 32, %v3824
        %v3826 = vshll.u32 %v3817, %v3824
        %v3827 = vshrl.u32 %v3809, %v3825
        %v3828 = vor.u32 %v3826, %v3827
        %v3829 = vsub.s32 4294967266, %v3824
        %v3830 = vadd.s32 %v3829, 127
        %v3831 = vshll.u32 %v3830, 23
        %v3832 = vor.u32 4788187, %v3831
        %v3833 = vand.u32 2147483647, %v3832
        %v3835 = vcvt.s32.f32 %v3828
        %v3836 = vmul.f32 %v3835, %v3833
        %v3837 = vxor.u32 %v3836, 2147483648
        %v3838 = vsel %vm3755, %v3837, %v3836
        %v3839 = vsub.s32 4, %v3815
        %v3840 = vsel %vm3755, %v3839, %v3815
        %v3841 = vsel %vm3754, %v3427, %v3838
        %v3842 = vsel %vm3754, 0, %v3840
        %v3843 = vcosq.f32.pop %v3841
        %v3844 = vsinq.f32.pop %v3841
        %vm3845 = vweird.f32 %v3427
        %v3846 = vadd.s32 %v3842, 3
        %v3847 = vand.u32 %v3846, 3
        %vm3848 = vcmp.lt.s32.totalorder %v3847, 2
        %vm3849 = vcmp.eq.s32.totalorder %v3847, 0
        %v3850 = vxor.u32 %v3844, 2147483648
        %v3851 = vsel %vm3849, %v3843, %v3850
        %vm3852 = vcmp.eq.s32.totalorder %v3847, 2
        %v3853 = vxor.u32 %v3843, 2147483648
        %v3854 = vsel %vm3852, %v3853, %v3844
        %v3855 = vsel %vm3848, %v3851, %v3854
        %v3856 = vsel %vm3845, nan, %v3855
        %v3857 = vand.u32 2147483647, %v3431
        %vm3858 = vcmp.le.f32.partialorder %v3857, 0.7853982
        %vm3859 = vcmp.lt.s32.totalorder %v3431, 0
        %v3860 = vand.u32 %v3431, 2139095040
        %v3861 = vshrl.u32 %v3860, 23
        %v3862 = vsub.s32 %v3861, 127
        %v3863 = vand.u32 2147483647, %v3431
        %v3864 = vand.u32 %v3863, 8388607
        %v3865 = vor.u32 %v3864, 8388608
        %v3866 = vsub.s32 0, %v3865
        %v3867 = vadd.s32 %v3862, 1
        %vm3868 = vcmp.gt.s32.totalorder %v3867, 0
        %v3869 = vsel %vm3868, %v3867, 0
        %v3870 = vshrl.u32 %v3869, 5
        %v3871 = vand.u32 %v3869, 31
        %v3872 = vsub.s32 32, %v3871
        %v3873 = vshrl.u32 683565275, %v3872
        %v3874 = vshll.u32 683565275, %v3871
        %v3875 = vshrl.u32 2475754826, %v3872
        %v3876 = vor.u32 %v3874, %v3875
        %v3877 = vshll.u32 2475754826, %v3871
        %v3878 = vshrl.u32 2131351028, %v3872
        %v3879 = vor.u32 %v3877, %v3878
        %v3880 = vshll.u32 2131351028, %v3871
        %v3881 = vshrl.u32 2102212464, %v3872
        %v3882 = vor.u32 %v3880, %v3881
        %v3883 = vshll.u32 2102212464, %v3871
        %v3884 = vshrl.u32 920167782, %v3872
        %v3885 = vor.u32 %v3883, %v3884
        %v3886 = vshll.u32 920167782, %v3871
        %v3887 = vshrl.u32 1326507024, %v3872
        %v3888 = vor.u32 %v3886, %v3887
        %vm3889 = vcmp.lt.s32.totalorder %v3870, 1
        %vm3890 = vcmp.lt.s32.totalorder %v3870, 2
        %vm3891 = vcmp.lt.s32.totalorder %v3870, 3
        %vm3892 = vcmp.lt.s32.totalorder %v3870, 4
        %v3893 = vsel %vm3889, %v3873, %v3876
        %v3894 = vsel %vm3892, %v3882, 2102212464
        %v3895 = vsel %vm3891, %v3879, %v3894
        %v3896 = vsel %vm3890, %v3893, %v3895
        %v3897 = vsel %vm3889, %v3876, %v3879
        %v3898 = vsel %vm3892, %v3885, 920167782
        %v3899 = vsel %vm3891, %v3882, %v3898
        %v3900 = vsel %vm3890, %v3897, %v3899
        %v3901 = vsel %vm3889, %v3879, %v3882
        %v3902 = vsel %vm3892, %v3888, 1326507024
        %v3903 = vsel %vm3891, %v3885, %v3902
        %v3904 = vsel %vm3890, %v3901, %v3903
        %v3905 = vshll.u32 %v3865, 8
        %v3906 = vmul.u32.u64.compose %v3905, %v3904
        %v3907 = vextract.low.u32 %v3906
        %v3908 = vextract.high.u32 %v3906
        %v3909 = vmul.u32.u64.compose %v3905, %v3900
        %v3910 = vextract.low.u32 %v3909
        %v3911 = vextract.high.u32 %v3909
        %v3912 = vmul.u32 %v3905, %v3896
        %v3913 = vadd.s32 %v3908, %v3910
        %vm3914 = vc.u32 %v3908, %v3910
        %v3915 = vadd.s32 %v3911, 1
        %v3916 = vsel %vm3914, %v3915, %v3911
        %v3917 = vadd.s32 %v3912, %v3916
        %v3918 = vadd.s32 %v3917, 536870912
        %v3919 = vshrl.u32 %v3918, 30
        %v3920 = vshll.u32 %v3919, 30
        %v3921 = vsub.s32 %v3917, %v3920
        %vm3922 = vcmp.lt.s32.totalorder %v3921, 0
        %v3923 = vsub.s32 0, %v3921
        %v3924 = vsel %vm3922, %v3923, %v3921
        %v3925 = vclz %v3924
        %v3926 = vsub.s32 %v3925, 2
        %vm3927 = vcmp.gt.s32.totalorder 0, %v3926
        %v3928 = vsel %vm3927, 0, %v3926
        %v3929 = vsub.s32 32, %v3928
        %v3930 = vshll.u32 %v3921, %v3928
        %v3931 = vshrl.u32 %v3913, %v3929
        %v3932 = vor.u32 %v3930, %v3931
        %v3933 = vsub.s32 4294967266, %v3928
        %v3934 = vadd.s32 %v3933, 127
        %v3935 = vshll.u32 %v3934, 23
        %v3936 = vor.u32 4788187, %v3935
        %v3937 = vand.u32 2147483647, %v3936
        %v3939 = vcvt.s32.f32 %v3932
        %v3940 = vmul.f32 %v3939, %v3937
        %v3941 = vxor.u32 %v3940, 2147483648
        %v3942 = vsel %vm3859, %v3941, %v3940
        %v3943 = vsub.s32 4, %v3919
        %v3944 = vsel %vm3859, %v3943, %v3919
        %v3945 = vsel %vm3858, %v3431, %v3942
        %v3946 = vsel %vm3858, 0, %v3944
        %v3947 = vcosq.f32.pop %v3945
        %v3948 = vsinq.f32.pop %v3945
        %vm3949 = vweird.f32 %v3431
        %v3950 = vadd.s32 %v3946, 3
        %v3951 = vand.u32 %v3950, 3
        %vm3952 = vcmp.lt.s32.totalorder %v3951, 2
        %vm3953 = vcmp.eq.s32.totalorder %v3951, 0
        %v3954 = vxor.u32 %v3948, 2147483648
        %v3955 = vsel %vm3953, %v3947, %v3954
        %vm3956 = vcmp.eq.s32.totalorder %v3951, 2
        %v3957 = vxor.u32 %v3947, 2147483648
        %v3958 = vsel %vm3956, %v3957, %v3948
        %v3959 = vsel %vm3952, %v3955, %v3958
        %v3960 = vsel %vm3949, nan, %v3959
        %v3961 = vand.u32 2147483647, %v3433
        %vm3962 = vcmp.le.f32.partialorder %v3961, 0.7853982
        %vm3963 = vcmp.lt.s32.totalorder %v3433, 0
        %v3964 = vand.u32 %v3433, 2139095040
        %v3965 = vshrl.u32 %v3964, 23
        %v3966 = vsub.s32 %v3965, 127
        %v3967 = vand.u32 2147483647, %v3433
        %v3968 = vand.u32 %v3967, 8388607
        %v3969 = vor.u32 %v3968, 8388608
        %v3970 = vsub.s32 0, %v3969
        %v3971 = vadd.s32 %v3966, 1
        %vm3972 = vcmp.gt.s32.totalorder %v3971, 0
        %v3973 = vsel %vm3972, %v3971, 0
        %v3974 = vshrl.u32 %v3973, 5
        %v3975 = vand.u32 %v3973, 31
        %v3976 = vsub.s32 32, %v3975
        %v3977 = vshrl.u32 683565275, %v3976
        %v3978 = vshll.u32 683565275, %v3975
        %v3979 = vshrl.u32 2475754826, %v3976
        %v3980 = vor.u32 %v3978, %v3979
        %v3981 = vshll.u32 2475754826, %v3975
        %v3982 = vshrl.u32 2131351028, %v3976
        %v3983 = vor.u32 %v3981, %v3982
        %v3984 = vshll.u32 2131351028, %v3975
        %v3985 = vshrl.u32 2102212464, %v3976
        %v3986 = vor.u32 %v3984, %v3985
        %v3987 = vshll.u32 2102212464, %v3975
        %v3988 = vshrl.u32 920167782, %v3976
        %v3989 = vor.u32 %v3987, %v3988
        %v3990 = vshll.u32 920167782, %v3975
        %v3991 = vshrl.u32 1326507024, %v3976
        %v3992 = vor.u32 %v3990, %v3991
        %vm3993 = vcmp.lt.s32.totalorder %v3974, 1
        %vm3994 = vcmp.lt.s32.totalorder %v3974, 2
        %vm3995 = vcmp.lt.s32.totalorder %v3974, 3
        %vm3996 = vcmp.lt.s32.totalorder %v3974, 4
        %v3997 = vsel %vm3993, %v3977, %v3980
        %v3998 = vsel %vm3996, %v3986, 2102212464
        %v3999 = vsel %vm3995, %v3983, %v3998
        %v4000 = vsel %vm3994, %v3997, %v3999
        %v4001 = vsel %vm3993, %v3980, %v3983
        %v4002 = vsel %vm3996, %v3989, 920167782
        %v4003 = vsel %vm3995, %v3986, %v4002
        %v4004 = vsel %vm3994, %v4001, %v4003
        %v4005 = vsel %vm3993, %v3983, %v3986
        %v4006 = vsel %vm3996, %v3992, 1326507024
        %v4007 = vsel %vm3995, %v3989, %v4006
        %v4008 = vsel %vm3994, %v4005, %v4007
        %v4009 = vshll.u32 %v3969, 8
        %v4010 = vmul.u32.u64.compose %v4009, %v4008
        %v4011 = vextract.low.u32 %v4010
        %v4012 = vextract.high.u32 %v4010
        %v4013 = vmul.u32.u64.compose %v4009, %v4004
        %v4014 = vextract.low.u32 %v4013
        %v4015 = vextract.high.u32 %v4013
        %v4016 = vmul.u32 %v4009, %v4000
        %v4017 = vadd.s32 %v4012, %v4014
        %vm4018 = vc.u32 %v4012, %v4014
        %v4019 = vadd.s32 %v4015, 1
        %v4020 = vsel %vm4018, %v4019, %v4015
        %v4021 = vadd.s32 %v4016, %v4020
        %v4022 = vadd.s32 %v4021, 536870912
        %v4023 = vshrl.u32 %v4022, 30
        %v4024 = vshll.u32 %v4023, 30
        %v4025 = vsub.s32 %v4021, %v4024
        %vm4026 = vcmp.lt.s32.totalorder %v4025, 0
        %v4027 = vsub.s32 0, %v4025
        %v4028 = vsel %vm4026, %v4027, %v4025
        %v4029 = vclz %v4028
        %v4030 = vsub.s32 %v4029, 2
        %vm4031 = vcmp.gt.s32.totalorder 0, %v4030
        %v4032 = vsel %vm4031, 0, %v4030
        %v4033 = vsub.s32 32, %v4032
        %v4034 = vshll.u32 %v4025, %v4032
        %v4035 = vshrl.u32 %v4017, %v4033
        %v4036 = vor.u32 %v4034, %v4035
        %v4037 = vsub.s32 4294967266, %v4032
        %v4038 = vadd.s32 %v4037, 127
        %v4039 = vshll.u32 %v4038, 23
        %v4040 = vor.u32 4788187, %v4039
        %v4041 = vand.u32 2147483647, %v4040
        %v4043 = vcvt.s32.f32 %v4036
        %v4044 = vmul.f32 %v4043, %v4041
        %v4045 = vxor.u32 %v4044, 2147483648
        %v4046 = vsel %vm3963, %v4045, %v4044
        %v4047 = vsub.s32 4, %v4023
        %v4048 = vsel %vm3963, %v4047, %v4023
        %v4049 = vsel %vm3962, %v3433, %v4046
        %v4050 = vsel %vm3962, 0, %v4048
        %v4051 = vcosq.f32.pop %v4049
        %v4052 = vsinq.f32.pop %v4049
        %vm4053 = vweird.f32 %v3433
        %v4054 = vadd.s32 %v4050, 3
        %v4055 = vand.u32 %v4054, 3
        %vm4056 = vcmp.lt.s32.totalorder %v4055, 2
        %vm4057 = vcmp.eq.s32.totalorder %v4055, 0
        %v4058 = vxor.u32 %v4052, 2147483648
        %v4059 = vsel %vm4057, %v4051, %v4058
        %vm4060 = vcmp.eq.s32.totalorder %v4055, 2
        %v4061 = vxor.u32 %v4051, 2147483648
        %v4062 = vsel %vm4060, %v4061, %v4052
        %v4063 = vsel %vm4056, %v4059, %v4062
        %v4064 = vsel %vm4053, nan, %v4063
        %v4065 = vand.u32 2147483647, %v3437
        %vm4066 = vcmp.le.f32.partialorder %v4065, 0.7853982
        %vm4067 = vcmp.lt.s32.totalorder %v3437, 0
        %v4068 = vand.u32 %v3437, 2139095040
        %v4069 = vshrl.u32 %v4068, 23
        %v4070 = vsub.s32 %v4069, 127
        %v4071 = vand.u32 2147483647, %v3437
        %v4072 = vand.u32 %v4071, 8388607
        %v4073 = vor.u32 %v4072, 8388608
        %v4074 = vsub.s32 0, %v4073
        %v4075 = vadd.s32 %v4070, 1
        %vm4076 = vcmp.gt.s32.totalorder %v4075, 0
        %v4077 = vsel %vm4076, %v4075, 0
        %v4078 = vshrl.u32 %v4077, 5
        %v4079 = vand.u32 %v4077, 31
        %v4080 = vsub.s32 32, %v4079
        %v4081 = vshrl.u32 683565275, %v4080
        %v4082 = vshll.u32 683565275, %v4079
        %v4083 = vshrl.u32 2475754826, %v4080
        %v4084 = vor.u32 %v4082, %v4083
        %v4085 = vshll.u32 2475754826, %v4079
        %v4086 = vshrl.u32 2131351028, %v4080
        %v4087 = vor.u32 %v4085, %v4086
        %v4088 = vshll.u32 2131351028, %v4079
        %v4089 = vshrl.u32 2102212464, %v4080
        %v4090 = vor.u32 %v4088, %v4089
        %v4091 = vshll.u32 2102212464, %v4079
        %v4092 = vshrl.u32 920167782, %v4080
        %v4093 = vor.u32 %v4091, %v4092
        %v4094 = vshll.u32 920167782, %v4079
        %v4095 = vshrl.u32 1326507024, %v4080
        %v4096 = vor.u32 %v4094, %v4095
        %vm4097 = vcmp.lt.s32.totalorder %v4078, 1
        %vm4098 = vcmp.lt.s32.totalorder %v4078, 2
        %vm4099 = vcmp.lt.s32.totalorder %v4078, 3
        %vm4100 = vcmp.lt.s32.totalorder %v4078, 4
        %v4101 = vsel %vm4097, %v4081, %v4084
        %v4102 = vsel %vm4100, %v4090, 2102212464
        %v4103 = vsel %vm4099, %v4087, %v4102
        %v4104 = vsel %vm4098, %v4101, %v4103
        %v4105 = vsel %vm4097, %v4084, %v4087
        %v4106 = vsel %vm4100, %v4093, 920167782
        %v4107 = vsel %vm4099, %v4090, %v4106
        %v4108 = vsel %vm4098, %v4105, %v4107
        %v4109 = vsel %vm4097, %v4087, %v4090
        %v4110 = vsel %vm4100, %v4096, 1326507024
        %v4111 = vsel %vm4099, %v4093, %v4110
        %v4112 = vsel %vm4098, %v4109, %v4111
        %v4113 = vshll.u32 %v4073, 8
        %v4114 = vmul.u32.u64.compose %v4113, %v4112
        %v4115 = vextract.low.u32 %v4114
        %v4116 = vextract.high.u32 %v4114
        %v4117 = vmul.u32.u64.compose %v4113, %v4108
        %v4118 = vextract.low.u32 %v4117
        %v4119 = vextract.high.u32 %v4117
        %v4120 = vmul.u32 %v4113, %v4104
        %v4121 = vadd.s32 %v4116, %v4118
        %vm4122 = vc.u32 %v4116, %v4118
        %v4123 = vadd.s32 %v4119, 1
        %v4124 = vsel %vm4122, %v4123, %v4119
        %v4125 = vadd.s32 %v4120, %v4124
        %v4126 = vadd.s32 %v4125, 536870912
        %v4127 = vshrl.u32 %v4126, 30
        %v4128 = vshll.u32 %v4127, 30
        %v4129 = vsub.s32 %v4125, %v4128
        %vm4130 = vcmp.lt.s32.totalorder %v4129, 0
        %v4131 = vsub.s32 0, %v4129
        %v4132 = vsel %vm4130, %v4131, %v4129
        %v4133 = vclz %v4132
        %v4134 = vsub.s32 %v4133, 2
        %vm4135 = vcmp.gt.s32.totalorder 0, %v4134
        %v4136 = vsel %vm4135, 0, %v4134
        %v4137 = vsub.s32 32, %v4136
        %v4138 = vshll.u32 %v4129, %v4136
        %v4139 = vshrl.u32 %v4121, %v4137
        %v4140 = vor.u32 %v4138, %v4139
        %v4141 = vsub.s32 4294967266, %v4136
        %v4142 = vadd.s32 %v4141, 127
        %v4143 = vshll.u32 %v4142, 23
        %v4144 = vor.u32 4788187, %v4143
        %v4145 = vand.u32 2147483647, %v4144
        %v4147 = vcvt.s32.f32 %v4140
        %v4148 = vmul.f32 %v4147, %v4145
        %v4149 = vxor.u32 %v4148, 2147483648
        %v4150 = vsel %vm4067, %v4149, %v4148
        %v4151 = vsub.s32 4, %v4127
        %v4152 = vsel %vm4067, %v4151, %v4127
        %v4153 = vsel %vm4066, %v3437, %v4150
        %v4154 = vsel %vm4066, 0, %v4152
        %v4155 = vcosq.f32.pop %v4153
        %v4156 = vsinq.f32.pop %v4153
        %vm4157 = vweird.f32 %v3437
        %v4158 = vadd.s32 %v4154, 3
        %v4159 = vand.u32 %v4158, 3
        %vm4160 = vcmp.lt.s32.totalorder %v4159, 2
        %vm4161 = vcmp.eq.s32.totalorder %v4159, 0
        %v4162 = vxor.u32 %v4156, 2147483648
        %v4163 = vsel %vm4161, %v4155, %v4162
        %vm4164 = vcmp.eq.s32.totalorder %v4159, 2
        %v4165 = vxor.u32 %v4155, 2147483648
        %v4166 = vsel %vm4164, %v4165, %v4156
        %v4167 = vsel %vm4160, %v4163, %v4166
        %v4168 = vsel %vm4157, nan, %v4167
        %v4169 = vand.u32 2147483647, %v3439
        %vm4170 = vcmp.le.f32.partialorder %v4169, 0.7853982
        %vm4171 = vcmp.lt.s32.totalorder %v3439, 0
        %v4172 = vand.u32 %v3439, 2139095040
        %v4173 = vshrl.u32 %v4172, 23
        %v4174 = vsub.s32 %v4173, 127
        %v4175 = vand.u32 2147483647, %v3439
        %v4176 = vand.u32 %v4175, 8388607
        %v4177 = vor.u32 %v4176, 8388608
        %v4178 = vsub.s32 0, %v4177
        %v4179 = vadd.s32 %v4174, 1
        %vm4180 = vcmp.gt.s32.totalorder %v4179, 0
        %v4181 = vsel %vm4180, %v4179, 0
        %v4182 = vshrl.u32 %v4181, 5
        %v4183 = vand.u32 %v4181, 31
        %v4184 = vsub.s32 32, %v4183
        %v4185 = vshrl.u32 683565275, %v4184
        %v4186 = vshll.u32 683565275, %v4183
        %v4187 = vshrl.u32 2475754826, %v4184
        %v4188 = vor.u32 %v4186, %v4187
        %v4189 = vshll.u32 2475754826, %v4183
        %v4190 = vshrl.u32 2131351028, %v4184
        %v4191 = vor.u32 %v4189, %v4190
        %v4192 = vshll.u32 2131351028, %v4183
        %v4193 = vshrl.u32 2102212464, %v4184
        %v4194 = vor.u32 %v4192, %v4193
        %v4195 = vshll.u32 2102212464, %v4183
        %v4196 = vshrl.u32 920167782, %v4184
        %v4197 = vor.u32 %v4195, %v4196
        %v4198 = vshll.u32 920167782, %v4183
        %v4199 = vshrl.u32 1326507024, %v4184
        %v4200 = vor.u32 %v4198, %v4199
        %vm4201 = vcmp.lt.s32.totalorder %v4182, 1
        %vm4202 = vcmp.lt.s32.totalorder %v4182, 2
        %vm4203 = vcmp.lt.s32.totalorder %v4182, 3
        %vm4204 = vcmp.lt.s32.totalorder %v4182, 4
        %v4205 = vsel %vm4201, %v4185, %v4188
        %v4206 = vsel %vm4204, %v4194, 2102212464
        %v4207 = vsel %vm4203, %v4191, %v4206
        %v4208 = vsel %vm4202, %v4205, %v4207
        %v4209 = vsel %vm4201, %v4188, %v4191
        %v4210 = vsel %vm4204, %v4197, 920167782
        %v4211 = vsel %vm4203, %v4194, %v4210
        %v4212 = vsel %vm4202, %v4209, %v4211
        %v4213 = vsel %vm4201, %v4191, %v4194
        %v4214 = vsel %vm4204, %v4200, 1326507024
        %v4215 = vsel %vm4203, %v4197, %v4214
        %v4216 = vsel %vm4202, %v4213, %v4215
        %v4217 = vshll.u32 %v4177, 8
        %v4218 = vmul.u32.u64.compose %v4217, %v4216
        %v4219 = vextract.low.u32 %v4218
        %v4220 = vextract.high.u32 %v4218
        %v4221 = vmul.u32.u64.compose %v4217, %v4212
        %v4222 = vextract.low.u32 %v4221
        %v4223 = vextract.high.u32 %v4221
        %v4224 = vmul.u32 %v4217, %v4208
        %v4225 = vadd.s32 %v4220, %v4222
        %vm4226 = vc.u32 %v4220, %v4222
        %v4227 = vadd.s32 %v4223, 1
        %v4228 = vsel %vm4226, %v4227, %v4223
        %v4229 = vadd.s32 %v4224, %v4228
        %v4230 = vadd.s32 %v4229, 536870912
        %v4231 = vshrl.u32 %v4230, 30
        %v4232 = vshll.u32 %v4231, 30
        %v4233 = vsub.s32 %v4229, %v4232
        %vm4234 = vcmp.lt.s32.totalorder %v4233, 0
        %v4235 = vsub.s32 0, %v4233
        %v4236 = vsel %vm4234, %v4235, %v4233
        %v4237 = vclz %v4236
        %v4238 = vsub.s32 %v4237, 2
        %vm4239 = vcmp.gt.s32.totalorder 0, %v4238
        %v4240 = vsel %vm4239, 0, %v4238
        %v4241 = vsub.s32 32, %v4240
        %v4242 = vshll.u32 %v4233, %v4240
        %v4243 = vshrl.u32 %v4225, %v4241
        %v4244 = vor.u32 %v4242, %v4243
        %v4245 = vsub.s32 4294967266, %v4240
        %v4246 = vadd.s32 %v4245, 127
        %v4247 = vshll.u32 %v4246, 23
        %v4248 = vor.u32 4788187, %v4247
        %v4249 = vand.u32 2147483647, %v4248
        %v4251 = vcvt.s32.f32 %v4244
        %v4252 = vmul.f32 %v4251, %v4249
        %v4253 = vxor.u32 %v4252, 2147483648
        %v4254 = vsel %vm4171, %v4253, %v4252
        %v4255 = vsub.s32 4, %v4231
        %v4256 = vsel %vm4171, %v4255, %v4231
        %v4257 = vsel %vm4170, %v3439, %v4254
        %v4258 = vsel %vm4170, 0, %v4256
        %v4259 = vcosq.f32.pop %v4257
        %v4260 = vsinq.f32.pop %v4257
        %vm4261 = vweird.f32 %v3439
        %v4262 = vadd.s32 %v4258, 3
        %v4263 = vand.u32 %v4262, 3
        %vm4264 = vcmp.lt.s32.totalorder %v4263, 2
        %vm4265 = vcmp.eq.s32.totalorder %v4263, 0
        %v4266 = vxor.u32 %v4260, 2147483648
        %v4267 = vsel %vm4265, %v4259, %v4266
        %vm4268 = vcmp.eq.s32.totalorder %v4263, 2
        %v4269 = vxor.u32 %v4259, 2147483648
        %v4270 = vsel %vm4268, %v4269, %v4260
        %v4271 = vsel %vm4264, %v4267, %v4270
        %v4272 = vsel %vm4261, nan, %v4271
        %v4273 = vadd.f32 %v3544, %v2343
        %v4274 = vadd.f32 %v3648, %v2344
        %v4275 = vadd.f32 %v3752, %v2345
        %v4276 = vadd.f32 %v3856, %v2346
        %v4277 = vadd.f32 %v3960, %v2347
        %v4278 = vadd.f32 %v4064, %v2348
        %v4279 = vadd.f32 %v4168, %v2349
        %v4280 = vadd.f32 %v4272, %v2350
        %v4281 = vld [vmem:[%s9] sm:$0x1]
        %v4282 = vld [vmem:[#allocation2] sm:$0x1]
        %4284 = vset.pattern.permute.xlu0 0
        %4285 = vperm.xlu0 %4284, %v4282
        %v4286 = vpop.permute.xlu0 %4285
        %v4288 = vlaneseq
        %v4289 = vshrl.u32 %v4288, 7
        %v4290 = vsub.s32 0, %v4289
        %v4291 = vrot.slane %v4286, %v4290
        %v4293 = vsel %vm1409, %v4281, 0
        %4295 = vmatprep.subr.mxu0 %v4274
        %4296 = vmatpush1.msra.mxu0 %v4273
        %4297 = vmatprep.subr.mxu0 %v4276
        %4298 = vmatpush1.msra.mxu0 %v4275
        %4299 = vmatprep.subr.mxu0 %v4278
        %4300 = vmatpush1.msra.mxu0 %v4277
        %4301 = vmatprep.subr.mxu0 %v4280
        %4302 = vmatpush1.msra.mxu0 %v4279
        %4303 = vmatprep.subr.mxu0 0.0
        %4304 = vmatpush1.msra.mxu0 0.0
        %4305 = vmatprep.subr.mxu0 0.0
        %4306 = vmatpush1.msra.mxu0 0.0
        %4307 = vmatprep.subr.mxu0 0.0
        %4308 = vmatpush1.msra.mxu0 0.0
        %4309 = vmatprep.subr.mxu0 0.0
        %4310 = vmatpush1.msra.mxu0 0.0
        %4311 = vmatprep.subr.mxu0 0.0
        %4312 = vmatpush1.msra.mxu0 0.0
        %4313 = vmatprep.subr.mxu0 0.0
        %4314 = vmatpush1.msra.mxu0 0.0
        %4315 = vmatprep.subr.mxu0 0.0
        %4316 = vmatpush1.msra.mxu0 0.0
        %4317 = vmatprep.subr.mxu0 0.0
        %4318 = vmatpush1.msra.mxu0 0.0
        %4319 = vmatprep.subr.mxu0 0.0
        %4320 = vmatpush1.msra.mxu0 0.0
        %4321 = vmatprep.subr.mxu0 0.0
        %4322 = vmatpush1.msra.mxu0 0.0
        %4323 = vmatprep.subr.mxu0 0.0
        %4324 = vmatpush1.msra.mxu0 0.0
        %4325 = vmatprep.subr.mxu0 0.0
        %4326 = vmatpush1.msra.mxu0 0.0
        %4327 = vmatprep.subr.mxu0 0.0
        %4328 = vmatpush1.msra.mxu0 0.0
        %4329 = vmatprep.subr.mxu0 0.0
        %4330 = vmatpush1.msra.mxu0 0.0
        %4331 = vmatprep.subr.mxu0 0.0
        %4332 = vmatpush1.msra.mxu0 0.0
        %4333 = vmatprep.subr.mxu0 0.0
        %4334 = vmatpush1.msra.mxu0 0.0
        %4335 = vmatprep.subr.mxu0 0.0
        %4336 = vmatpush1.msra.mxu0 0.0
        %4337 = vmatprep.subr.mxu0 0.0
        %4338 = vmatpush1.msra.mxu0 0.0
        %4339 = vmatprep.subr.mxu0 0.0
        %4340 = vmatpush1.msra.mxu0 0.0
        %4341 = vmatprep.subr.mxu0 0.0
        %4342 = vmatpush1.msra.mxu0 0.0
        %4343 = vmatprep.subr.mxu0 0.0
        %4344 = vmatpush1.msra.mxu0 0.0
        %4345 = vmatprep.subr.mxu0 0.0
        %4346 = vmatpush1.msra.mxu0 0.0
        %4347 = vmatprep.subr.mxu0 0.0
        %4348 = vmatpush1.msra.mxu0 0.0
        %4349 = vmatprep.subr.mxu0 0.0
        %4350 = vmatpush1.msra.mxu0 0.0
        %4351 = vmatprep.subr.mxu0 0.0
        %4352 = vmatpush1.msra.mxu0 0.0
        %4353 = vmatprep.subr.mxu0 0.0
        %4354 = vmatpush1.msra.mxu0 0.0
        %4355 = vmatprep.subr.mxu0 0.0
        %4356 = vmatpush1.msra.mxu0 0.0
        %4357 = vmatprep.subr.mxu0 0.0
        %4358 = vmatpush1.msra.mxu0 0.0
        %4359 = vmatprep.mubr.f32.mxu0 0.0
        %4360 = vmatmul.mubr.f32.gmra.mrb[0].mxu0 %v4293
        %v4361 = vpop.f32.mrb[0].mxu0
        %v4362 = vadd.f32 %v4291, %v4361
        %v4363 = vpop.f32.mrb[0].mxu0
        %v4364 = vadd.f32 %v4291, %v4363
        %4365 = vdwg.mxu0
        %v4368 = vcombine.low %v4362, %v4364
        %v4370 = vunpack.c.l.s4 1966171168
        %v4371 = vunpack.c.0.s8 %v4370
        %v4372 = vlaneseq
        %v4373 = vshrl.u32 %v4372, 7
        %v4374 = vsub.s32 %v4371, %v4373
        %v4375 = vrot.slane %v4368, %v4374
        %v4377 = vunpack.c.l.s4 1966171168
        %v4378 = vunpack.c.0.s8 %v4377
        %v4379 = vlaneseq
        %v4380 = vshrl.u32 %v4379, 7
        %v4381 = vsub.s32 %v4378, %v4380
        %v4382 = vrot.slane %v4375, %v4381
        %v4384 = vlaneseq
        %vm4385 = vcmp.ge.s32.totalorder %v4384, 0
        %vm4386 = vcmp.lt.s32.totalorder %v4384, 256
        %vm4387 = vmand %vm4385, %vm4386
        %4388 = vst.msk [vmem:[%s412] sm:$0x3] %vm4387, %v4382
        %s4389 = sand.u32 %s271, 1
        %s4390 = scalar_lea.sflag [#allocation5], %s4389
        %s4391 = sand.u32 %s271, 1
        %s4392 = smul.addr %s4391, 2
        %s4393 = scalar_lea.vmem [#allocation4], %s4392
        // Predicated region
        $region88: #{tpu_custom_call.1} parent=82 // pred_check
          %p4394 = pneg %p281
        $region89: #{tpu_custom_call.1} parent=82 // pred_check_branch
          %4396 = sbr.rel (%p4394) target = $region91
        $region90: #{tpu_custom_call.1} parent=82 // pred_region
          %s4397 = smul.u32 2, %s27
          %s4399 = ssub.s32 32, 32
          %4400 = vsyncadd %s4390, %s4399
          %s4401 = smul.addr %s4397, 16
          %s4402 = scalar_lea.hbm %s11, %s4401
          %s4404 = sshll.u32 %s4393, 4
          %s4405 = int_to_ptr.vmem [resolvable:$true] %s4404
          %4407 = dma.vmem_to_hbm [thread:$0]  %s4405, 32, %s4402, %s4390
        $region91: #{tpu_custom_call.1} parent=82 // pred_fallthru
          _
      $region83: #{tpu_custom_call.1} parent=5 // pred_fallthru
        _
      %p4408 = scmp.le.s32.totalorder 2, %s22
      // Predicated region
      $region92: #{tpu_custom_call.1} parent=5 // pred_check
        %p4409 = pneg %p4408
      $region93: #{tpu_custom_call.1} parent=5 // pred_check_branch
        %4411 = sbr.rel (%p4409) target = $region95
      $region94: #{tpu_custom_call.1} parent=5 // pred_region
        %s4412 = ssub.s32 %s22, 2
        // Predicated region
        $region96: #{tpu_custom_call.1} parent=94 // pred_check
          %p4413 = pneg %p287
        $region97: #{tpu_custom_call.1} parent=94 // pred_check_branch
          %4415 = sbr.rel (%p4413) target = $region99
        $region98: #{tpu_custom_call.1} parent=94 // pred_region
          %s4416 = sand.u32 %s272, 1
          %s4417 = scalar_lea.sflag [#allocation5], %s4416
          %s4418 = sand.u32 %s272, 1
          %s4419 = smul.addr %s4418, 2
          %s4420 = scalar_lea.vmem [#allocation4], %s4419
          %4421 = dma.done %s4417, 32
        $region99: #{tpu_custom_call.1} parent=94 // pred_fallthru
          _
      $region95: #{tpu_custom_call.1} parent=5 // pred_fallthru
        _
    $region6: #{tpu_custom_call.1} parent=1 // loop_footer
      %s26 = sadd.s32 1, %s22
    $region7: #{tpu_custom_call.1} parent=1 // loop_footer_branch
      %21 = sbr.rel target = $region3
    $region8: #{tpu_custom_call.1} parent=1 // loop_exit
      _
    %4422 = vsyncpa [#allocation5], 1
    %s4423 = scalar_lea.sflag [#allocation5], 1
    %4424 = vsyncpa %s4423, 1

</llo_original>
